<compile_context>
chip_gen: v7x
topology: tpu7x:2x2x1
jax: 0.10.0
libtpu: 0.0.40
codegen_flags: <defaults>
</compile_context>

<pallas_src>
import functools

import jax
import jax.numpy as jnp
import numpy as np
from jax.experimental import pallas as pl
from jax.experimental.pallas import tpu as pltpu


def _attention_head_kernel(tap_ref, wc_ref, bc_ref, feat_ref, wfc_ref, pool_ref,
                           out_ref, acc_ref):
    t = pl.program_id(1)                     # conv tap (0..26), reduction axis

    # reset the conv accumulator at the first tap of every channel tile
    @pl.when(t == 0)
    def _():
        acc_ref[...] = jnp.zeros_like(acc_ref)

    # conv3d as a per-tap bf16 matmul with f32 accumulation: (BS, Cin)@(Cin, TC)
    acc_ref[...] += jnp.dot(tap_ref[0], wc_ref[0],
                            preferred_element_type=jnp.float32)

    @pl.when(t == pl.num_programs(1) - 1)
    def _():
        # relu(conv3d(att) + b)                                   (BS, TC)  f32
        conv = jnp.maximum(acc_ref[...] + bc_ref[...], 0.0)
        # Multiply(): features * att_mask                         (BS, TC)  f32
        prod = feat_ref[...] * conv
        # spatial mean pooling as a matmul with a 1/S indicator   (B, TC)
        pooled = jnp.dot(pool_ref[...], prod,
                         preferred_element_type=jnp.float32)
        # partial FC contribution of this channel tile, written exactly once
        out_ref[0] = jnp.dot(pooled, wfc_ref[...],
                             preferred_element_type=jnp.float32)


def pack_params(w_conv, b_conv, w_fc):
    """One-time weight repacking (hoisted out of the per-call path)."""
    Cout, Cin = w_conv.shape[0], w_conv.shape[1]
    # (Cout, Cin, 3,3,3) -> (27, Cin, Cout), tap order kd-major (matches im2col)
    w_taps = jnp.transpose(w_conv, (2, 3, 4, 1, 0)).reshape(27, Cin, Cout)
    w_taps = w_taps.astype(jnp.bfloat16)
    b_conv2d = b_conv.reshape(1, Cout).astype(jnp.float32)
    w_fc_t = jnp.transpose(w_fc).astype(jnp.float32)               # (Cout, NC)
    return w_taps, b_conv2d, w_fc_t


@functools.partial(jax.jit, static_argnames=("tile_c",))
def attention_head_forward(features, att_feats, w_taps, b_conv2d, w_fc_t, b_fc,
                           *, tile_c=None):
    """features, att_feats are NCDHW (PyTorch layout) backbone outputs."""
    B, Cout, D, H, W = features.shape
    _, Cin, _, _, _ = att_feats.shape
    num_classes = w_fc_t.shape[1]
    S = D * H * W
    BS = B * S
    if tile_c is None:
        tile_c = Cout                    # single channel tile: stream everything once
    assert Cout % tile_c == 0
    n_ctiles = Cout // tile_c            # tile_c=256 -> 2 parallel tiles (v7x megacore)

    # ---- glue (plain JAX, fused under jit): layout conversion + bf16 im2col ----
    feat_flat = jnp.transpose(features, (0, 2, 3, 4, 1)).reshape(BS, Cout)

    att_cl = jnp.transpose(att_feats, (0, 2, 3, 4, 1)).astype(jnp.bfloat16)
    att_pad = jnp.pad(att_cl, ((0, 0), (1, 1), (1, 1), (1, 1), (0, 0)))
    taps = []
    for kd in range(3):
        for kh in range(3):
            for kw in range(3):
                patch = att_pad[:, kd:kd + D, kh:kh + H, kw:kw + W, :]
                taps.append(patch.reshape(BS, Cin))
    taps = jnp.stack(taps, axis=0)                                 # (27, BS, Cin) bf16

    # constant pooling matrix: pool[b, b*S + s] = 1/S
    pool = jnp.repeat(jnp.eye(B, dtype=jnp.float32), S, axis=1) / float(S)

    grid_spec = pltpu.PrefetchScalarGridSpec(
        num_scalar_prefetch=0,
        grid=(n_ctiles, 27),
        in_specs=[
            pl.BlockSpec((1, BS, Cin), lambda j, t: (t, 0, 0)),       # taps (bf16)
            pl.BlockSpec((1, Cin, tile_c), lambda j, t: (t, 0, j)),   # conv w (bf16)
            pl.BlockSpec((1, tile_c), lambda j, t: (0, j)),           # conv bias
            pl.BlockSpec((BS, tile_c), lambda j, t: (0, j)),          # features
            pl.BlockSpec((tile_c, num_classes), lambda j, t: (j, 0)), # fc weight^T
            pl.BlockSpec((B, BS), lambda j, t: (0, 0)),               # pooling matrix
        ],
        out_specs=pl.BlockSpec((1, B, num_classes), lambda j, t: (j, 0, 0)),
        scratch_shapes=[pltpu.VMEM((BS, tile_c), jnp.float32)],
    )

    partial_logits = pl.pallas_call(
        _attention_head_kernel,
        out_shape=jax.ShapeDtypeStruct((n_ctiles, B, num_classes), jnp.float32),
        grid_spec=grid_spec,
        compiler_params=pltpu.CompilerParams(
            dimension_semantics=("parallel", "arbitrary"),
            vmem_limit_bytes=32 * 1024 * 1024),
    )(taps, w_taps, b_conv2d, feat_flat, w_fc_t, pool)

    # per-channel-tile partial logits -> final logits (+ fc bias) in the wrapper
    return jnp.sum(partial_logits, axis=0) + b_fc[None, :]


def reference(features, att_feats, w_conv, b_conv, w_fc, b_fc):
    conv = jax.lax.conv_general_dilated(
        att_feats, w_conv, window_strides=(1, 1, 1),
        padding=((1, 1), (1, 1), (1, 1)),
        dimension_numbers=("NCDHW", "OIDHW", "NCDHW"),
        precision=jax.lax.Precision.HIGHEST)
    att = jnp.maximum(conv + b_conv[None, :, None, None, None], 0.0)
    att_features = features * att
    pooled = att_features.mean(axis=(2, 3, 4))
    return jnp.dot(pooled, w_fc.T, precision=jax.lax.Precision.HIGHEST) + b_fc


if __name__ == "__main__":
    # small but module-consistent shapes: model_name == "CBAM" -> block_num = 512,
    # last_convd input channels fixed at 896 by the module definition.
    B, D, H, W = 2, 4, 4, 4
    CIN_ATT = 896
    BLOCK_NUM = 512
    NUM_CLASSES = 4

    key = jax.random.PRNGKey(0)
    k1, k2, k3, k4, k5, k6 = jax.random.split(key, 6)

    # stand-ins for the external backbone outputs
    features = jax.random.normal(k1, (B, BLOCK_NUM, D, H, W), jnp.float32)   # extract_features(x)
    att_feats = jax.random.normal(k2, (B, CIN_ATT, D, H, W), jnp.float32)    # att_block(mask)

    # deterministic parameter init (shapes from the module __init__)
    w_conv = 0.05 * jax.random.normal(k3, (BLOCK_NUM, CIN_ATT, 3, 3, 3), jnp.float32)
    b_conv = 0.05 * jax.random.normal(k4, (BLOCK_NUM,), jnp.float32)
    w_fc = 0.05 * jax.random.normal(k5, (NUM_CLASSES, BLOCK_NUM), jnp.float32)
    b_fc = 0.05 * jax.random.normal(k6, (NUM_CLASSES,), jnp.float32)

    # one-time weight repacking (hoisted out of the forward path)
    w_taps, b_conv2d, w_fc_t = pack_params(w_conv, b_conv, w_fc)
    w_taps, b_conv2d, w_fc_t = jax.block_until_ready((w_taps, b_conv2d, w_fc_t))

    logits = attention_head_forward(features, att_feats, w_taps, b_conv2d,
                                    w_fc_t, b_fc)
    logits = jax.block_until_ready(logits)

    ref = reference(features, att_feats, w_conv, b_conv, w_fc, b_fc)
    np.testing.assert_allclose(np.asarray(logits), np.asarray(ref),
                               rtol=5e-2, atol=5e-2)
    print("KERNEL_OK")
</pallas_src>

<mosaic_0001>
module attributes {stable_mosaic.version = 11 : i64} {
  func.func @_attention_head_kernel(%arg0: i32, %arg1: i32, %arg2: memref<1x128x896xbf16, #tpu.memory_space<vmem>>, %arg3: memref<1x896x512xbf16, #tpu.memory_space<vmem>>, %arg4: memref<1x512xf32, #tpu.memory_space<vmem>>, %arg5: memref<128x512xf32, #tpu.memory_space<vmem>>, %arg6: memref<512x4xf32, #tpu.memory_space<vmem>>, %arg7: memref<2x128xf32, #tpu.memory_space<vmem>>, %arg8: memref<1x2x4xf32, #tpu.memory_space<vmem>>, %arg9: memref<128x512xf32, #tpu.memory_space<vmem>>) attributes {dimension_semantics = [#tpu.dimension_semantics<parallel>, #tpu.dimension_semantics<arbitrary>], iteration_bounds = array<i64: 1, 27>, scalar_prefetch = 0 : i64, scratch_operands = 1 : i64, tpu.core_type = #tpu.core_type<tc>, window_params = [{transform_indices = @transform_0, window_bounds = array<i64: 1, 128, 896>}, {transform_indices = @transform_1, window_bounds = array<i64: 1, 896, 512>}, {transform_indices = @transform_2, window_bounds = array<i64: 1, 512>}, {transform_indices = @transform_3, window_bounds = array<i64: 128, 512>}, {transform_indices = @transform_4, window_bounds = array<i64: 512, 4>}, {pipeline_mode = #tpu.pipeline_mode<synchronous>, transform_indices = @transform_5, window_bounds = array<i64: 2, 128>}, {transform_indices = @transform_6, window_bounds = array<i64: 1, 2, 4>}]} {
    %c0_i32 = arith.constant 0 : i32
    %0 = arith.cmpi eq, %arg1, %c0_i32 : i32
    %1 = arith.extui %0 : i1 to i32
    %c0_i32_0 = arith.constant 0 : i32
    %2 = arith.cmpi ne, %1, %c0_i32_0 : i32
    scf.if %2 {
      %cst_11 = arith.constant 0.000000e+00 : f32
      %14 = vector.broadcast %cst_11 : f32 to vector<128x512xf32>
      %c0_12 = arith.constant 0 : index
      %c0_13 = arith.constant 0 : index
      %15 = vector.load %arg9[%c0_12, %c0_13] : memref<128x512xf32, #tpu.memory_space<vmem>>, vector<128x512xf32>
      tpu.vector_store %arg9[%c0_12, %c0_13], %14 {strides = array<i32>} : memref<128x512xf32, #tpu.memory_space<vmem>>, vector<128x512xf32>,
    } else {
    }
    %c0 = arith.constant 0 : index
    %c0_1 = arith.constant 0 : index
    %3 = vector.load %arg9[%c0, %c0_1] : memref<128x512xf32, #tpu.memory_space<vmem>>, vector<128x512xf32>
    %c0_2 = arith.constant 0 : index
    %c0_3 = arith.constant 0 : index
    %c0_4 = arith.constant 0 : index
    %4 = vector.load %arg2[%c0_2, %c0_3, %c0_4] : memref<1x128x896xbf16, #tpu.memory_space<vmem>>, vector<1x128x896xbf16>
    %5 = vector.shape_cast %4 : vector<1x128x896xbf16> to vector<128x896xbf16>
    %c0_5 = arith.constant 0 : index
    %c0_6 = arith.constant 0 : index
    %c0_7 = arith.constant 0 : index
    %6 = vector.load %arg3[%c0_5, %c0_6, %c0_7] : memref<1x896x512xbf16, #tpu.memory_space<vmem>>, vector<1x896x512xbf16>
    %7 = vector.shape_cast %6 : vector<1x896x512xbf16> to vector<896x512xbf16>
    %cst = arith.constant dense<0.000000e+00> : vector<128x512xf32>
    %8 = tpu.matmul %5, %7, %cst {dimension_numbers = #tpu.dot_dimension_numbers<[1], [0], [0], [1], [0, 0, 1, 1], [], []>} : vector<128x896xbf16>, vector<896x512xbf16>, vector<128x512xf32> -> vector<128x512xf32>
    %9 = arith.addf %3, %8 : vector<128x512xf32>
    %c0_8 = arith.constant 0 : index
    %c0_9 = arith.constant 0 : index
    %10 = vector.load %arg9[%c0_8, %c0_9] : memref<128x512xf32, #tpu.memory_space<vmem>>, vector<128x512xf32>
    tpu.vector_store %arg9[%c0_8, %c0_9], %9 {strides = array<i32>} : memref<128x512xf32, #tpu.memory_space<vmem>>, vector<128x512xf32>,
    %c26_i32 = arith.constant 26 : i32
    %11 = arith.cmpi eq, %arg1, %c26_i32 : i32
    %12 = arith.extui %11 : i1 to i32
    %c0_i32_10 = arith.constant 0 : i32
    %13 = arith.cmpi ne, %12, %c0_i32_10 : i32
    scf.if %13 {
      %c0_11 = arith.constant 0 : index
      %c0_12 = arith.constant 0 : index
      %14 = vector.load %arg9[%c0_11, %c0_12] : memref<128x512xf32, #tpu.memory_space<vmem>>, vector<128x512xf32>
      %c0_13 = arith.constant 0 : index
      %c0_14 = arith.constant 0 : index
      %15 = vector.load %arg4[%c0_13, %c0_14] : memref<1x512xf32, #tpu.memory_space<vmem>>, vector<1x512xf32>
      %16 = vector.broadcast %15 : vector<1x512xf32> to vector<128x512xf32>
      %17 = arith.addf %14, %16 : vector<128x512xf32>
      %cst_15 = arith.constant 0.000000e+00 : f32
      %18 = vector.broadcast %cst_15 : f32 to vector<128x512xf32>
      %19 = arith.maximumf %17, %18 : vector<128x512xf32>
      %c0_16 = arith.constant 0 : index
      %c0_17 = arith.constant 0 : index
      %20 = vector.load %arg5[%c0_16, %c0_17] : memref<128x512xf32, #tpu.memory_space<vmem>>, vector<128x512xf32>
      %21 = arith.mulf %20, %19 : vector<128x512xf32>
      %c0_18 = arith.constant 0 : index
      %c0_19 = arith.constant 0 : index
      %22 = vector.load %arg7[%c0_18, %c0_19] : memref<2x128xf32, #tpu.memory_space<vmem>>, vector<2x128xf32>
      %cst_20 = arith.constant dense<0.000000e+00> : vector<2x512xf32>
      %23 = tpu.matmul %22, %21, %cst_20 {dimension_numbers = #tpu.dot_dimension_numbers<[1], [0], [0], [1], [0, 0, 1, 1], [], []>} : vector<2x128xf32>, vector<128x512xf32>, vector<2x512xf32> -> vector<2x512xf32>
      %c0_21 = arith.constant 0 : index
      %c0_22 = arith.constant 0 : index
      %24 = vector.load %arg6[%c0_21, %c0_22] : memref<512x4xf32, #tpu.memory_space<vmem>>, vector<512x4xf32>
      %cst_23 = arith.constant dense<0.000000e+00> : vector<2x4xf32>
      %25 = tpu.matmul %23, %24, %cst_23 {dimension_numbers = #tpu.dot_dimension_numbers<[1], [0], [0], [1], [0, 0, 1, 1], [], []>} : vector<2x512xf32>, vector<512x4xf32>, vector<2x4xf32> -> vector<2x4xf32>
      %c0_24 = arith.constant 0 : index
      %c0_25 = arith.constant 0 : index
      %c0_26 = arith.constant 0 : index
      %26 = vector.load %arg8[%c0_24, %c0_25, %c0_26] : memref<1x2x4xf32, #tpu.memory_space<vmem>>, vector<1x2x4xf32>
      %27 = vector.shape_cast %26 : vector<1x2x4xf32> to vector<2x4xf32>
      %28 = vector.shape_cast %25 : vector<2x4xf32> to vector<1x2x4xf32>
      tpu.vector_store %arg8[%c0_24, %c0_25, %c0_26], %28 {strides = array<i32>} : memref<1x2x4xf32, #tpu.memory_space<vmem>>, vector<1x2x4xf32>,
    } else {
    }
    return
  }
  func.func @transform_0(%arg0: i32, %arg1: i32) -> (i32, i32, i32) {
    %c0_i32 = arith.constant 0 : i32
    %c0_i32_0 = arith.constant 0 : i32
    %c0_i32_1 = arith.constant 0 : i32
    return %arg1, %c0_i32, %c0_i32_0 : i32, i32, i32
  }
  func.func @transform_1(%arg0: i32, %arg1: i32) -> (i32, i32, i32) {
    %c0_i32 = arith.constant 0 : i32
    %c0_i32_0 = arith.constant 0 : i32
    return %arg1, %c0_i32, %arg0 : i32, i32, i32
  }
  func.func @transform_2(%arg0: i32, %arg1: i32) -> (i32, i32) {
    %c0_i32 = arith.constant 0 : i32
    %c0_i32_0 = arith.constant 0 : i32
    return %c0_i32, %arg0 : i32, i32
  }
  func.func @transform_3(%arg0: i32, %arg1: i32) -> (i32, i32) {
    %c0_i32 = arith.constant 0 : i32
    %c0_i32_0 = arith.constant 0 : i32
    return %c0_i32, %arg0 : i32, i32
  }
  func.func @transform_4(%arg0: i32, %arg1: i32) -> (i32, i32) {
    %c0_i32 = arith.constant 0 : i32
    %c0_i32_0 = arith.constant 0 : i32
    return %arg0, %c0_i32 : i32, i32
  }
  func.func @transform_5(%arg0: i32, %arg1: i32) -> (i32, i32) {
    %c0_i32 = arith.constant 0 : i32
    %c0_i32_0 = arith.constant 0 : i32
    %c0_i32_1 = arith.constant 0 : i32
    return %c0_i32, %c0_i32_0 : i32, i32
  }
  func.func @transform_6(%arg0: i32, %arg1: i32) -> (i32, i32, i32) {
    %c0_i32 = arith.constant 0 : i32
    %c0_i32_0 = arith.constant 0 : i32
    %c0_i32_1 = arith.constant 0 : i32
    return %arg0, %c0_i32, %c0_i32_0 : i32, i32, i32
  }
}

</mosaic_0001>

<llo_original>
// kernel: attention_head_forward.1
$region0: #{attention_head_forward.1}
  #allocation0 [shape = 'u32[]', space=smem, size = 0x4, offset = 0x4, fixed_abs, tag = 'smem constant byte address 0x4 - core index']
  #allocation1 [shape = 'u32[144,128]{1,0:T(1,128)}', space=vmem, size = 0x12000, scoped, tag = 'internal scratch']
  #allocation2 [shape = 'f32[128,512]{1,0:T(8,128)}', space=vmem, size = 0x40000, scoped, tag = 'scratch operand']
  %s0 = inlined_call_operand.vmem [shape: bf16[27,128,896], index: 0, kind: input, shape index: {}]
  %s1 = inlined_call_operand.vmem [shape: bf16[27,896,512], index: 1, kind: input, shape index: {}]
  %s2 = inlined_call_operand.vmem [shape: f32[1,512], index: 2, kind: input, shape index: {}]
  %s3 = inlined_call_operand.vmem [shape: f32[128,512], index: 3, kind: input, shape index: {}]
  %s4 = inlined_call_operand.vmem [shape: f32[512,4], index: 4, kind: input, shape index: {}]
  %s5 = inlined_call_operand.vmem [shape: f32[2,128], index: 5, kind: input, shape index: {}]
  %s6 = inlined_call_operand.vmem [shape: f32[1,2,4], index: 6, kind: output, shape index: {}]
  %s7 = sld [smem:[#allocation0]]
  $region65: #{attention_head_forward.1} parent=0
    _
  %s9 = ssub.s32 1, %s7
  %s10 = scalar_select 0, %s9, %s7
  loop: start=0, step=1, limit=29
  $region2: #{attention_head_forward.1} parent=0 // loop_pre_header
    _
  $region3: #{attention_head_forward.1} parent=0 // loop_header
    %s12 = sphi 0, %s16
    %p13 = scmp.ge.s32.totalorder %s12, 29
    %s19 = sphi 0, %s31
    %s20 = sphi 0, %s27
    %s21 = sphi 0, %s19
    %s22 = sphi 0, %s20
    %s23 = sphi 0, %s21
    %s24 = sphi 0, %s22
    %s34 = sphi 0, %s36
    %s37 = sphi 0, %s34
    %s38 = sphi 0, %s37
    %s54 = sphi 0, %s38
    %s62 = sphi 0, %s64
    %s65 = sphi 0, %s62
    %s66 = sphi 0, %s65
    %s82 = sphi 0, %s66
    %s88 = sphi 0, %s90
    %s91 = sphi 0, %s88
    %s92 = sphi 0, %s91
    %s108 = sphi 0, %s92
    %s114 = sphi 0, %s116
    %s117 = sphi 0, %s114
    %s118 = sphi 0, %s117
    %s134 = sphi 0, %s118
    %s140 = sphi 0, %s142
    %s143 = sphi 0, %s140
    %s144 = sphi 0, %s143
    %s160 = sphi 0, %s144
    %s164 = sphi 0, %s164
    %s166 = sphi 0, %s164
    %s167 = sphi 0, %s166
    %s181 = sphi 0, %s167
    %s187 = sphi 0, %s189
    %s190 = sphi 0, %s187
    %s191 = sphi 0, %s190
    %s207 = sphi 0, %s191
  $region4: #{attention_head_forward.1} parent=0 // loop_header_branch
    %15 = sbr.rel (%p13) target = $region8
  $region5: #{attention_head_forward.1} parent=0 // loop_body
    %s17 = ssub.s32 %s12, 1
    %s18 = ssub.s32 %s12, 2
    %s25 = sadd.s32 1, %s20
    %p26 = scmp.ge.s32.totalorder %s25, 27
    %s27 = scalar_select %p26, 0, %s25
    %s28 = sadd.s32 1, %s19
    %s29 = scalar_select %p26, %s28, %s19
    %p30 = scmp.ge.s32.totalorder %s29, 1
    %s31 = scalar_select %p30, 0, %s29
    %s32 = ssub.s32 %s20, %s27
    %p33 = scmp.eq.s32.totalorder %s32, 0
    %s35 = sadd.s32 %s34, 1
    %s36 = scalar_select %p33, %s34, %s35
    %p39 = pneg %p33
    %p40 = scmp.eq.s32.totalorder %s12, 26
    %p41 = por %p39, %p40
    %p42 = scmp.ne.s32.totalorder %s34, %s37
    %p43 = scmp.eq.s32.totalorder %s12, 0
    %p44 = por %p42, %p43
    %p45 = scmp.ne.s32.totalorder %s34, %s37
    %p46 = scmp.eq.s32.totalorder %s17, 26
    %p47 = por %p45, %p46
    %p48 = scmp.ne.s32.totalorder %s37, %s38
    %p49 = scmp.eq.s32.totalorder %s17, 0
    %p50 = por %p48, %p49
    %p51 = scmp.ne.s32.totalorder %s37, %s38
    %p52 = scmp.eq.s32.totalorder %s18, 26
    %p53 = por %p51, %p52
    %p55 = scmp.ne.s32.totalorder %s38, %s54
    %p56 = scmp.eq.s32.totalorder %s18, 0
    %p57 = por %p55, %p56
    %s58 = ssub.s32 %s20, %s27
    %s59 = ssub.s32 %s19, %s31
    %s60 = sor.u32 %s58, %s59
    %p61 = scmp.eq.s32.totalorder %s60, 0
    %s63 = sadd.s32 %s62, 1
    %s64 = scalar_select %p61, %s62, %s63
    %p67 = pneg %p61
    %p68 = scmp.eq.s32.totalorder %s12, 26
    %p69 = por %p67, %p68
    %p70 = scmp.ne.s32.totalorder %s62, %s65
    %p71 = scmp.eq.s32.totalorder %s12, 0
    %p72 = por %p70, %p71
    %p73 = scmp.ne.s32.totalorder %s62, %s65
    %p74 = scmp.eq.s32.totalorder %s17, 26
    %p75 = por %p73, %p74
    %p76 = scmp.ne.s32.totalorder %s65, %s66
    %p77 = scmp.eq.s32.totalorder %s17, 0
    %p78 = por %p76, %p77
    %p79 = scmp.ne.s32.totalorder %s65, %s66
    %p80 = scmp.eq.s32.totalorder %s18, 26
    %p81 = por %p79, %p80
    %p83 = scmp.ne.s32.totalorder %s66, %s82
    %p84 = scmp.eq.s32.totalorder %s18, 0
    %p85 = por %p83, %p84
    %s86 = ssub.s32 %s19, %s31
    %p87 = scmp.eq.s32.totalorder %s86, 0
    %s89 = sadd.s32 %s88, 1
    %s90 = scalar_select %p87, %s88, %s89
    %p93 = pneg %p87
    %p94 = scmp.eq.s32.totalorder %s12, 26
    %p95 = por %p93, %p94
    %p96 = scmp.ne.s32.totalorder %s88, %s91
    %p97 = scmp.eq.s32.totalorder %s12, 0
    %p98 = por %p96, %p97
    %p99 = scmp.ne.s32.totalorder %s88, %s91
    %p100 = scmp.eq.s32.totalorder %s17, 26
    %p101 = por %p99, %p100
    %p102 = scmp.ne.s32.totalorder %s91, %s92
    %p103 = scmp.eq.s32.totalorder %s17, 0
    %p104 = por %p102, %p103
    %p105 = scmp.ne.s32.totalorder %s91, %s92
    %p106 = scmp.eq.s32.totalorder %s18, 26
    %p107 = por %p105, %p106
    %p109 = scmp.ne.s32.totalorder %s92, %s108
    %p110 = scmp.eq.s32.totalorder %s18, 0
    %p111 = por %p109, %p110
    %s112 = ssub.s32 %s19, %s31
    %p113 = scmp.eq.s32.totalorder %s112, 0
    %s115 = sadd.s32 %s114, 1
    %s116 = scalar_select %p113, %s114, %s115
    %p119 = pneg %p113
    %p120 = scmp.eq.s32.totalorder %s12, 26
    %p121 = por %p119, %p120
    %p122 = scmp.ne.s32.totalorder %s114, %s117
    %p123 = scmp.eq.s32.totalorder %s12, 0
    %p124 = por %p122, %p123
    %p125 = scmp.ne.s32.totalorder %s114, %s117
    %p126 = scmp.eq.s32.totalorder %s17, 26
    %p127 = por %p125, %p126
    %p128 = scmp.ne.s32.totalorder %s117, %s118
    %p129 = scmp.eq.s32.totalorder %s17, 0
    %p130 = por %p128, %p129
    %p131 = scmp.ne.s32.totalorder %s117, %s118
    %p132 = scmp.eq.s32.totalorder %s18, 26
    %p133 = por %p131, %p132
    %p135 = scmp.ne.s32.totalorder %s118, %s134
    %p136 = scmp.eq.s32.totalorder %s18, 0
    %p137 = por %p135, %p136
    %s138 = ssub.s32 %s19, %s31
    %p139 = scmp.eq.s32.totalorder %s138, 0
    %s141 = sadd.s32 %s140, 1
    %s142 = scalar_select %p139, %s140, %s141
    %p145 = pneg %p139
    %p146 = scmp.eq.s32.totalorder %s12, 26
    %p147 = por %p145, %p146
    %p148 = scmp.ne.s32.totalorder %s140, %s143
    %p149 = scmp.eq.s32.totalorder %s12, 0
    %p150 = por %p148, %p149
    %p151 = scmp.ne.s32.totalorder %s140, %s143
    %p152 = scmp.eq.s32.totalorder %s17, 26
    %p153 = por %p151, %p152
    %p154 = scmp.ne.s32.totalorder %s143, %s144
    %p155 = scmp.eq.s32.totalorder %s17, 0
    %p156 = por %p154, %p155
    %p157 = scmp.ne.s32.totalorder %s143, %s144
    %p158 = scmp.eq.s32.totalorder %s18, 26
    %p159 = por %p157, %p158
    %p161 = scmp.ne.s32.totalorder %s144, %s160
    %p162 = scmp.eq.s32.totalorder %s18, 0
    %p163 = por %p161, %p162
    %s165 = sadd.s32 %s164, 1
    %p168 = scmp.eq.s32.totalorder %s12, 26
    %p169 = scmp.ne.s32.totalorder %s164, %s166
    %p170 = scmp.eq.s32.totalorder %s12, 0
    %p171 = por %p169, %p170
    %p172 = scmp.ne.s32.totalorder %s164, %s166
    %p173 = scmp.eq.s32.totalorder %s17, 26
    %p174 = por %p172, %p173
    %p175 = scmp.ne.s32.totalorder %s166, %s167
    %p176 = scmp.eq.s32.totalorder %s17, 0
    %p177 = por %p175, %p176
    %p178 = scmp.ne.s32.totalorder %s166, %s167
    %p179 = scmp.eq.s32.totalorder %s18, 26
    %p180 = por %p178, %p179
    %p182 = scmp.ne.s32.totalorder %s167, %s181
    %p183 = scmp.eq.s32.totalorder %s18, 0
    %p184 = por %p182, %p183
    %s185 = ssub.s32 %s19, %s31
    %p186 = scmp.eq.s32.totalorder %s185, 0
    %s188 = sadd.s32 %s187, 1
    %s189 = scalar_select %p186, %s187, %s188
    %p192 = pneg %p186
    %p193 = scmp.eq.s32.totalorder %s12, 26
    %p194 = por %p192, %p193
    %p195 = scmp.ne.s32.totalorder %s187, %s190
    %p196 = scmp.eq.s32.totalorder %s12, 0
    %p197 = por %p195, %p196
    %p198 = scmp.ne.s32.totalorder %s187, %s190
    %p199 = scmp.eq.s32.totalorder %s17, 26
    %p200 = por %p198, %p199
    %p201 = scmp.ne.s32.totalorder %s190, %s191
    %p202 = scmp.eq.s32.totalorder %s17, 0
    %p203 = por %p201, %p202
    %p204 = scmp.ne.s32.totalorder %s190, %s191
    %p205 = scmp.eq.s32.totalorder %s18, 26
    %p206 = por %p204, %p205
    %p208 = scmp.ne.s32.totalorder %s191, %s207
    %p209 = scmp.eq.s32.totalorder %s18, 0
    %p210 = por %p208, %p209
    %p211 = scmp.le.s32.totalorder 1, %s12
    %p212 = scmp.lt.s32.totalorder %s12, 28
    %p213 = pnand %p211, %p212
    %p214 = pneg %p213
    // Predicated region
    $region9: #{attention_head_forward.1} parent=5 // pred_check
      _
    $region10: #{attention_head_forward.1} parent=5 // pred_check_branch
      %216 = sbr.rel (%p213) target = $region12
    $region11: #{attention_head_forward.1} parent=5 // pred_region
      %s217 = ssub.s32 %s12, 1
      // Predicated region
      $region13: #{attention_head_forward.1} parent=11 // pred_check
        %p218 = pneg %p104
      $region14: #{attention_head_forward.1} parent=11 // pred_check_branch
        %220 = sbr.rel (%p218) target = $region16
      $region15: #{attention_head_forward.1} parent=11 // pred_region
        %s221 = smul.u32 4, %s21
        %p222 = scmp.lt.s32.totalorder %s221, 3
        %s223 = scalar_select %p222, %s221, 3
        %s224 = scalar_lea.vmem %s2, %s223
        %s225 = smul.u32 4, %s21
      $region16: #{attention_head_forward.1} parent=11 // pred_fallthru
        _
      // Predicated region
      $region17: #{attention_head_forward.1} parent=11 // pred_check
        %p226 = pneg %p130
      $region18: #{attention_head_forward.1} parent=11 // pred_check_branch
        %228 = sbr.rel (%p226) target = $region20
      $region19: #{attention_head_forward.1} parent=11 // pred_region
        %s229 = smul.u32 4, %s21
        %p230 = scmp.lt.s32.totalorder %s229, 3
        %s231 = scalar_select %p230, %s229, 3
        %s232 = smul.addr %s231, 8
        %s233 = scalar_lea.vmem %s3, %s232
        %s234 = smul.u32 4, %s21
      $region20: #{attention_head_forward.1} parent=11 // pred_fallthru
        _
      // Predicated region
      $region21: #{attention_head_forward.1} parent=11 // pred_check
        %p235 = pneg %p156
      $region22: #{attention_head_forward.1} parent=11 // pred_check_branch
        %237 = sbr.rel (%p235) target = $region24
      $region23: #{attention_head_forward.1} parent=11 // pred_region
        %s238 = smul.u32 64, %s21
        %p239 = scmp.lt.s32.totalorder %s238, 63
        %s240 = scalar_select %p239, %s238, 63
        %s241 = smul.addr %s240, 8
        %s242 = scalar_lea.vmem %s4, %s241
        %s243 = smul.u32 64, %s21
      $region24: #{attention_head_forward.1} parent=11 // pred_fallthru
        _
      // Predicated region
      $region25: #{attention_head_forward.1} parent=11 // pred_check
        %p244 = pneg %p177
      $region26: #{attention_head_forward.1} parent=11 // pred_check_branch
        %246 = sbr.rel (%p244) target = $region28
      $region27: #{attention_head_forward.1} parent=11 // pred_region
        _
      $region28: #{attention_head_forward.1} parent=11 // pred_fallthru
        _
    $region12: #{attention_head_forward.1} parent=5 // pred_fallthru
      _
    %p247 = scmp.lt.s32.totalorder %s12, 27
    // Predicated region
    $region29: #{attention_head_forward.1} parent=5 // pred_check
      %p248 = pneg %p247
    $region30: #{attention_head_forward.1} parent=5 // pred_check_branch
      %250 = sbr.rel (%p248) target = $region32
    $region31: #{attention_head_forward.1} parent=5 // pred_region
      // Predicated region
      $region33: #{attention_head_forward.1} parent=31 // pred_check
        %p251 = pneg %p44
      $region34: #{attention_head_forward.1} parent=31 // pred_check_branch
        %253 = sbr.rel (%p251) target = $region36
      $region35: #{attention_head_forward.1} parent=31 // pred_region
        %p254 = scmp.lt.s32.totalorder %s20, 26
        %s255 = scalar_select %p254, %s20, 26
        %s256 = smul.addr %s255, 112
        %s257 = smul.addr %s256, 4
        %s258 = scalar_lea.vmem %s0, %s257
      $region36: #{attention_head_forward.1} parent=31 // pred_fallthru
        _
      // Predicated region
      $region37: #{attention_head_forward.1} parent=31 // pred_check
        %p259 = pneg %p72
      $region38: #{attention_head_forward.1} parent=31 // pred_check_branch
        %261 = sbr.rel (%p259) target = $region40
      $region39: #{attention_head_forward.1} parent=31 // pred_region
        %s262 = smul.u32 4, %s19
        %p263 = scmp.lt.s32.totalorder %s20, 26
        %s264 = scalar_select %p263, %s20, 26
        %p265 = scmp.lt.s32.totalorder %s262, 3
        %s266 = scalar_select %p265, %s262, 3
        %s267 = smul.addr %s264, 448
        %s268 = sadd.s32 %s266, %s267
        %s269 = smul.addr %s268, 4
        %s270 = scalar_lea.vmem %s1, %s269
        %s271 = smul.u32 4, %s19
      $region40: #{attention_head_forward.1} parent=31 // pred_fallthru
        _
    $region32: #{attention_head_forward.1} parent=5 // pred_fallthru
      _
    %p272 = scmp.le.s32.totalorder 1, %s12
    %p273 = scmp.lt.s32.totalorder %s12, 28
    %p274 = pnand %p272, %p273
    %p275 = pneg %p274
    // Predicated region
    $region41: #{attention_head_forward.1} parent=5 // pred_check
      _
    $region42: #{attention_head_forward.1} parent=5 // pred_check_branch
      %277 = sbr.rel (%p274) target = $region44
    $region43: #{attention_head_forward.1} parent=5 // pred_region
      %s278 = ssub.s32 %s12, 1
      %p279 = scmp.lt.s32.totalorder %s22, 26
      %s280 = scalar_select %p279, %s22, 26
      %s281 = smul.addr %s280, 112
      %s282 = smul.addr %s281, 4
      %s283 = scalar_lea.vmem %s0, %s282
      %p284 = pneg %p50
      %p285 = pneg %p47
      %s286 = smul.u32 4, %s21
      %p287 = scmp.lt.s32.totalorder %s22, 26
      %s288 = scalar_select %p287, %s22, 26
      %p289 = scmp.lt.s32.totalorder %s286, 3
      %s290 = scalar_select %p289, %s286, 3
      %s291 = smul.addr %s288, 448
      %s292 = sadd.s32 %s290, %s291
      %s293 = smul.addr %s292, 4
      %s294 = scalar_lea.vmem %s1, %s293
      %p295 = pneg %p78
      %p296 = pneg %p75
      %s297 = smul.u32 4, %s21
      %p298 = scmp.lt.s32.totalorder %s297, 3
      %s299 = scalar_select %p298, %s297, 3
      %s300 = scalar_lea.vmem %s2, %s299
      %p301 = pneg %p104
      %p302 = pneg %p101
      %s303 = smul.u32 4, %s21
      %p304 = scmp.lt.s32.totalorder %s303, 3
      %s305 = scalar_select %p304, %s303, 3
      %s306 = smul.addr %s305, 8
      %s307 = scalar_lea.vmem %s3, %s306
      %p308 = pneg %p130
      %p309 = pneg %p127
      %s310 = smul.u32 64, %s21
      %p311 = scmp.lt.s32.totalorder %s310, 63
      %s312 = scalar_select %p311, %s310, 63
      %s313 = smul.addr %s312, 8
      %s314 = scalar_lea.vmem %s4, %s313
      %p315 = pneg %p156
      %p316 = pneg %p153
      %p317 = pneg %p177
      %p318 = pneg %p174
      %p319 = pneg %p203
      %p320 = pneg %p200
      %p321 = scmp.lt.s32.totalorder %s21, 0
      %s322 = scalar_select %p321, %s21, 0
      %s323 = smul.addr %s322, 2
      %s324 = scalar_lea.vmem %s6, %s323
      %p325 = scmp.lt.s32.totalorder %s22, 26
      %s326 = scalar_select %p325, %s22, 26
      %s327 = smul.addr %s326, 112
      %s328 = smul.addr %s327, 4
      %s329 = scalar_lea.vmem %s0, %s328
      %s330 = smul.u32 4, %s21
      %p331 = scmp.lt.s32.totalorder %s22, 26
      %s332 = scalar_select %p331, %s22, 26
      %p333 = scmp.lt.s32.totalorder %s330, 3
      %s334 = scalar_select %p333, %s330, 3
      %s335 = smul.addr %s332, 448
      %s336 = sadd.s32 %s334, %s335
      %s337 = smul.addr %s336, 4
      %s338 = scalar_lea.vmem %s1, %s337
      %s339 = smul.u32 4, %s21
      %s340 = smul.u32 4, %s21
      %p341 = scmp.lt.s32.totalorder %s340, 3
      %s342 = scalar_select %p341, %s340, 3
      %s343 = scalar_lea.vmem %s2, %s342
      %s344 = smul.u32 4, %s21
      %s345 = smul.u32 4, %s21
      %p346 = scmp.lt.s32.totalorder %s345, 3
      %s347 = scalar_select %p346, %s345, 3
      %s348 = smul.addr %s347, 8
      %s349 = scalar_lea.vmem %s3, %s348
      %s350 = smul.u32 4, %s21
      %s351 = smul.u32 64, %s21
      %p352 = scmp.lt.s32.totalorder %s351, 63
      %s353 = scalar_select %p352, %s351, 63
      %s354 = smul.addr %s353, 8
      %s355 = scalar_lea.vmem %s4, %s354
      %s356 = smul.u32 64, %s21
      %p357 = scmp.lt.s32.totalorder %s21, 0
      %s358 = scalar_select %p357, %s21, 0
      %s359 = smul.addr %s358, 2
      %s360 = scalar_lea.vmem %s6, %s359
      %p362 = scmp.eq.s32.totalorder %s22, 0
      // Predicated region
      $region45: #{attention_head_forward.1} parent=43 // pred_check
        %p363 = pneg %p362
      $region46: #{attention_head_forward.1} parent=43 // pred_check_branch
        %365 = sbr.rel (%p363) target = $region48
      $region47: #{attention_head_forward.1} parent=43 // pred_region
        %366 = vst [vmem:[#allocation2] sm:$0xff] 0.0
        %367 = vst [vmem:[#allocation2 + $0x8] sm:$0xff] 0.0
        %368 = vst [vmem:[#allocation2 + $0x10] sm:$0xff] 0.0
        %369 = vst [vmem:[#allocation2 + $0x18] sm:$0xff] 0.0
        %370 = vst [vmem:[#allocation2 + $0x20] sm:$0xff] 0.0
        %371 = vst [vmem:[#allocation2 + $0x28] sm:$0xff] 0.0
        %372 = vst [vmem:[#allocation2 + $0x30] sm:$0xff] 0.0
        %373 = vst [vmem:[#allocation2 + $0x38] sm:$0xff] 0.0
        %374 = vst [vmem:[#allocation2 + $0x40] sm:$0xff] 0.0
        %375 = vst [vmem:[#allocation2 + $0x48] sm:$0xff] 0.0
        %376 = vst [vmem:[#allocation2 + $0x50] sm:$0xff] 0.0
        %377 = vst [vmem:[#allocation2 + $0x58] sm:$0xff] 0.0
        %378 = vst [vmem:[#allocation2 + $0x60] sm:$0xff] 0.0
        %379 = vst [vmem:[#allocation2 + $0x68] sm:$0xff] 0.0
        %380 = vst [vmem:[#allocation2 + $0x70] sm:$0xff] 0.0
        %381 = vst [vmem:[#allocation2 + $0x78] sm:$0xff] 0.0
        %382 = vst [vmem:[#allocation2 + $0x80] sm:$0xff] 0.0
        %383 = vst [vmem:[#allocation2 + $0x88] sm:$0xff] 0.0
        %384 = vst [vmem:[#allocation2 + $0x90] sm:$0xff] 0.0
        %385 = vst [vmem:[#allocation2 + $0x98] sm:$0xff] 0.0
        %386 = vst [vmem:[#allocation2 + $0xa0] sm:$0xff] 0.0
        %387 = vst [vmem:[#allocation2 + $0xa8] sm:$0xff] 0.0
        %388 = vst [vmem:[#allocation2 + $0xb0] sm:$0xff] 0.0
        %389 = vst [vmem:[#allocation2 + $0xb8] sm:$0xff] 0.0
        %390 = vst [vmem:[#allocation2 + $0xc0] sm:$0xff] 0.0
        %391 = vst [vmem:[#allocation2 + $0xc8] sm:$0xff] 0.0
        %392 = vst [vmem:[#allocation2 + $0xd0] sm:$0xff] 0.0
        %393 = vst [vmem:[#allocation2 + $0xd8] sm:$0xff] 0.0
        %394 = vst [vmem:[#allocation2 + $0xe0] sm:$0xff] 0.0
        %395 = vst [vmem:[#allocation2 + $0xe8] sm:$0xff] 0.0
        %396 = vst [vmem:[#allocation2 + $0xf0] sm:$0xff] 0.0
        %397 = vst [vmem:[#allocation2 + $0xf8] sm:$0xff] 0.0
        %398 = vst [vmem:[#allocation2 + $0x100] sm:$0xff] 0.0
        %399 = vst [vmem:[#allocation2 + $0x108] sm:$0xff] 0.0
        %400 = vst [vmem:[#allocation2 + $0x110] sm:$0xff] 0.0
        %401 = vst [vmem:[#allocation2 + $0x118] sm:$0xff] 0.0
        %402 = vst [vmem:[#allocation2 + $0x120] sm:$0xff] 0.0
        %403 = vst [vmem:[#allocation2 + $0x128] sm:$0xff] 0.0
        %404 = vst [vmem:[#allocation2 + $0x130] sm:$0xff] 0.0
        %405 = vst [vmem:[#allocation2 + $0x138] sm:$0xff] 0.0
        %406 = vst [vmem:[#allocation2 + $0x140] sm:$0xff] 0.0
        %407 = vst [vmem:[#allocation2 + $0x148] sm:$0xff] 0.0
        %408 = vst [vmem:[#allocation2 + $0x150] sm:$0xff] 0.0
        %409 = vst [vmem:[#allocation2 + $0x158] sm:$0xff] 0.0
        %410 = vst [vmem:[#allocation2 + $0x160] sm:$0xff] 0.0
        %411 = vst [vmem:[#allocation2 + $0x168] sm:$0xff] 0.0
        %412 = vst [vmem:[#allocation2 + $0x170] sm:$0xff] 0.0
        %413 = vst [vmem:[#allocation2 + $0x178] sm:$0xff] 0.0
        %414 = vst [vmem:[#allocation2 + $0x180] sm:$0xff] 0.0
        %415 = vst [vmem:[#allocation2 + $0x188] sm:$0xff] 0.0
        %416 = vst [vmem:[#allocation2 + $0x190] sm:$0xff] 0.0
        %417 = vst [vmem:[#allocation2 + $0x198] sm:$0xff] 0.0
        %418 = vst [vmem:[#allocation2 + $0x1a0] sm:$0xff] 0.0
        %419 = vst [vmem:[#allocation2 + $0x1a8] sm:$0xff] 0.0
        %420 = vst [vmem:[#allocation2 + $0x1b0] sm:$0xff] 0.0
        %421 = vst [vmem:[#allocation2 + $0x1b8] sm:$0xff] 0.0
        %422 = vst [vmem:[#allocation2 + $0x1c0] sm:$0xff] 0.0
        %423 = vst [vmem:[#allocation2 + $0x1c8] sm:$0xff] 0.0
        %424 = vst [vmem:[#allocation2 + $0x1d0] sm:$0xff] 0.0
        %425 = vst [vmem:[#allocation2 + $0x1d8] sm:$0xff] 0.0
        %426 = vst [vmem:[#allocation2 + $0x1e0] sm:$0xff] 0.0
        %427 = vst [vmem:[#allocation2 + $0x1e8] sm:$0xff] 0.0
        %428 = vst [vmem:[#allocation2 + $0x1f0] sm:$0xff] 0.0
        %429 = vst [vmem:[#allocation2 + $0x1f8] sm:$0xff] 0.0
      $region48: #{attention_head_forward.1} parent=43 // pred_fallthru
        _
      %v430 = vld [vmem:[#allocation2] sm:$0xff]
      %v431 = vld [vmem:[#allocation2 + $0x8] sm:$0xff]
      %v432 = vld [vmem:[#allocation2 + $0x10] sm:$0xff]
      %v433 = vld [vmem:[#allocation2 + $0x18] sm:$0xff]
      %v434 = vld [vmem:[#allocation2 + $0x20] sm:$0xff]
      %v435 = vld [vmem:[#allocation2 + $0x28] sm:$0xff]
      %v436 = vld [vmem:[#allocation2 + $0x30] sm:$0xff]
      %v437 = vld [vmem:[#allocation2 + $0x38] sm:$0xff]
      %v438 = vld [vmem:[#allocation2 + $0x40] sm:$0xff]
      %v439 = vld [vmem:[#allocation2 + $0x48] sm:$0xff]
      %v440 = vld [vmem:[#allocation2 + $0x50] sm:$0xff]
      %v441 = vld [vmem:[#allocation2 + $0x58] sm:$0xff]
      %v442 = vld [vmem:[#allocation2 + $0x60] sm:$0xff]
      %v443 = vld [vmem:[#allocation2 + $0x68] sm:$0xff]
      %v444 = vld [vmem:[#allocation2 + $0x70] sm:$0xff]
      %v445 = vld [vmem:[#allocation2 + $0x78] sm:$0xff]
      %v446 = vld [vmem:[#allocation2 + $0x80] sm:$0xff]
      %v447 = vld [vmem:[#allocation2 + $0x88] sm:$0xff]
      %v448 = vld [vmem:[#allocation2 + $0x90] sm:$0xff]
      %v449 = vld [vmem:[#allocation2 + $0x98] sm:$0xff]
      %v450 = vld [vmem:[#allocation2 + $0xa0] sm:$0xff]
      %v451 = vld [vmem:[#allocation2 + $0xa8] sm:$0xff]
      %v452 = vld [vmem:[#allocation2 + $0xb0] sm:$0xff]
      %v453 = vld [vmem:[#allocation2 + $0xb8] sm:$0xff]
      %v454 = vld [vmem:[#allocation2 + $0xc0] sm:$0xff]
      %v455 = vld [vmem:[#allocation2 + $0xc8] sm:$0xff]
      %v456 = vld [vmem:[#allocation2 + $0xd0] sm:$0xff]
      %v457 = vld [vmem:[#allocation2 + $0xd8] sm:$0xff]
      %v458 = vld [vmem:[#allocation2 + $0xe0] sm:$0xff]
      %v459 = vld [vmem:[#allocation2 + $0xe8] sm:$0xff]
      %v460 = vld [vmem:[#allocation2 + $0xf0] sm:$0xff]
      %v461 = vld [vmem:[#allocation2 + $0xf8] sm:$0xff]
      %v462 = vld [vmem:[#allocation2 + $0x100] sm:$0xff]
      %v463 = vld [vmem:[#allocation2 + $0x108] sm:$0xff]
      %v464 = vld [vmem:[#allocation2 + $0x110] sm:$0xff]
      %v465 = vld [vmem:[#allocation2 + $0x118] sm:$0xff]
      %v466 = vld [vmem:[#allocation2 + $0x120] sm:$0xff]
      %v467 = vld [vmem:[#allocation2 + $0x128] sm:$0xff]
      %v468 = vld [vmem:[#allocation2 + $0x130] sm:$0xff]
      %v469 = vld [vmem:[#allocation2 + $0x138] sm:$0xff]
      %v470 = vld [vmem:[#allocation2 + $0x140] sm:$0xff]
      %v471 = vld [vmem:[#allocation2 + $0x148] sm:$0xff]
      %v472 = vld [vmem:[#allocation2 + $0x150] sm:$0xff]
      %v473 = vld [vmem:[#allocation2 + $0x158] sm:$0xff]
      %v474 = vld [vmem:[#allocation2 + $0x160] sm:$0xff]
      %v475 = vld [vmem:[#allocation2 + $0x168] sm:$0xff]
      %v476 = vld [vmem:[#allocation2 + $0x170] sm:$0xff]
      %v477 = vld [vmem:[#allocation2 + $0x178] sm:$0xff]
      %v478 = vld [vmem:[#allocation2 + $0x180] sm:$0xff]
      %v479 = vld [vmem:[#allocation2 + $0x188] sm:$0xff]
      %v480 = vld [vmem:[#allocation2 + $0x190] sm:$0xff]
      %v481 = vld [vmem:[#allocation2 + $0x198] sm:$0xff]
      %v482 = vld [vmem:[#allocation2 + $0x1a0] sm:$0xff]
      %v483 = vld [vmem:[#allocation2 + $0x1a8] sm:$0xff]
      %v484 = vld [vmem:[#allocation2 + $0x1b0] sm:$0xff]
      %v485 = vld [vmem:[#allocation2 + $0x1b8] sm:$0xff]
      %v486 = vld [vmem:[#allocation2 + $0x1c0] sm:$0xff]
      %v487 = vld [vmem:[#allocation2 + $0x1c8] sm:$0xff]
      %v488 = vld [vmem:[#allocation2 + $0x1d0] sm:$0xff]
      %v489 = vld [vmem:[#allocation2 + $0x1d8] sm:$0xff]
      %v490 = vld [vmem:[#allocation2 + $0x1e0] sm:$0xff]
      %v491 = vld [vmem:[#allocation2 + $0x1e8] sm:$0xff]
      %v492 = vld [vmem:[#allocation2 + $0x1f0] sm:$0xff]
      %v493 = vld [vmem:[#allocation2 + $0x1f8] sm:$0xff]
      %v494 = vld [vmem:[%s329] sm:$0xff]
      %v495 = vld [vmem:[%s329 + $0x8] sm:$0xff]
      %v496 = vld [vmem:[%s329 + $0x10] sm:$0xff]
      %v497 = vld [vmem:[%s329 + $0x18] sm:$0xf]
      %v498 = vld [vmem:[%s329 + $0x1c] sm:$0xff]
      %v499 = vld [vmem:[%s329 + $0x24] sm:$0xff]
      %v500 = vld [vmem:[%s329 + $0x2c] sm:$0xff]
      %v501 = vld [vmem:[%s329 + $0x34] sm:$0xf]
      %v502 = vld [vmem:[%s329 + $0x38] sm:$0xff]
      %v503 = vld [vmem:[%s329 + $0x40] sm:$0xff]
      %v504 = vld [vmem:[%s329 + $0x48] sm:$0xff]
      %v505 = vld [vmem:[%s329 + $0x50] sm:$0xf]
      %v506 = vld [vmem:[%s329 + $0x54] sm:$0xff]
      %v507 = vld [vmem:[%s329 + $0x5c] sm:$0xff]
      %v508 = vld [vmem:[%s329 + $0x64] sm:$0xff]
      %v509 = vld [vmem:[%s329 + $0x6c] sm:$0xf]
      %v510 = vld [vmem:[%s329 + $0x70] sm:$0xff]
      %v511 = vld [vmem:[%s329 + $0x78] sm:$0xff]
      %v512 = vld [vmem:[%s329 + $0x80] sm:$0xff]
      %v513 = vld [vmem:[%s329 + $0x88] sm:$0xf]
      %v514 = vld [vmem:[%s329 + $0x8c] sm:$0xff]
      %v515 = vld [vmem:[%s329 + $0x94] sm:$0xff]
      %v516 = vld [vmem:[%s329 + $0x9c] sm:$0xff]
      %v517 = vld [vmem:[%s329 + $0xa4] sm:$0xf]
      %v518 = vld [vmem:[%s329 + $0xa8] sm:$0xff]
      %v519 = vld [vmem:[%s329 + $0xb0] sm:$0xff]
      %v520 = vld [vmem:[%s329 + $0xb8] sm:$0xff]
      %v521 = vld [vmem:[%s329 + $0xc0] sm:$0xf]
      %v522 = vld [vmem:[%s329 + $0xc4] sm:$0xff]
      %v523 = vld [vmem:[%s329 + $0xcc] sm:$0xff]
      %v524 = vld [vmem:[%s329 + $0xd4] sm:$0xff]
      %v525 = vld [vmem:[%s329 + $0xdc] sm:$0xf]
      %v526 = vld [vmem:[%s329 + $0xe0] sm:$0xff]
      %v527 = vld [vmem:[%s329 + $0xe8] sm:$0xff]
      %v528 = vld [vmem:[%s329 + $0xf0] sm:$0xff]
      %v529 = vld [vmem:[%s329 + $0xf8] sm:$0xf]
      %v530 = vld [vmem:[%s329 + $0xfc] sm:$0xff]
      %v531 = vld [vmem:[%s329 + $0x104] sm:$0xff]
      %v532 = vld [vmem:[%s329 + $0x10c] sm:$0xff]
      %v533 = vld [vmem:[%s329 + $0x114] sm:$0xf]
      %v534 = vld [vmem:[%s329 + $0x118] sm:$0xff]
      %v535 = vld [vmem:[%s329 + $0x120] sm:$0xff]
      %v536 = vld [vmem:[%s329 + $0x128] sm:$0xff]
      %v537 = vld [vmem:[%s329 + $0x130] sm:$0xf]
      %v538 = vld [vmem:[%s329 + $0x134] sm:$0xff]
      %v539 = vld [vmem:[%s329 + $0x13c] sm:$0xff]
      %v540 = vld [vmem:[%s329 + $0x144] sm:$0xff]
      %v541 = vld [vmem:[%s329 + $0x14c] sm:$0xf]
      %v542 = vld [vmem:[%s329 + $0x150] sm:$0xff]
      %v543 = vld [vmem:[%s329 + $0x158] sm:$0xff]
      %v544 = vld [vmem:[%s329 + $0x160] sm:$0xff]
      %v545 = vld [vmem:[%s329 + $0x168] sm:$0xf]
      %v546 = vld [vmem:[%s329 + $0x16c] sm:$0xff]
      %v547 = vld [vmem:[%s329 + $0x174] sm:$0xff]
      %v548 = vld [vmem:[%s329 + $0x17c] sm:$0xff]
      %v549 = vld [vmem:[%s329 + $0x184] sm:$0xf]
      %v550 = vld [vmem:[%s329 + $0x188] sm:$0xff]
      %v551 = vld [vmem:[%s329 + $0x190] sm:$0xff]
      %v552 = vld [vmem:[%s329 + $0x198] sm:$0xff]
      %v553 = vld [vmem:[%s329 + $0x1a0] sm:$0xf]
      %v554 = vld [vmem:[%s329 + $0x1a4] sm:$0xff]
      %v555 = vld [vmem:[%s329 + $0x1ac] sm:$0xff]
      %v556 = vld [vmem:[%s329 + $0x1b4] sm:$0xff]
      %v557 = vld [vmem:[%s329 + $0x1bc] sm:$0xf]
      %v558 = vld [vmem:[%s338] sm:$0xff]
      %v559 = vld [vmem:[%s338 + $0x8] sm:$0xff]
      %v560 = vld [vmem:[%s338 + $0x10] sm:$0xff]
      %v561 = vld [vmem:[%s338 + $0x18] sm:$0xff]
      %v562 = vld [vmem:[%s338 + $0x20] sm:$0xff]
      %v563 = vld [vmem:[%s338 + $0x28] sm:$0xff]
      %v564 = vld [vmem:[%s338 + $0x30] sm:$0xff]
      %v565 = vld [vmem:[%s338 + $0x38] sm:$0xff]
      %v566 = vld [vmem:[%s338 + $0x40] sm:$0xff]
      %v567 = vld [vmem:[%s338 + $0x48] sm:$0xff]
      %v568 = vld [vmem:[%s338 + $0x50] sm:$0xff]
      %v569 = vld [vmem:[%s338 + $0x58] sm:$0xff]
      %v570 = vld [vmem:[%s338 + $0x60] sm:$0xff]
      %v571 = vld [vmem:[%s338 + $0x68] sm:$0xff]
      %v572 = vld [vmem:[%s338 + $0x70] sm:$0xff]
      %v573 = vld [vmem:[%s338 + $0x78] sm:$0xff]
      %v574 = vld [vmem:[%s338 + $0x80] sm:$0xff]
      %v575 = vld [vmem:[%s338 + $0x88] sm:$0xff]
      %v576 = vld [vmem:[%s338 + $0x90] sm:$0xff]
      %v577 = vld [vmem:[%s338 + $0x98] sm:$0xff]
      %v578 = vld [vmem:[%s338 + $0xa0] sm:$0xff]
      %v579 = vld [vmem:[%s338 + $0xa8] sm:$0xff]
      %v580 = vld [vmem:[%s338 + $0xb0] sm:$0xff]
      %v581 = vld [vmem:[%s338 + $0xb8] sm:$0xff]
      %v582 = vld [vmem:[%s338 + $0xc0] sm:$0xff]
      %v583 = vld [vmem:[%s338 + $0xc8] sm:$0xff]
      %v584 = vld [vmem:[%s338 + $0xd0] sm:$0xff]
      %v585 = vld [vmem:[%s338 + $0xd8] sm:$0xff]
      %v586 = vld [vmem:[%s338 + $0xe0] sm:$0xff]
      %v587 = vld [vmem:[%s338 + $0xe8] sm:$0xff]
      %v588 = vld [vmem:[%s338 + $0xf0] sm:$0xff]
      %v589 = vld [vmem:[%s338 + $0xf8] sm:$0xff]
      %v590 = vld [vmem:[%s338 + $0x100] sm:$0xff]
      %v591 = vld [vmem:[%s338 + $0x108] sm:$0xff]
      %v592 = vld [vmem:[%s338 + $0x110] sm:$0xff]
      %v593 = vld [vmem:[%s338 + $0x118] sm:$0xff]
      %v594 = vld [vmem:[%s338 + $0x120] sm:$0xff]
      %v595 = vld [vmem:[%s338 + $0x128] sm:$0xff]
      %v596 = vld [vmem:[%s338 + $0x130] sm:$0xff]
      %v597 = vld [vmem:[%s338 + $0x138] sm:$0xff]
      %v598 = vld [vmem:[%s338 + $0x140] sm:$0xff]
      %v599 = vld [vmem:[%s338 + $0x148] sm:$0xff]
      %v600 = vld [vmem:[%s338 + $0x150] sm:$0xff]
      %v601 = vld [vmem:[%s338 + $0x158] sm:$0xff]
      %v602 = vld [vmem:[%s338 + $0x160] sm:$0xff]
      %v603 = vld [vmem:[%s338 + $0x168] sm:$0xff]
      %v604 = vld [vmem:[%s338 + $0x170] sm:$0xff]
      %v605 = vld [vmem:[%s338 + $0x178] sm:$0xff]
      %v606 = vld [vmem:[%s338 + $0x180] sm:$0xff]
      %v607 = vld [vmem:[%s338 + $0x188] sm:$0xff]
      %v608 = vld [vmem:[%s338 + $0x190] sm:$0xff]
      %v609 = vld [vmem:[%s338 + $0x198] sm:$0xff]
      %v610 = vld [vmem:[%s338 + $0x1a0] sm:$0xff]
      %v611 = vld [vmem:[%s338 + $0x1a8] sm:$0xff]
      %v612 = vld [vmem:[%s338 + $0x1b0] sm:$0xff]
      %v613 = vld [vmem:[%s338 + $0x1b8] sm:$0xff]
      %v614 = vld [vmem:[%s338 + $0x1c0] sm:$0xff]
      %v615 = vld [vmem:[%s338 + $0x1c8] sm:$0xff]
      %v616 = vld [vmem:[%s338 + $0x1d0] sm:$0xff]
      %v617 = vld [vmem:[%s338 + $0x1d8] sm:$0xff]
      %v618 = vld [vmem:[%s338 + $0x1e0] sm:$0xff]
      %v619 = vld [vmem:[%s338 + $0x1e8] sm:$0xff]
      %v620 = vld [vmem:[%s338 + $0x1f0] sm:$0xff]
      %v621 = vld [vmem:[%s338 + $0x1f8] sm:$0xff]
      %v622 = vld [vmem:[%s338 + $0x200] sm:$0xff]
      %v623 = vld [vmem:[%s338 + $0x208] sm:$0xff]
      %v624 = vld [vmem:[%s338 + $0x210] sm:$0xff]
      %v625 = vld [vmem:[%s338 + $0x218] sm:$0xff]
      %v626 = vld [vmem:[%s338 + $0x220] sm:$0xff]
      %v627 = vld [vmem:[%s338 + $0x228] sm:$0xff]
      %v628 = vld [vmem:[%s338 + $0x230] sm:$0xff]
      %v629 = vld [vmem:[%s338 + $0x238] sm:$0xff]
      %v630 = vld [vmem:[%s338 + $0x240] sm:$0xff]
      %v631 = vld [vmem:[%s338 + $0x248] sm:$0xff]
      %v632 = vld [vmem:[%s338 + $0x250] sm:$0xff]
      %v633 = vld [vmem:[%s338 + $0x258] sm:$0xff]
      %v634 = vld [vmem:[%s338 + $0x260] sm:$0xff]
      %v635 = vld [vmem:[%s338 + $0x268] sm:$0xff]
      %v636 = vld [vmem:[%s338 + $0x270] sm:$0xff]
      %v637 = vld [vmem:[%s338 + $0x278] sm:$0xff]
      %v638 = vld [vmem:[%s338 + $0x280] sm:$0xff]
      %v639 = vld [vmem:[%s338 + $0x288] sm:$0xff]
      %v640 = vld [vmem:[%s338 + $0x290] sm:$0xff]
      %v641 = vld [vmem:[%s338 + $0x298] sm:$0xff]
      %v642 = vld [vmem:[%s338 + $0x2a0] sm:$0xff]
      %v643 = vld [vmem:[%s338 + $0x2a8] sm:$0xff]
      %v644 = vld [vmem:[%s338 + $0x2b0] sm:$0xff]
      %v645 = vld [vmem:[%s338 + $0x2b8] sm:$0xff]
      %v646 = vld [vmem:[%s338 + $0x2c0] sm:$0xff]
      %v647 = vld [vmem:[%s338 + $0x2c8] sm:$0xff]
      %v648 = vld [vmem:[%s338 + $0x2d0] sm:$0xff]
      %v649 = vld [vmem:[%s338 + $0x2d8] sm:$0xff]
      %v650 = vld [vmem:[%s338 + $0x2e0] sm:$0xff]
      %v651 = vld [vmem:[%s338 + $0x2e8] sm:$0xff]
      %v652 = vld [vmem:[%s338 + $0x2f0] sm:$0xff]
      %v653 = vld [vmem:[%s338 + $0x2f8] sm:$0xff]
      %v654 = vld [vmem:[%s338 + $0x300] sm:$0xff]
      %v655 = vld [vmem:[%s338 + $0x308] sm:$0xff]
      %v656 = vld [vmem:[%s338 + $0x310] sm:$0xff]
      %v657 = vld [vmem:[%s338 + $0x318] sm:$0xff]
      %v658 = vld [vmem:[%s338 + $0x320] sm:$0xff]
      %v659 = vld [vmem:[%s338 + $0x328] sm:$0xff]
      %v660 = vld [vmem:[%s338 + $0x330] sm:$0xff]
      %v661 = vld [vmem:[%s338 + $0x338] sm:$0xff]
      %v662 = vld [vmem:[%s338 + $0x340] sm:$0xff]
      %v663 = vld [vmem:[%s338 + $0x348] sm:$0xff]
      %v664 = vld [vmem:[%s338 + $0x350] sm:$0xff]
      %v665 = vld [vmem:[%s338 + $0x358] sm:$0xff]
      %v666 = vld [vmem:[%s338 + $0x360] sm:$0xff]
      %v667 = vld [vmem:[%s338 + $0x368] sm:$0xff]
      %v668 = vld [vmem:[%s338 + $0x370] sm:$0xff]
      %v669 = vld [vmem:[%s338 + $0x378] sm:$0xff]
      %v670 = vld [vmem:[%s338 + $0x380] sm:$0xff]
      %v671 = vld [vmem:[%s338 + $0x388] sm:$0xff]
      %v672 = vld [vmem:[%s338 + $0x390] sm:$0xff]
      %v673 = vld [vmem:[%s338 + $0x398] sm:$0xff]
      %v674 = vld [vmem:[%s338 + $0x3a0] sm:$0xff]
      %v675 = vld [vmem:[%s338 + $0x3a8] sm:$0xff]
      %v676 = vld [vmem:[%s338 + $0x3b0] sm:$0xff]
      %v677 = vld [vmem:[%s338 + $0x3b8] sm:$0xff]
      %v678 = vld [vmem:[%s338 + $0x3c0] sm:$0xff]
      %v679 = vld [vmem:[%s338 + $0x3c8] sm:$0xff]
      %v680 = vld [vmem:[%s338 + $0x3d0] sm:$0xff]
      %v681 = vld [vmem:[%s338 + $0x3d8] sm:$0xff]
      %v682 = vld [vmem:[%s338 + $0x3e0] sm:$0xff]
      %v683 = vld [vmem:[%s338 + $0x3e8] sm:$0xff]
      %v684 = vld [vmem:[%s338 + $0x3f0] sm:$0xff]
      %v685 = vld [vmem:[%s338 + $0x3f8] sm:$0xff]
      %v686 = vld [vmem:[%s338 + $0x400] sm:$0xff]
      %v687 = vld [vmem:[%s338 + $0x408] sm:$0xff]
      %v688 = vld [vmem:[%s338 + $0x410] sm:$0xff]
      %v689 = vld [vmem:[%s338 + $0x418] sm:$0xff]
      %v690 = vld [vmem:[%s338 + $0x420] sm:$0xff]
      %v691 = vld [vmem:[%s338 + $0x428] sm:$0xff]
      %v692 = vld [vmem:[%s338 + $0x430] sm:$0xff]
      %v693 = vld [vmem:[%s338 + $0x438] sm:$0xff]
      %v694 = vld [vmem:[%s338 + $0x440] sm:$0xff]
      %v695 = vld [vmem:[%s338 + $0x448] sm:$0xff]
      %v696 = vld [vmem:[%s338 + $0x450] sm:$0xff]
      %v697 = vld [vmem:[%s338 + $0x458] sm:$0xff]
      %v698 = vld [vmem:[%s338 + $0x460] sm:$0xff]
      %v699 = vld [vmem:[%s338 + $0x468] sm:$0xff]
      %v700 = vld [vmem:[%s338 + $0x470] sm:$0xff]
      %v701 = vld [vmem:[%s338 + $0x478] sm:$0xff]
      %v702 = vld [vmem:[%s338 + $0x480] sm:$0xff]
      %v703 = vld [vmem:[%s338 + $0x488] sm:$0xff]
      %v704 = vld [vmem:[%s338 + $0x490] sm:$0xff]
      %v705 = vld [vmem:[%s338 + $0x498] sm:$0xff]
      %v706 = vld [vmem:[%s338 + $0x4a0] sm:$0xff]
      %v707 = vld [vmem:[%s338 + $0x4a8] sm:$0xff]
      %v708 = vld [vmem:[%s338 + $0x4b0] sm:$0xff]
      %v709 = vld [vmem:[%s338 + $0x4b8] sm:$0xff]
      %v710 = vld [vmem:[%s338 + $0x4c0] sm:$0xff]
      %v711 = vld [vmem:[%s338 + $0x4c8] sm:$0xff]
      %v712 = vld [vmem:[%s338 + $0x4d0] sm:$0xff]
      %v713 = vld [vmem:[%s338 + $0x4d8] sm:$0xff]
      %v714 = vld [vmem:[%s338 + $0x4e0] sm:$0xff]
      %v715 = vld [vmem:[%s338 + $0x4e8] sm:$0xff]
      %v716 = vld [vmem:[%s338 + $0x4f0] sm:$0xff]
      %v717 = vld [vmem:[%s338 + $0x4f8] sm:$0xff]
      %v718 = vld [vmem:[%s338 + $0x500] sm:$0xff]
      %v719 = vld [vmem:[%s338 + $0x508] sm:$0xff]
      %v720 = vld [vmem:[%s338 + $0x510] sm:$0xff]
      %v721 = vld [vmem:[%s338 + $0x518] sm:$0xff]
      %v722 = vld [vmem:[%s338 + $0x520] sm:$0xff]
      %v723 = vld [vmem:[%s338 + $0x528] sm:$0xff]
      %v724 = vld [vmem:[%s338 + $0x530] sm:$0xff]
      %v725 = vld [vmem:[%s338 + $0x538] sm:$0xff]
      %v726 = vld [vmem:[%s338 + $0x540] sm:$0xff]
      %v727 = vld [vmem:[%s338 + $0x548] sm:$0xff]
      %v728 = vld [vmem:[%s338 + $0x550] sm:$0xff]
      %v729 = vld [vmem:[%s338 + $0x558] sm:$0xff]
      %v730 = vld [vmem:[%s338 + $0x560] sm:$0xff]
      %v731 = vld [vmem:[%s338 + $0x568] sm:$0xff]
      %v732 = vld [vmem:[%s338 + $0x570] sm:$0xff]
      %v733 = vld [vmem:[%s338 + $0x578] sm:$0xff]
      %v734 = vld [vmem:[%s338 + $0x580] sm:$0xff]
      %v735 = vld [vmem:[%s338 + $0x588] sm:$0xff]
      %v736 = vld [vmem:[%s338 + $0x590] sm:$0xff]
      %v737 = vld [vmem:[%s338 + $0x598] sm:$0xff]
      %v738 = vld [vmem:[%s338 + $0x5a0] sm:$0xff]
      %v739 = vld [vmem:[%s338 + $0x5a8] sm:$0xff]
      %v740 = vld [vmem:[%s338 + $0x5b0] sm:$0xff]
      %v741 = vld [vmem:[%s338 + $0x5b8] sm:$0xff]
      %v742 = vld [vmem:[%s338 + $0x5c0] sm:$0xff]
      %v743 = vld [vmem:[%s338 + $0x5c8] sm:$0xff]
      %v744 = vld [vmem:[%s338 + $0x5d0] sm:$0xff]
      %v745 = vld [vmem:[%s338 + $0x5d8] sm:$0xff]
      %v746 = vld [vmem:[%s338 + $0x5e0] sm:$0xff]
      %v747 = vld [vmem:[%s338 + $0x5e8] sm:$0xff]
      %v748 = vld [vmem:[%s338 + $0x5f0] sm:$0xff]
      %v749 = vld [vmem:[%s338 + $0x5f8] sm:$0xff]
      %v750 = vld [vmem:[%s338 + $0x600] sm:$0xff]
      %v751 = vld [vmem:[%s338 + $0x608] sm:$0xff]
      %v752 = vld [vmem:[%s338 + $0x610] sm:$0xff]
      %v753 = vld [vmem:[%s338 + $0x618] sm:$0xff]
      %v754 = vld [vmem:[%s338 + $0x620] sm:$0xff]
      %v755 = vld [vmem:[%s338 + $0x628] sm:$0xff]
      %v756 = vld [vmem:[%s338 + $0x630] sm:$0xff]
      %v757 = vld [vmem:[%s338 + $0x638] sm:$0xff]
      %v758 = vld [vmem:[%s338 + $0x640] sm:$0xff]
      %v759 = vld [vmem:[%s338 + $0x648] sm:$0xff]
      %v760 = vld [vmem:[%s338 + $0x650] sm:$0xff]
      %v761 = vld [vmem:[%s338 + $0x658] sm:$0xff]
      %v762 = vld [vmem:[%s338 + $0x660] sm:$0xff]
      %v763 = vld [vmem:[%s338 + $0x668] sm:$0xff]
      %v764 = vld [vmem:[%s338 + $0x670] sm:$0xff]
      %v765 = vld [vmem:[%s338 + $0x678] sm:$0xff]
      %v766 = vld [vmem:[%s338 + $0x680] sm:$0xff]
      %v767 = vld [vmem:[%s338 + $0x688] sm:$0xff]
      %v768 = vld [vmem:[%s338 + $0x690] sm:$0xff]
      %v769 = vld [vmem:[%s338 + $0x698] sm:$0xff]
      %v770 = vld [vmem:[%s338 + $0x6a0] sm:$0xff]
      %v771 = vld [vmem:[%s338 + $0x6a8] sm:$0xff]
      %v772 = vld [vmem:[%s338 + $0x6b0] sm:$0xff]
      %v773 = vld [vmem:[%s338 + $0x6b8] sm:$0xff]
      %v774 = vld [vmem:[%s338 + $0x6c0] sm:$0xff]
      %v775 = vld [vmem:[%s338 + $0x6c8] sm:$0xff]
      %v776 = vld [vmem:[%s338 + $0x6d0] sm:$0xff]
      %v777 = vld [vmem:[%s338 + $0x6d8] sm:$0xff]
      %v778 = vld [vmem:[%s338 + $0x6e0] sm:$0xff]
      %v779 = vld [vmem:[%s338 + $0x6e8] sm:$0xff]
      %v780 = vld [vmem:[%s338 + $0x6f0] sm:$0xff]
      %v781 = vld [vmem:[%s338 + $0x6f8] sm:$0xff]
      %v846 = vunpack.c.l.b16 %v494
      %v847 = vunpack.c.h.b16 %v494
      %v848 = vunpack.c.l.b16 %v495
      %v849 = vunpack.c.h.b16 %v495
      %v850 = vunpack.c.l.b16 %v496
      %v851 = vunpack.c.h.b16 %v496
      %v852 = vunpack.c.l.b16 %v497
      %v853 = vunpack.c.l.b16 %v498
      %v854 = vunpack.c.h.b16 %v498
      %v855 = vunpack.c.l.b16 %v499
      %v856 = vunpack.c.h.b16 %v499
      %v857 = vunpack.c.l.b16 %v500
      %v858 = vunpack.c.h.b16 %v500
      %v859 = vunpack.c.l.b16 %v501
      %v860 = vunpack.c.l.b16 %v502
      %v861 = vunpack.c.h.b16 %v502
      %v862 = vunpack.c.l.b16 %v503
      %v863 = vunpack.c.h.b16 %v503
      %v864 = vunpack.c.l.b16 %v504
      %v865 = vunpack.c.h.b16 %v504
      %v866 = vunpack.c.l.b16 %v505
      %v867 = vunpack.c.l.b16 %v506
      %v868 = vunpack.c.h.b16 %v506
      %v869 = vunpack.c.l.b16 %v507
      %v870 = vunpack.c.h.b16 %v507
      %v871 = vunpack.c.l.b16 %v508
      %v872 = vunpack.c.h.b16 %v508
      %v873 = vunpack.c.l.b16 %v509
      %v874 = vunpack.c.l.b16 %v510
      %v875 = vunpack.c.h.b16 %v510
      %v876 = vunpack.c.l.b16 %v511
      %v877 = vunpack.c.h.b16 %v511
      %v878 = vunpack.c.l.b16 %v512
      %v879 = vunpack.c.h.b16 %v512
      %v880 = vunpack.c.l.b16 %v513
      %v881 = vunpack.c.l.b16 %v514
      %v882 = vunpack.c.h.b16 %v514
      %v883 = vunpack.c.l.b16 %v515
      %v884 = vunpack.c.h.b16 %v515
      %v885 = vunpack.c.l.b16 %v516
      %v886 = vunpack.c.h.b16 %v516
      %v887 = vunpack.c.l.b16 %v517
      %v888 = vunpack.c.l.b16 %v518
      %v889 = vunpack.c.h.b16 %v518
      %v890 = vunpack.c.l.b16 %v519
      %v891 = vunpack.c.h.b16 %v519
      %v892 = vunpack.c.l.b16 %v520
      %v893 = vunpack.c.h.b16 %v520
      %v894 = vunpack.c.l.b16 %v521
      %v895 = vunpack.c.l.b16 %v522
      %v896 = vunpack.c.h.b16 %v522
      %v897 = vunpack.c.l.b16 %v523
      %v898 = vunpack.c.h.b16 %v523
      %v899 = vunpack.c.l.b16 %v524
      %v900 = vunpack.c.h.b16 %v524
      %v901 = vunpack.c.l.b16 %v525
      %v902 = vunpack.c.l.b16 %v526
      %v903 = vunpack.c.h.b16 %v526
      %v904 = vunpack.c.l.b16 %v527
      %v905 = vunpack.c.h.b16 %v527
      %v906 = vunpack.c.l.b16 %v528
      %v907 = vunpack.c.h.b16 %v528
      %v908 = vunpack.c.l.b16 %v529
      %v909 = vunpack.c.l.b16 %v530
      %v910 = vunpack.c.h.b16 %v530
      %v911 = vunpack.c.l.b16 %v531
      %v912 = vunpack.c.h.b16 %v531
      %v913 = vunpack.c.l.b16 %v532
      %v914 = vunpack.c.h.b16 %v532
      %v915 = vunpack.c.l.b16 %v533
      %v916 = vunpack.c.l.b16 %v534
      %v917 = vunpack.c.h.b16 %v534
      %v918 = vunpack.c.l.b16 %v535
      %v919 = vunpack.c.h.b16 %v535
      %v920 = vunpack.c.l.b16 %v536
      %v921 = vunpack.c.h.b16 %v536
      %v922 = vunpack.c.l.b16 %v537
      %v923 = vunpack.c.l.b16 %v538
      %v924 = vunpack.c.h.b16 %v538
      %v925 = vunpack.c.l.b16 %v539
      %v926 = vunpack.c.h.b16 %v539
      %v927 = vunpack.c.l.b16 %v540
      %v928 = vunpack.c.h.b16 %v540
      %v929 = vunpack.c.l.b16 %v541
      %v930 = vunpack.c.l.b16 %v542
      %v931 = vunpack.c.h.b16 %v542
      %v932 = vunpack.c.l.b16 %v543
      %v933 = vunpack.c.h.b16 %v543
      %v934 = vunpack.c.l.b16 %v544
      %v935 = vunpack.c.h.b16 %v544
      %v936 = vunpack.c.l.b16 %v545
      %v937 = vunpack.c.l.b16 %v546
      %v938 = vunpack.c.h.b16 %v546
      %v939 = vunpack.c.l.b16 %v547
      %v940 = vunpack.c.h.b16 %v547
      %v941 = vunpack.c.l.b16 %v548
      %v942 = vunpack.c.h.b16 %v548
      %v943 = vunpack.c.l.b16 %v549
      %v944 = vunpack.c.l.b16 %v550
      %v945 = vunpack.c.h.b16 %v550
      %v946 = vunpack.c.l.b16 %v551
      %v947 = vunpack.c.h.b16 %v551
      %v948 = vunpack.c.l.b16 %v552
      %v949 = vunpack.c.h.b16 %v552
      %v950 = vunpack.c.l.b16 %v553
      %v951 = vunpack.c.l.b16 %v554
      %v952 = vunpack.c.h.b16 %v554
      %v953 = vunpack.c.l.b16 %v555
      %v954 = vunpack.c.h.b16 %v555
      %v955 = vunpack.c.l.b16 %v556
      %v956 = vunpack.c.h.b16 %v556
      %v957 = vunpack.c.l.b16 %v557
      %v958 = vpack.c.b16 %v853, %v846
      %v959 = vpack.c.b16 %v854, %v847
      %v960 = vpack.c.b16 %v855, %v848
      %v961 = vpack.c.b16 %v856, %v849
      %v962 = vpack.c.b16 %v857, %v850
      %v963 = vpack.c.b16 %v858, %v851
      %v964 = vpack.c.b16 %v859, %v852
      %v965 = vpack.c.b16 %v867, %v860
      %v966 = vpack.c.b16 %v868, %v861
      %v967 = vpack.c.b16 %v869, %v862
      %v968 = vpack.c.b16 %v870, %v863
      %v969 = vpack.c.b16 %v871, %v864
      %v970 = vpack.c.b16 %v872, %v865
      %v971 = vpack.c.b16 %v873, %v866
      %v972 = vpack.c.b16 %v881, %v874
      %v973 = vpack.c.b16 %v882, %v875
      %v974 = vpack.c.b16 %v883, %v876
      %v975 = vpack.c.b16 %v884, %v877
      %v976 = vpack.c.b16 %v885, %v878
      %v977 = vpack.c.b16 %v886, %v879
      %v978 = vpack.c.b16 %v887, %v880
      %v979 = vpack.c.b16 %v895, %v888
      %v980 = vpack.c.b16 %v896, %v889
      %v981 = vpack.c.b16 %v897, %v890
      %v982 = vpack.c.b16 %v898, %v891
      %v983 = vpack.c.b16 %v899, %v892
      %v984 = vpack.c.b16 %v900, %v893
      %v985 = vpack.c.b16 %v901, %v894
      %v986 = vpack.c.b16 %v909, %v902
      %v987 = vpack.c.b16 %v910, %v903
      %v988 = vpack.c.b16 %v911, %v904
      %v989 = vpack.c.b16 %v912, %v905
      %v990 = vpack.c.b16 %v913, %v906
      %v991 = vpack.c.b16 %v914, %v907
      %v992 = vpack.c.b16 %v915, %v908
      %v993 = vpack.c.b16 %v923, %v916
      %v994 = vpack.c.b16 %v924, %v917
      %v995 = vpack.c.b16 %v925, %v918
      %v996 = vpack.c.b16 %v926, %v919
      %v997 = vpack.c.b16 %v927, %v920
      %v998 = vpack.c.b16 %v928, %v921
      %v999 = vpack.c.b16 %v929, %v922
      %v1000 = vpack.c.b16 %v937, %v930
      %v1001 = vpack.c.b16 %v938, %v931
      %v1002 = vpack.c.b16 %v939, %v932
      %v1003 = vpack.c.b16 %v940, %v933
      %v1004 = vpack.c.b16 %v941, %v934
      %v1005 = vpack.c.b16 %v942, %v935
      %v1006 = vpack.c.b16 %v943, %v936
      %v1007 = vpack.c.b16 %v951, %v944
      %v1008 = vpack.c.b16 %v952, %v945
      %v1009 = vpack.c.b16 %v953, %v946
      %v1010 = vpack.c.b16 %v954, %v947
      %v1011 = vpack.c.b16 %v955, %v948
      %v1012 = vpack.c.b16 %v956, %v949
      %v1013 = vpack.c.b16 %v957, %v950
      %v1294 = vunpack.c.l.b16 %v558
      %v1295 = vunpack.c.h.b16 %v558
      %v1296 = vunpack.c.l.b16 %v559
      %v1297 = vunpack.c.h.b16 %v559
      %v1298 = vunpack.c.l.b16 %v560
      %v1299 = vunpack.c.h.b16 %v560
      %v1300 = vunpack.c.l.b16 %v561
      %v1301 = vunpack.c.h.b16 %v561
      %v1302 = vunpack.c.l.b16 %v562
      %v1303 = vunpack.c.h.b16 %v562
      %v1304 = vunpack.c.l.b16 %v563
      %v1305 = vunpack.c.h.b16 %v563
      %v1306 = vunpack.c.l.b16 %v564
      %v1307 = vunpack.c.h.b16 %v564
      %v1308 = vunpack.c.l.b16 %v565
      %v1309 = vunpack.c.h.b16 %v565
      %v1310 = vunpack.c.l.b16 %v566
      %v1311 = vunpack.c.h.b16 %v566
      %v1312 = vunpack.c.l.b16 %v567
      %v1313 = vunpack.c.h.b16 %v567
      %v1314 = vunpack.c.l.b16 %v568
      %v1315 = vunpack.c.h.b16 %v568
      %v1316 = vunpack.c.l.b16 %v569
      %v1317 = vunpack.c.h.b16 %v569
      %v1318 = vunpack.c.l.b16 %v570
      %v1319 = vunpack.c.h.b16 %v570
      %v1320 = vunpack.c.l.b16 %v571
      %v1321 = vunpack.c.h.b16 %v571
      %v1322 = vunpack.c.l.b16 %v572
      %v1323 = vunpack.c.h.b16 %v572
      %v1324 = vunpack.c.l.b16 %v573
      %v1325 = vunpack.c.h.b16 %v573
      %v1326 = vunpack.c.l.b16 %v574
      %v1327 = vunpack.c.h.b16 %v574
      %v1328 = vunpack.c.l.b16 %v575
      %v1329 = vunpack.c.h.b16 %v575
      %v1330 = vunpack.c.l.b16 %v576
      %v1331 = vunpack.c.h.b16 %v576
      %v1332 = vunpack.c.l.b16 %v577
      %v1333 = vunpack.c.h.b16 %v577
      %v1334 = vunpack.c.l.b16 %v578
      %v1335 = vunpack.c.h.b16 %v578
      %v1336 = vunpack.c.l.b16 %v579
      %v1337 = vunpack.c.h.b16 %v579
      %v1338 = vunpack.c.l.b16 %v580
      %v1339 = vunpack.c.h.b16 %v580
      %v1340 = vunpack.c.l.b16 %v581
      %v1341 = vunpack.c.h.b16 %v581
      %v1342 = vunpack.c.l.b16 %v582
      %v1343 = vunpack.c.h.b16 %v582
      %v1344 = vunpack.c.l.b16 %v583
      %v1345 = vunpack.c.h.b16 %v583
      %v1346 = vunpack.c.l.b16 %v584
      %v1347 = vunpack.c.h.b16 %v584
      %v1348 = vunpack.c.l.b16 %v585
      %v1349 = vunpack.c.h.b16 %v585
      %v1350 = vunpack.c.l.b16 %v586
      %v1351 = vunpack.c.h.b16 %v586
      %v1352 = vunpack.c.l.b16 %v587
      %v1353 = vunpack.c.h.b16 %v587
      %v1354 = vunpack.c.l.b16 %v588
      %v1355 = vunpack.c.h.b16 %v588
      %v1356 = vunpack.c.l.b16 %v589
      %v1357 = vunpack.c.h.b16 %v589
      %v1358 = vunpack.c.l.b16 %v590
      %v1359 = vunpack.c.h.b16 %v590
      %v1360 = vunpack.c.l.b16 %v591
      %v1361 = vunpack.c.h.b16 %v591
      %v1362 = vunpack.c.l.b16 %v592
      %v1363 = vunpack.c.h.b16 %v592
      %v1364 = vunpack.c.l.b16 %v593
      %v1365 = vunpack.c.h.b16 %v593
      %v1366 = vunpack.c.l.b16 %v594
      %v1367 = vunpack.c.h.b16 %v594
      %v1368 = vunpack.c.l.b16 %v595
      %v1369 = vunpack.c.h.b16 %v595
      %v1370 = vunpack.c.l.b16 %v596
      %v1371 = vunpack.c.h.b16 %v596
      %v1372 = vunpack.c.l.b16 %v597
      %v1373 = vunpack.c.h.b16 %v597
      %v1374 = vunpack.c.l.b16 %v598
      %v1375 = vunpack.c.h.b16 %v598
      %v1376 = vunpack.c.l.b16 %v599
      %v1377 = vunpack.c.h.b16 %v599
      %v1378 = vunpack.c.l.b16 %v600
      %v1379 = vunpack.c.h.b16 %v600
      %v1380 = vunpack.c.l.b16 %v601
      %v1381 = vunpack.c.h.b16 %v601
      %v1382 = vunpack.c.l.b16 %v602
      %v1383 = vunpack.c.h.b16 %v602
      %v1384 = vunpack.c.l.b16 %v603
      %v1385 = vunpack.c.h.b16 %v603
      %v1386 = vunpack.c.l.b16 %v604
      %v1387 = vunpack.c.h.b16 %v604
      %v1388 = vunpack.c.l.b16 %v605
      %v1389 = vunpack.c.h.b16 %v605
      %v1390 = vunpack.c.l.b16 %v606
      %v1391 = vunpack.c.h.b16 %v606
      %v1392 = vunpack.c.l.b16 %v607
      %v1393 = vunpack.c.h.b16 %v607
      %v1394 = vunpack.c.l.b16 %v608
      %v1395 = vunpack.c.h.b16 %v608
      %v1396 = vunpack.c.l.b16 %v609
      %v1397 = vunpack.c.h.b16 %v609
      %v1398 = vunpack.c.l.b16 %v610
      %v1399 = vunpack.c.h.b16 %v610
      %v1400 = vunpack.c.l.b16 %v611
      %v1401 = vunpack.c.h.b16 %v611
      %v1402 = vunpack.c.l.b16 %v612
      %v1403 = vunpack.c.h.b16 %v612
      %v1404 = vunpack.c.l.b16 %v613
      %v1405 = vunpack.c.h.b16 %v613
      %v1406 = vunpack.c.l.b16 %v614
      %v1407 = vunpack.c.h.b16 %v614
      %v1408 = vunpack.c.l.b16 %v615
      %v1409 = vunpack.c.h.b16 %v615
      %v1410 = vunpack.c.l.b16 %v616
      %v1411 = vunpack.c.h.b16 %v616
      %v1412 = vunpack.c.l.b16 %v617
      %v1413 = vunpack.c.h.b16 %v617
      %v1414 = vunpack.c.l.b16 %v618
      %v1415 = vunpack.c.h.b16 %v618
      %v1416 = vunpack.c.l.b16 %v619
      %v1417 = vunpack.c.h.b16 %v619
      %v1418 = vunpack.c.l.b16 %v620
      %v1419 = vunpack.c.h.b16 %v620
      %v1420 = vunpack.c.l.b16 %v621
      %v1421 = vunpack.c.h.b16 %v621
      %v1422 = vunpack.c.l.b16 %v622
      %v1423 = vunpack.c.h.b16 %v622
      %v1424 = vunpack.c.l.b16 %v623
      %v1425 = vunpack.c.h.b16 %v623
      %v1426 = vunpack.c.l.b16 %v624
      %v1427 = vunpack.c.h.b16 %v624
      %v1428 = vunpack.c.l.b16 %v625
      %v1429 = vunpack.c.h.b16 %v625
      %v1430 = vunpack.c.l.b16 %v626
      %v1431 = vunpack.c.h.b16 %v626
      %v1432 = vunpack.c.l.b16 %v627
      %v1433 = vunpack.c.h.b16 %v627
      %v1434 = vunpack.c.l.b16 %v628
      %v1435 = vunpack.c.h.b16 %v628
      %v1436 = vunpack.c.l.b16 %v629
      %v1437 = vunpack.c.h.b16 %v629
      %v1438 = vunpack.c.l.b16 %v630
      %v1439 = vunpack.c.h.b16 %v630
      %v1440 = vunpack.c.l.b16 %v631
      %v1441 = vunpack.c.h.b16 %v631
      %v1442 = vunpack.c.l.b16 %v632
      %v1443 = vunpack.c.h.b16 %v632
      %v1444 = vunpack.c.l.b16 %v633
      %v1445 = vunpack.c.h.b16 %v633
      %v1446 = vunpack.c.l.b16 %v634
      %v1447 = vunpack.c.h.b16 %v634
      %v1448 = vunpack.c.l.b16 %v635
      %v1449 = vunpack.c.h.b16 %v635
      %v1450 = vunpack.c.l.b16 %v636
      %v1451 = vunpack.c.h.b16 %v636
      %v1452 = vunpack.c.l.b16 %v637
      %v1453 = vunpack.c.h.b16 %v637
      %v1454 = vunpack.c.l.b16 %v638
      %v1455 = vunpack.c.h.b16 %v638
      %v1456 = vunpack.c.l.b16 %v639
      %v1457 = vunpack.c.h.b16 %v639
      %v1458 = vunpack.c.l.b16 %v640
      %v1459 = vunpack.c.h.b16 %v640
      %v1460 = vunpack.c.l.b16 %v641
      %v1461 = vunpack.c.h.b16 %v641
      %v1462 = vunpack.c.l.b16 %v642
      %v1463 = vunpack.c.h.b16 %v642
      %v1464 = vunpack.c.l.b16 %v643
      %v1465 = vunpack.c.h.b16 %v643
      %v1466 = vunpack.c.l.b16 %v644
      %v1467 = vunpack.c.h.b16 %v644
      %v1468 = vunpack.c.l.b16 %v645
      %v1469 = vunpack.c.h.b16 %v645
      %v1470 = vunpack.c.l.b16 %v646
      %v1471 = vunpack.c.h.b16 %v646
      %v1472 = vunpack.c.l.b16 %v647
      %v1473 = vunpack.c.h.b16 %v647
      %v1474 = vunpack.c.l.b16 %v648
      %v1475 = vunpack.c.h.b16 %v648
      %v1476 = vunpack.c.l.b16 %v649
      %v1477 = vunpack.c.h.b16 %v649
      %v1478 = vunpack.c.l.b16 %v650
      %v1479 = vunpack.c.h.b16 %v650
      %v1480 = vunpack.c.l.b16 %v651
      %v1481 = vunpack.c.h.b16 %v651
      %v1482 = vunpack.c.l.b16 %v652
      %v1483 = vunpack.c.h.b16 %v652
      %v1484 = vunpack.c.l.b16 %v653
      %v1485 = vunpack.c.h.b16 %v653
      %v1486 = vunpack.c.l.b16 %v654
      %v1487 = vunpack.c.h.b16 %v654
      %v1488 = vunpack.c.l.b16 %v655
      %v1489 = vunpack.c.h.b16 %v655
      %v1490 = vunpack.c.l.b16 %v656
      %v1491 = vunpack.c.h.b16 %v656
      %v1492 = vunpack.c.l.b16 %v657
      %v1493 = vunpack.c.h.b16 %v657
      %v1494 = vunpack.c.l.b16 %v658
      %v1495 = vunpack.c.h.b16 %v658
      %v1496 = vunpack.c.l.b16 %v659
      %v1497 = vunpack.c.h.b16 %v659
      %v1498 = vunpack.c.l.b16 %v660
      %v1499 = vunpack.c.h.b16 %v660
      %v1500 = vunpack.c.l.b16 %v661
      %v1501 = vunpack.c.h.b16 %v661
      %v1502 = vunpack.c.l.b16 %v662
      %v1503 = vunpack.c.h.b16 %v662
      %v1504 = vunpack.c.l.b16 %v663
      %v1505 = vunpack.c.h.b16 %v663
      %v1506 = vunpack.c.l.b16 %v664
      %v1507 = vunpack.c.h.b16 %v664
      %v1508 = vunpack.c.l.b16 %v665
      %v1509 = vunpack.c.h.b16 %v665
      %v1510 = vunpack.c.l.b16 %v666
      %v1511 = vunpack.c.h.b16 %v666
      %v1512 = vunpack.c.l.b16 %v667
      %v1513 = vunpack.c.h.b16 %v667
      %v1514 = vunpack.c.l.b16 %v668
      %v1515 = vunpack.c.h.b16 %v668
      %v1516 = vunpack.c.l.b16 %v669
      %v1517 = vunpack.c.h.b16 %v669
      %v1518 = vunpack.c.l.b16 %v670
      %v1519 = vunpack.c.h.b16 %v670
      %v1520 = vunpack.c.l.b16 %v671
      %v1521 = vunpack.c.h.b16 %v671
      %v1522 = vunpack.c.l.b16 %v672
      %v1523 = vunpack.c.h.b16 %v672
      %v1524 = vunpack.c.l.b16 %v673
      %v1525 = vunpack.c.h.b16 %v673
      %v1526 = vunpack.c.l.b16 %v674
      %v1527 = vunpack.c.h.b16 %v674
      %v1528 = vunpack.c.l.b16 %v675
      %v1529 = vunpack.c.h.b16 %v675
      %v1530 = vunpack.c.l.b16 %v676
      %v1531 = vunpack.c.h.b16 %v676
      %v1532 = vunpack.c.l.b16 %v677
      %v1533 = vunpack.c.h.b16 %v677
      %v1534 = vunpack.c.l.b16 %v678
      %v1535 = vunpack.c.h.b16 %v678
      %v1536 = vunpack.c.l.b16 %v679
      %v1537 = vunpack.c.h.b16 %v679
      %v1538 = vunpack.c.l.b16 %v680
      %v1539 = vunpack.c.h.b16 %v680
      %v1540 = vunpack.c.l.b16 %v681
      %v1541 = vunpack.c.h.b16 %v681
      %v1542 = vunpack.c.l.b16 %v682
      %v1543 = vunpack.c.h.b16 %v682
      %v1544 = vunpack.c.l.b16 %v683
      %v1545 = vunpack.c.h.b16 %v683
      %v1546 = vunpack.c.l.b16 %v684
      %v1547 = vunpack.c.h.b16 %v684
      %v1548 = vunpack.c.l.b16 %v685
      %v1549 = vunpack.c.h.b16 %v685
      %v1550 = vunpack.c.l.b16 %v686
      %v1551 = vunpack.c.h.b16 %v686
      %v1552 = vunpack.c.l.b16 %v687
      %v1553 = vunpack.c.h.b16 %v687
      %v1554 = vunpack.c.l.b16 %v688
      %v1555 = vunpack.c.h.b16 %v688
      %v1556 = vunpack.c.l.b16 %v689
      %v1557 = vunpack.c.h.b16 %v689
      %v1558 = vunpack.c.l.b16 %v690
      %v1559 = vunpack.c.h.b16 %v690
      %v1560 = vunpack.c.l.b16 %v691
      %v1561 = vunpack.c.h.b16 %v691
      %v1562 = vunpack.c.l.b16 %v692
      %v1563 = vunpack.c.h.b16 %v692
      %v1564 = vunpack.c.l.b16 %v693
      %v1565 = vunpack.c.h.b16 %v693
      %v1566 = vunpack.c.l.b16 %v694
      %v1567 = vunpack.c.h.b16 %v694
      %v1568 = vunpack.c.l.b16 %v695
      %v1569 = vunpack.c.h.b16 %v695
      %v1570 = vunpack.c.l.b16 %v696
      %v1571 = vunpack.c.h.b16 %v696
      %v1572 = vunpack.c.l.b16 %v697
      %v1573 = vunpack.c.h.b16 %v697
      %v1574 = vunpack.c.l.b16 %v698
      %v1575 = vunpack.c.h.b16 %v698
      %v1576 = vunpack.c.l.b16 %v699
      %v1577 = vunpack.c.h.b16 %v699
      %v1578 = vunpack.c.l.b16 %v700
      %v1579 = vunpack.c.h.b16 %v700
      %v1580 = vunpack.c.l.b16 %v701
      %v1581 = vunpack.c.h.b16 %v701
      %v1582 = vunpack.c.l.b16 %v702
      %v1583 = vunpack.c.h.b16 %v702
      %v1584 = vunpack.c.l.b16 %v703
      %v1585 = vunpack.c.h.b16 %v703
      %v1586 = vunpack.c.l.b16 %v704
      %v1587 = vunpack.c.h.b16 %v704
      %v1588 = vunpack.c.l.b16 %v705
      %v1589 = vunpack.c.h.b16 %v705
      %v1590 = vunpack.c.l.b16 %v706
      %v1591 = vunpack.c.h.b16 %v706
      %v1592 = vunpack.c.l.b16 %v707
      %v1593 = vunpack.c.h.b16 %v707
      %v1594 = vunpack.c.l.b16 %v708
      %v1595 = vunpack.c.h.b16 %v708
      %v1596 = vunpack.c.l.b16 %v709
      %v1597 = vunpack.c.h.b16 %v709
      %v1598 = vunpack.c.l.b16 %v710
      %v1599 = vunpack.c.h.b16 %v710
      %v1600 = vunpack.c.l.b16 %v711
      %v1601 = vunpack.c.h.b16 %v711
      %v1602 = vunpack.c.l.b16 %v712
      %v1603 = vunpack.c.h.b16 %v712
      %v1604 = vunpack.c.l.b16 %v713
      %v1605 = vunpack.c.h.b16 %v713
      %v1606 = vunpack.c.l.b16 %v714
      %v1607 = vunpack.c.h.b16 %v714
      %v1608 = vunpack.c.l.b16 %v715
      %v1609 = vunpack.c.h.b16 %v715
      %v1610 = vunpack.c.l.b16 %v716
      %v1611 = vunpack.c.h.b16 %v716
      %v1612 = vunpack.c.l.b16 %v717
      %v1613 = vunpack.c.h.b16 %v717
      %v1614 = vunpack.c.l.b16 %v718
      %v1615 = vunpack.c.h.b16 %v718
      %v1616 = vunpack.c.l.b16 %v719
      %v1617 = vunpack.c.h.b16 %v719
      %v1618 = vunpack.c.l.b16 %v720
      %v1619 = vunpack.c.h.b16 %v720
      %v1620 = vunpack.c.l.b16 %v721
      %v1621 = vunpack.c.h.b16 %v721
      %v1622 = vunpack.c.l.b16 %v722
      %v1623 = vunpack.c.h.b16 %v722
      %v1624 = vunpack.c.l.b16 %v723
      %v1625 = vunpack.c.h.b16 %v723
      %v1626 = vunpack.c.l.b16 %v724
      %v1627 = vunpack.c.h.b16 %v724
      %v1628 = vunpack.c.l.b16 %v725
      %v1629 = vunpack.c.h.b16 %v725
      %v1630 = vunpack.c.l.b16 %v726
      %v1631 = vunpack.c.h.b16 %v726
      %v1632 = vunpack.c.l.b16 %v727
      %v1633 = vunpack.c.h.b16 %v727
      %v1634 = vunpack.c.l.b16 %v728
      %v1635 = vunpack.c.h.b16 %v728
      %v1636 = vunpack.c.l.b16 %v729
      %v1637 = vunpack.c.h.b16 %v729
      %v1638 = vunpack.c.l.b16 %v730
      %v1639 = vunpack.c.h.b16 %v730
      %v1640 = vunpack.c.l.b16 %v731
      %v1641 = vunpack.c.h.b16 %v731
      %v1642 = vunpack.c.l.b16 %v732
      %v1643 = vunpack.c.h.b16 %v732
      %v1644 = vunpack.c.l.b16 %v733
      %v1645 = vunpack.c.h.b16 %v733
      %v1646 = vunpack.c.l.b16 %v734
      %v1647 = vunpack.c.h.b16 %v734
      %v1648 = vunpack.c.l.b16 %v735
      %v1649 = vunpack.c.h.b16 %v735
      %v1650 = vunpack.c.l.b16 %v736
      %v1651 = vunpack.c.h.b16 %v736
      %v1652 = vunpack.c.l.b16 %v737
      %v1653 = vunpack.c.h.b16 %v737
      %v1654 = vunpack.c.l.b16 %v738
      %v1655 = vunpack.c.h.b16 %v738
      %v1656 = vunpack.c.l.b16 %v739
      %v1657 = vunpack.c.h.b16 %v739
      %v1658 = vunpack.c.l.b16 %v740
      %v1659 = vunpack.c.h.b16 %v740
      %v1660 = vunpack.c.l.b16 %v741
      %v1661 = vunpack.c.h.b16 %v741
      %v1662 = vunpack.c.l.b16 %v742
      %v1663 = vunpack.c.h.b16 %v742
      %v1664 = vunpack.c.l.b16 %v743
      %v1665 = vunpack.c.h.b16 %v743
      %v1666 = vunpack.c.l.b16 %v744
      %v1667 = vunpack.c.h.b16 %v744
      %v1668 = vunpack.c.l.b16 %v745
      %v1669 = vunpack.c.h.b16 %v745
      %v1670 = vunpack.c.l.b16 %v746
      %v1671 = vunpack.c.h.b16 %v746
      %v1672 = vunpack.c.l.b16 %v747
      %v1673 = vunpack.c.h.b16 %v747
      %v1674 = vunpack.c.l.b16 %v748
      %v1675 = vunpack.c.h.b16 %v748
      %v1676 = vunpack.c.l.b16 %v749
      %v1677 = vunpack.c.h.b16 %v749
      %v1678 = vunpack.c.l.b16 %v750
      %v1679 = vunpack.c.h.b16 %v750
      %v1680 = vunpack.c.l.b16 %v751
      %v1681 = vunpack.c.h.b16 %v751
      %v1682 = vunpack.c.l.b16 %v752
      %v1683 = vunpack.c.h.b16 %v752
      %v1684 = vunpack.c.l.b16 %v753
      %v1685 = vunpack.c.h.b16 %v753
      %v1686 = vunpack.c.l.b16 %v754
      %v1687 = vunpack.c.h.b16 %v754
      %v1688 = vunpack.c.l.b16 %v755
      %v1689 = vunpack.c.h.b16 %v755
      %v1690 = vunpack.c.l.b16 %v756
      %v1691 = vunpack.c.h.b16 %v756
      %v1692 = vunpack.c.l.b16 %v757
      %v1693 = vunpack.c.h.b16 %v757
      %v1694 = vunpack.c.l.b16 %v758
      %v1695 = vunpack.c.h.b16 %v758
      %v1696 = vunpack.c.l.b16 %v759
      %v1697 = vunpack.c.h.b16 %v759
      %v1698 = vunpack.c.l.b16 %v760
      %v1699 = vunpack.c.h.b16 %v760
      %v1700 = vunpack.c.l.b16 %v761
      %v1701 = vunpack.c.h.b16 %v761
      %v1702 = vunpack.c.l.b16 %v762
      %v1703 = vunpack.c.h.b16 %v762
      %v1704 = vunpack.c.l.b16 %v763
      %v1705 = vunpack.c.h.b16 %v763
      %v1706 = vunpack.c.l.b16 %v764
      %v1707 = vunpack.c.h.b16 %v764
      %v1708 = vunpack.c.l.b16 %v765
      %v1709 = vunpack.c.h.b16 %v765
      %v1710 = vunpack.c.l.b16 %v766
      %v1711 = vunpack.c.h.b16 %v766
      %v1712 = vunpack.c.l.b16 %v767
      %v1713 = vunpack.c.h.b16 %v767
      %v1714 = vunpack.c.l.b16 %v768
      %v1715 = vunpack.c.h.b16 %v768
      %v1716 = vunpack.c.l.b16 %v769
      %v1717 = vunpack.c.h.b16 %v769
      %v1718 = vunpack.c.l.b16 %v770
      %v1719 = vunpack.c.h.b16 %v770
      %v1720 = vunpack.c.l.b16 %v771
      %v1721 = vunpack.c.h.b16 %v771
      %v1722 = vunpack.c.l.b16 %v772
      %v1723 = vunpack.c.h.b16 %v772
      %v1724 = vunpack.c.l.b16 %v773
      %v1725 = vunpack.c.h.b16 %v773
      %v1726 = vunpack.c.l.b16 %v774
      %v1727 = vunpack.c.h.b16 %v774
      %v1728 = vunpack.c.l.b16 %v775
      %v1729 = vunpack.c.h.b16 %v775
      %v1730 = vunpack.c.l.b16 %v776
      %v1731 = vunpack.c.h.b16 %v776
      %v1732 = vunpack.c.l.b16 %v777
      %v1733 = vunpack.c.h.b16 %v777
      %v1734 = vunpack.c.l.b16 %v778
      %v1735 = vunpack.c.h.b16 %v778
      %v1736 = vunpack.c.l.b16 %v779
      %v1737 = vunpack.c.h.b16 %v779
      %v1738 = vunpack.c.l.b16 %v780
      %v1739 = vunpack.c.h.b16 %v780
      %v1740 = vunpack.c.l.b16 %v781
      %v1741 = vunpack.c.h.b16 %v781
      %v1742 = vpack.c.b16 %v1298, %v1294
      %v1743 = vpack.c.b16 %v1299, %v1295
      %v1744 = vpack.c.b16 %v1300, %v1296
      %v1745 = vpack.c.b16 %v1301, %v1297
      %v1746 = vpack.c.b16 %v1306, %v1302
      %v1747 = vpack.c.b16 %v1307, %v1303
      %v1748 = vpack.c.b16 %v1308, %v1304
      %v1749 = vpack.c.b16 %v1309, %v1305
      %v1750 = vpack.c.b16 %v1314, %v1310
      %v1751 = vpack.c.b16 %v1315, %v1311
      %v1752 = vpack.c.b16 %v1316, %v1312
      %v1753 = vpack.c.b16 %v1317, %v1313
      %v1754 = vpack.c.b16 %v1322, %v1318
      %v1755 = vpack.c.b16 %v1323, %v1319
      %v1756 = vpack.c.b16 %v1324, %v1320
      %v1757 = vpack.c.b16 %v1325, %v1321
      %v1758 = vpack.c.b16 %v1330, %v1326
      %v1759 = vpack.c.b16 %v1331, %v1327
      %v1760 = vpack.c.b16 %v1332, %v1328
      %v1761 = vpack.c.b16 %v1333, %v1329
      %v1762 = vpack.c.b16 %v1338, %v1334
      %v1763 = vpack.c.b16 %v1339, %v1335
      %v1764 = vpack.c.b16 %v1340, %v1336
      %v1765 = vpack.c.b16 %v1341, %v1337
      %v1766 = vpack.c.b16 %v1346, %v1342
      %v1767 = vpack.c.b16 %v1347, %v1343
      %v1768 = vpack.c.b16 %v1348, %v1344
      %v1769 = vpack.c.b16 %v1349, %v1345
      %v1770 = vpack.c.b16 %v1354, %v1350
      %v1771 = vpack.c.b16 %v1355, %v1351
      %v1772 = vpack.c.b16 %v1356, %v1352
      %v1773 = vpack.c.b16 %v1357, %v1353
      %v1774 = vpack.c.b16 %v1362, %v1358
      %v1775 = vpack.c.b16 %v1363, %v1359
      %v1776 = vpack.c.b16 %v1364, %v1360
      %v1777 = vpack.c.b16 %v1365, %v1361
      %v1778 = vpack.c.b16 %v1370, %v1366
      %v1779 = vpack.c.b16 %v1371, %v1367
      %v1780 = vpack.c.b16 %v1372, %v1368
      %v1781 = vpack.c.b16 %v1373, %v1369
      %v1782 = vpack.c.b16 %v1378, %v1374
      %v1783 = vpack.c.b16 %v1379, %v1375
      %v1784 = vpack.c.b16 %v1380, %v1376
      %v1785 = vpack.c.b16 %v1381, %v1377
      %v1786 = vpack.c.b16 %v1386, %v1382
      %v1787 = vpack.c.b16 %v1387, %v1383
      %v1788 = vpack.c.b16 %v1388, %v1384
      %v1789 = vpack.c.b16 %v1389, %v1385
      %v1790 = vpack.c.b16 %v1394, %v1390
      %v1791 = vpack.c.b16 %v1395, %v1391
      %v1792 = vpack.c.b16 %v1396, %v1392
      %v1793 = vpack.c.b16 %v1397, %v1393
      %v1794 = vpack.c.b16 %v1402, %v1398
      %v1795 = vpack.c.b16 %v1403, %v1399
      %v1796 = vpack.c.b16 %v1404, %v1400
      %v1797 = vpack.c.b16 %v1405, %v1401
      %v1798 = vpack.c.b16 %v1410, %v1406
      %v1799 = vpack.c.b16 %v1411, %v1407
      %v1800 = vpack.c.b16 %v1412, %v1408
      %v1801 = vpack.c.b16 %v1413, %v1409
      %v1802 = vpack.c.b16 %v1418, %v1414
      %v1803 = vpack.c.b16 %v1419, %v1415
      %v1804 = vpack.c.b16 %v1420, %v1416
      %v1805 = vpack.c.b16 %v1421, %v1417
      %v1806 = vpack.c.b16 %v1426, %v1422
      %v1807 = vpack.c.b16 %v1427, %v1423
      %v1808 = vpack.c.b16 %v1428, %v1424
      %v1809 = vpack.c.b16 %v1429, %v1425
      %v1810 = vpack.c.b16 %v1434, %v1430
      %v1811 = vpack.c.b16 %v1435, %v1431
      %v1812 = vpack.c.b16 %v1436, %v1432
      %v1813 = vpack.c.b16 %v1437, %v1433
      %v1814 = vpack.c.b16 %v1442, %v1438
      %v1815 = vpack.c.b16 %v1443, %v1439
      %v1816 = vpack.c.b16 %v1444, %v1440
      %v1817 = vpack.c.b16 %v1445, %v1441
      %v1818 = vpack.c.b16 %v1450, %v1446
      %v1819 = vpack.c.b16 %v1451, %v1447
      %v1820 = vpack.c.b16 %v1452, %v1448
      %v1821 = vpack.c.b16 %v1453, %v1449
      %v1822 = vpack.c.b16 %v1458, %v1454
      %v1823 = vpack.c.b16 %v1459, %v1455
      %v1824 = vpack.c.b16 %v1460, %v1456
      %v1825 = vpack.c.b16 %v1461, %v1457
      %v1826 = vpack.c.b16 %v1466, %v1462
      %v1827 = vpack.c.b16 %v1467, %v1463
      %v1828 = vpack.c.b16 %v1468, %v1464
      %v1829 = vpack.c.b16 %v1469, %v1465
      %v1830 = vpack.c.b16 %v1474, %v1470
      %v1831 = vpack.c.b16 %v1475, %v1471
      %v1832 = vpack.c.b16 %v1476, %v1472
      %v1833 = vpack.c.b16 %v1477, %v1473
      %v1834 = vpack.c.b16 %v1482, %v1478
      %v1835 = vpack.c.b16 %v1483, %v1479
      %v1836 = vpack.c.b16 %v1484, %v1480
      %v1837 = vpack.c.b16 %v1485, %v1481
      %v1838 = vpack.c.b16 %v1490, %v1486
      %v1839 = vpack.c.b16 %v1491, %v1487
      %v1840 = vpack.c.b16 %v1492, %v1488
      %v1841 = vpack.c.b16 %v1493, %v1489
      %v1842 = vpack.c.b16 %v1498, %v1494
      %v1843 = vpack.c.b16 %v1499, %v1495
      %v1844 = vpack.c.b16 %v1500, %v1496
      %v1845 = vpack.c.b16 %v1501, %v1497
      %v1846 = vpack.c.b16 %v1506, %v1502
      %v1847 = vpack.c.b16 %v1507, %v1503
      %v1848 = vpack.c.b16 %v1508, %v1504
      %v1849 = vpack.c.b16 %v1509, %v1505
      %v1850 = vpack.c.b16 %v1514, %v1510
      %v1851 = vpack.c.b16 %v1515, %v1511
      %v1852 = vpack.c.b16 %v1516, %v1512
      %v1853 = vpack.c.b16 %v1517, %v1513
      %v1854 = vpack.c.b16 %v1522, %v1518
      %v1855 = vpack.c.b16 %v1523, %v1519
      %v1856 = vpack.c.b16 %v1524, %v1520
      %v1857 = vpack.c.b16 %v1525, %v1521
      %v1858 = vpack.c.b16 %v1530, %v1526
      %v1859 = vpack.c.b16 %v1531, %v1527
      %v1860 = vpack.c.b16 %v1532, %v1528
      %v1861 = vpack.c.b16 %v1533, %v1529
      %v1862 = vpack.c.b16 %v1538, %v1534
      %v1863 = vpack.c.b16 %v1539, %v1535
      %v1864 = vpack.c.b16 %v1540, %v1536
      %v1865 = vpack.c.b16 %v1541, %v1537
      %v1866 = vpack.c.b16 %v1546, %v1542
      %v1867 = vpack.c.b16 %v1547, %v1543
      %v1868 = vpack.c.b16 %v1548, %v1544
      %v1869 = vpack.c.b16 %v1549, %v1545
      %v1870 = vpack.c.b16 %v1554, %v1550
      %v1871 = vpack.c.b16 %v1555, %v1551
      %v1872 = vpack.c.b16 %v1556, %v1552
      %v1873 = vpack.c.b16 %v1557, %v1553
      %v1874 = vpack.c.b16 %v1562, %v1558
      %v1875 = vpack.c.b16 %v1563, %v1559
      %v1876 = vpack.c.b16 %v1564, %v1560
      %v1877 = vpack.c.b16 %v1565, %v1561
      %v1878 = vpack.c.b16 %v1570, %v1566
      %v1879 = vpack.c.b16 %v1571, %v1567
      %v1880 = vpack.c.b16 %v1572, %v1568
      %v1881 = vpack.c.b16 %v1573, %v1569
      %v1882 = vpack.c.b16 %v1578, %v1574
      %v1883 = vpack.c.b16 %v1579, %v1575
      %v1884 = vpack.c.b16 %v1580, %v1576
      %v1885 = vpack.c.b16 %v1581, %v1577
      %v1886 = vpack.c.b16 %v1586, %v1582
      %v1887 = vpack.c.b16 %v1587, %v1583
      %v1888 = vpack.c.b16 %v1588, %v1584
      %v1889 = vpack.c.b16 %v1589, %v1585
      %v1890 = vpack.c.b16 %v1594, %v1590
      %v1891 = vpack.c.b16 %v1595, %v1591
      %v1892 = vpack.c.b16 %v1596, %v1592
      %v1893 = vpack.c.b16 %v1597, %v1593
      %v1894 = vpack.c.b16 %v1602, %v1598
      %v1895 = vpack.c.b16 %v1603, %v1599
      %v1896 = vpack.c.b16 %v1604, %v1600
      %v1897 = vpack.c.b16 %v1605, %v1601
      %v1898 = vpack.c.b16 %v1610, %v1606
      %v1899 = vpack.c.b16 %v1611, %v1607
      %v1900 = vpack.c.b16 %v1612, %v1608
      %v1901 = vpack.c.b16 %v1613, %v1609
      %v1902 = vpack.c.b16 %v1618, %v1614
      %v1903 = vpack.c.b16 %v1619, %v1615
      %v1904 = vpack.c.b16 %v1620, %v1616
      %v1905 = vpack.c.b16 %v1621, %v1617
      %v1906 = vpack.c.b16 %v1626, %v1622
      %v1907 = vpack.c.b16 %v1627, %v1623
      %v1908 = vpack.c.b16 %v1628, %v1624
      %v1909 = vpack.c.b16 %v1629, %v1625
      %v1910 = vpack.c.b16 %v1634, %v1630
      %v1911 = vpack.c.b16 %v1635, %v1631
      %v1912 = vpack.c.b16 %v1636, %v1632
      %v1913 = vpack.c.b16 %v1637, %v1633
      %v1914 = vpack.c.b16 %v1642, %v1638
      %v1915 = vpack.c.b16 %v1643, %v1639
      %v1916 = vpack.c.b16 %v1644, %v1640
      %v1917 = vpack.c.b16 %v1645, %v1641
      %v1918 = vpack.c.b16 %v1650, %v1646
      %v1919 = vpack.c.b16 %v1651, %v1647
      %v1920 = vpack.c.b16 %v1652, %v1648
      %v1921 = vpack.c.b16 %v1653, %v1649
      %v1922 = vpack.c.b16 %v1658, %v1654
      %v1923 = vpack.c.b16 %v1659, %v1655
      %v1924 = vpack.c.b16 %v1660, %v1656
      %v1925 = vpack.c.b16 %v1661, %v1657
      %v1926 = vpack.c.b16 %v1666, %v1662
      %v1927 = vpack.c.b16 %v1667, %v1663
      %v1928 = vpack.c.b16 %v1668, %v1664
      %v1929 = vpack.c.b16 %v1669, %v1665
      %v1930 = vpack.c.b16 %v1674, %v1670
      %v1931 = vpack.c.b16 %v1675, %v1671
      %v1932 = vpack.c.b16 %v1676, %v1672
      %v1933 = vpack.c.b16 %v1677, %v1673
      %v1934 = vpack.c.b16 %v1682, %v1678
      %v1935 = vpack.c.b16 %v1683, %v1679
      %v1936 = vpack.c.b16 %v1684, %v1680
      %v1937 = vpack.c.b16 %v1685, %v1681
      %v1938 = vpack.c.b16 %v1690, %v1686
      %v1939 = vpack.c.b16 %v1691, %v1687
      %v1940 = vpack.c.b16 %v1692, %v1688
      %v1941 = vpack.c.b16 %v1693, %v1689
      %v1942 = vpack.c.b16 %v1698, %v1694
      %v1943 = vpack.c.b16 %v1699, %v1695
      %v1944 = vpack.c.b16 %v1700, %v1696
      %v1945 = vpack.c.b16 %v1701, %v1697
      %v1946 = vpack.c.b16 %v1706, %v1702
      %v1947 = vpack.c.b16 %v1707, %v1703
      %v1948 = vpack.c.b16 %v1708, %v1704
      %v1949 = vpack.c.b16 %v1709, %v1705
      %v1950 = vpack.c.b16 %v1714, %v1710
      %v1951 = vpack.c.b16 %v1715, %v1711
      %v1952 = vpack.c.b16 %v1716, %v1712
      %v1953 = vpack.c.b16 %v1717, %v1713
      %v1954 = vpack.c.b16 %v1722, %v1718
      %v1955 = vpack.c.b16 %v1723, %v1719
      %v1956 = vpack.c.b16 %v1724, %v1720
      %v1957 = vpack.c.b16 %v1725, %v1721
      %v1958 = vpack.c.b16 %v1730, %v1726
      %v1959 = vpack.c.b16 %v1731, %v1727
      %v1960 = vpack.c.b16 %v1732, %v1728
      %v1961 = vpack.c.b16 %v1733, %v1729
      %v1962 = vpack.c.b16 %v1738, %v1734
      %v1963 = vpack.c.b16 %v1739, %v1735
      %v1964 = vpack.c.b16 %v1740, %v1736
      %v1965 = vpack.c.b16 %v1741, %v1737
      %2190 = vmatprep.subr.bf16.mxu0 %v1743
      %2191 = vmatpush1.bf16.msra.mxu0 %v1742
      %2192 = vmatprep.subr.bf16.mxu0 %v1747
      %2193 = vmatpush1.bf16.msra.mxu0 %v1746
      %2194 = vmatprep.subr.bf16.mxu0 %v1751
      %2195 = vmatpush1.bf16.msra.mxu0 %v1750
      %2196 = vmatprep.subr.bf16.mxu0 %v1755
      %2197 = vmatpush1.bf16.msra.mxu0 %v1754
      %2198 = vmatprep.subr.bf16.mxu0 %v1759
      %2199 = vmatpush1.bf16.msra.mxu0 %v1758
      %2200 = vmatprep.subr.bf16.mxu0 %v1763
      %2201 = vmatpush1.bf16.msra.mxu0 %v1762
      %2202 = vmatprep.subr.bf16.mxu0 %v1767
      %2203 = vmatpush1.bf16.msra.mxu0 %v1766
      %2204 = vmatprep.subr.bf16.mxu0 %v1771
      %2205 = vmatpush1.bf16.msra.mxu0 %v1770
      %2206 = vmatprep.subr.bf16.mxu0 %v1775
      %2207 = vmatpush1.bf16.msra.mxu0 %v1774
      %2208 = vmatprep.subr.bf16.mxu0 %v1779
      %2209 = vmatpush1.bf16.msra.mxu0 %v1778
      %2210 = vmatprep.subr.bf16.mxu0 %v1783
      %2211 = vmatpush1.bf16.msra.mxu0 %v1782
      %2212 = vmatprep.subr.bf16.mxu0 %v1787
      %2213 = vmatpush1.bf16.msra.mxu0 %v1786
      %2214 = vmatprep.subr.bf16.mxu0 %v1791
      %2215 = vmatpush1.bf16.msra.mxu0 %v1790
      %2216 = vmatprep.subr.bf16.mxu0 %v1795
      %2217 = vmatpush1.bf16.msra.mxu0 %v1794
      %2218 = vmatprep.subr.bf16.mxu0 %v1799
      %2219 = vmatpush1.bf16.msra.mxu0 %v1798
      %2220 = vmatprep.subr.bf16.mxu0 %v1803
      %2221 = vmatpush1.bf16.msra.mxu0 %v1802
      %2222 = vmatprep.mubr.bf16.mxu0 %v959
      %2223 = vmatmul.mubr.bf16.gmra.mrb[0].mxu0 %v958
      %v2224 = vpop.f32.mrb[0].mxu0
      %v2225 = vadd.f32 0.0, %v2224
      %v2226 = vpop.f32.mrb[0].mxu0
      %v2227 = vadd.f32 0.0, %v2226
      %v2228 = vpop.f32.mrb[0].mxu0
      %v2229 = vadd.f32 0.0, %v2228
      %v2230 = vpop.f32.mrb[0].mxu0
      %v2231 = vadd.f32 0.0, %v2230
      %2232 = vmatprep.mubr.bf16.mxu0 %v966
      %2233 = vmatmul.mubr.bf16.gmra.mrb[0].mxu0 %v965
      %v2234 = vpop.f32.mrb[0].mxu0
      %v2235 = vadd.f32 0.0, %v2234
      %v2236 = vpop.f32.mrb[0].mxu0
      %v2237 = vadd.f32 0.0, %v2236
      %v2238 = vpop.f32.mrb[0].mxu0
      %v2239 = vadd.f32 0.0, %v2238
      %v2240 = vpop.f32.mrb[0].mxu0
      %v2241 = vadd.f32 0.0, %v2240
      %2242 = vmatprep.mubr.bf16.mxu0 %v973
      %2243 = vmatmul.mubr.bf16.gmra.mrb[0].mxu0 %v972
      %v2244 = vpop.f32.mrb[0].mxu0
      %v2245 = vadd.f32 0.0, %v2244
      %v2246 = vpop.f32.mrb[0].mxu0
      %v2247 = vadd.f32 0.0, %v2246
      %v2248 = vpop.f32.mrb[0].mxu0
      %v2249 = vadd.f32 0.0, %v2248
      %v2250 = vpop.f32.mrb[0].mxu0
      %v2251 = vadd.f32 0.0, %v2250
      %2252 = vmatprep.mubr.bf16.mxu0 %v980
      %2253 = vmatmul.mubr.bf16.gmra.mrb[0].mxu0 %v979
      %v2254 = vpop.f32.mrb[0].mxu0
      %v2255 = vadd.f32 0.0, %v2254
      %v2256 = vpop.f32.mrb[0].mxu0
      %v2257 = vadd.f32 0.0, %v2256
      %v2258 = vpop.f32.mrb[0].mxu0
      %v2259 = vadd.f32 0.0, %v2258
      %v2260 = vpop.f32.mrb[0].mxu0
      %v2261 = vadd.f32 0.0, %v2260
      %2262 = vmatprep.mubr.bf16.mxu0 %v987
      %2263 = vmatmul.mubr.bf16.gmra.mrb[0].mxu0 %v986
      %v2264 = vpop.f32.mrb[0].mxu0
      %v2265 = vadd.f32 0.0, %v2264
      %v2266 = vpop.f32.mrb[0].mxu0
      %v2267 = vadd.f32 0.0, %v2266
      %v2268 = vpop.f32.mrb[0].mxu0
      %v2269 = vadd.f32 0.0, %v2268
      %v2270 = vpop.f32.mrb[0].mxu0
      %v2271 = vadd.f32 0.0, %v2270
      %2272 = vmatprep.mubr.bf16.mxu0 %v994
      %2273 = vmatmul.mubr.bf16.gmra.mrb[0].mxu0 %v993
      %v2274 = vpop.f32.mrb[0].mxu0
      %v2275 = vadd.f32 0.0, %v2274
      %v2276 = vpop.f32.mrb[0].mxu0
      %v2277 = vadd.f32 0.0, %v2276
      %v2278 = vpop.f32.mrb[0].mxu0
      %v2279 = vadd.f32 0.0, %v2278
      %v2280 = vpop.f32.mrb[0].mxu0
      %v2281 = vadd.f32 0.0, %v2280
      %2282 = vmatprep.mubr.bf16.mxu0 %v1001
      %2283 = vmatmul.mubr.bf16.gmra.mrb[0].mxu0 %v1000
      %v2284 = vpop.f32.mrb[0].mxu0
      %v2285 = vadd.f32 0.0, %v2284
      %v2286 = vpop.f32.mrb[0].mxu0
      %v2287 = vadd.f32 0.0, %v2286
      %v2288 = vpop.f32.mrb[0].mxu0
      %v2289 = vadd.f32 0.0, %v2288
      %v2290 = vpop.f32.mrb[0].mxu0
      %v2291 = vadd.f32 0.0, %v2290
      %2292 = vmatprep.mubr.bf16.mxu0 %v1008
      %2293 = vmatmul.mubr.bf16.gmra.mrb[0].mxu0 %v1007
      %v2294 = vpop.f32.mrb[0].mxu0
      %v2295 = vadd.f32 0.0, %v2294
      %v2296 = vpop.f32.mrb[0].mxu0
      %v2297 = vadd.f32 0.0, %v2296
      %v2298 = vpop.f32.mrb[0].mxu0
      %v2299 = vadd.f32 0.0, %v2298
      %v2300 = vpop.f32.mrb[0].mxu0
      %v2301 = vadd.f32 0.0, %v2300
      %2302 = vdwg.mxu0
      %2303 = vmatprep.subr.bf16.mxu0 %v1807
      %2304 = vmatpush1.bf16.msra.mxu0 %v1806
      %2305 = vmatprep.subr.bf16.mxu0 %v1811
      %2306 = vmatpush1.bf16.msra.mxu0 %v1810
      %2307 = vmatprep.subr.bf16.mxu0 %v1815
      %2308 = vmatpush1.bf16.msra.mxu0 %v1814
      %2309 = vmatprep.subr.bf16.mxu0 %v1819
      %2310 = vmatpush1.bf16.msra.mxu0 %v1818
      %2311 = vmatprep.subr.bf16.mxu0 %v1823
      %2312 = vmatpush1.bf16.msra.mxu0 %v1822
      %2313 = vmatprep.subr.bf16.mxu0 %v1827
      %2314 = vmatpush1.bf16.msra.mxu0 %v1826
      %2315 = vmatprep.subr.bf16.mxu0 %v1831
      %2316 = vmatpush1.bf16.msra.mxu0 %v1830
      %2317 = vmatprep.subr.bf16.mxu0 %v1835
      %2318 = vmatpush1.bf16.msra.mxu0 %v1834
      %2319 = vmatprep.subr.bf16.mxu0 %v1839
      %2320 = vmatpush1.bf16.msra.mxu0 %v1838
      %2321 = vmatprep.subr.bf16.mxu0 %v1843
      %2322 = vmatpush1.bf16.msra.mxu0 %v1842
      %2323 = vmatprep.subr.bf16.mxu0 %v1847
      %2324 = vmatpush1.bf16.msra.mxu0 %v1846
      %2325 = vmatprep.subr.bf16.mxu0 %v1851
      %2326 = vmatpush1.bf16.msra.mxu0 %v1850
      %2327 = vmatprep.subr.bf16.mxu0 %v1855
      %2328 = vmatpush1.bf16.msra.mxu0 %v1854
      %2329 = vmatprep.subr.bf16.mxu0 %v1859
      %2330 = vmatpush1.bf16.msra.mxu0 %v1858
      %2331 = vmatprep.subr.bf16.mxu0 %v1863
      %2332 = vmatpush1.bf16.msra.mxu0 %v1862
      %2333 = vmatprep.subr.bf16.mxu0 %v1867
      %2334 = vmatpush1.bf16.msra.mxu0 %v1866
      %2335 = vmatprep.mubr.bf16.mxu0 %v961
      %2336 = vmatmul.mubr.bf16.gmra.mrb[0].mxu0 %v960
      %v2337 = vpop.f32.mrb[0].mxu0
      %v2338 = vadd.f32 %v2225, %v2337
      %v2339 = vpop.f32.mrb[0].mxu0
      %v2340 = vadd.f32 %v2227, %v2339
      %v2341 = vpop.f32.mrb[0].mxu0
      %v2342 = vadd.f32 %v2229, %v2341
      %v2343 = vpop.f32.mrb[0].mxu0
      %v2344 = vadd.f32 %v2231, %v2343
      %2345 = vmatprep.mubr.bf16.mxu0 %v968
      %2346 = vmatmul.mubr.bf16.gmra.mrb[0].mxu0 %v967
      %v2347 = vpop.f32.mrb[0].mxu0
      %v2348 = vadd.f32 %v2235, %v2347
      %v2349 = vpop.f32.mrb[0].mxu0
      %v2350 = vadd.f32 %v2237, %v2349
      %v2351 = vpop.f32.mrb[0].mxu0
      %v2352 = vadd.f32 %v2239, %v2351
      %v2353 = vpop.f32.mrb[0].mxu0
      %v2354 = vadd.f32 %v2241, %v2353
      %2355 = vmatprep.mubr.bf16.mxu0 %v975
      %2356 = vmatmul.mubr.bf16.gmra.mrb[0].mxu0 %v974
      %v2357 = vpop.f32.mrb[0].mxu0
      %v2358 = vadd.f32 %v2245, %v2357
      %v2359 = vpop.f32.mrb[0].mxu0
      %v2360 = vadd.f32 %v2247, %v2359
      %v2361 = vpop.f32.mrb[0].mxu0
      %v2362 = vadd.f32 %v2249, %v2361
      %v2363 = vpop.f32.mrb[0].mxu0
      %v2364 = vadd.f32 %v2251, %v2363
      %2365 = vmatprep.mubr.bf16.mxu0 %v982
      %2366 = vmatmul.mubr.bf16.gmra.mrb[0].mxu0 %v981
      %v2367 = vpop.f32.mrb[0].mxu0
      %v2368 = vadd.f32 %v2255, %v2367
      %v2369 = vpop.f32.mrb[0].mxu0
      %v2370 = vadd.f32 %v2257, %v2369
      %v2371 = vpop.f32.mrb[0].mxu0
      %v2372 = vadd.f32 %v2259, %v2371
      %v2373 = vpop.f32.mrb[0].mxu0
      %v2374 = vadd.f32 %v2261, %v2373
      %2375 = vmatprep.mubr.bf16.mxu0 %v989
      %2376 = vmatmul.mubr.bf16.gmra.mrb[0].mxu0 %v988
      %v2377 = vpop.f32.mrb[0].mxu0
      %v2378 = vadd.f32 %v2265, %v2377
      %v2379 = vpop.f32.mrb[0].mxu0
      %v2380 = vadd.f32 %v2267, %v2379
      %v2381 = vpop.f32.mrb[0].mxu0
      %v2382 = vadd.f32 %v2269, %v2381
      %v2383 = vpop.f32.mrb[0].mxu0
      %v2384 = vadd.f32 %v2271, %v2383
      %2385 = vmatprep.mubr.bf16.mxu0 %v996
      %2386 = vmatmul.mubr.bf16.gmra.mrb[0].mxu0 %v995
      %v2387 = vpop.f32.mrb[0].mxu0
      %v2388 = vadd.f32 %v2275, %v2387
      %v2389 = vpop.f32.mrb[0].mxu0
      %v2390 = vadd.f32 %v2277, %v2389
      %v2391 = vpop.f32.mrb[0].mxu0
      %v2392 = vadd.f32 %v2279, %v2391
      %v2393 = vpop.f32.mrb[0].mxu0
      %v2394 = vadd.f32 %v2281, %v2393
      %2395 = vmatprep.mubr.bf16.mxu0 %v1003
      %2396 = vmatmul.mubr.bf16.gmra.mrb[0].mxu0 %v1002
      %v2397 = vpop.f32.mrb[0].mxu0
      %v2398 = vadd.f32 %v2285, %v2397
      %v2399 = vpop.f32.mrb[0].mxu0
      %v2400 = vadd.f32 %v2287, %v2399
      %v2401 = vpop.f32.mrb[0].mxu0
      %v2402 = vadd.f32 %v2289, %v2401
      %v2403 = vpop.f32.mrb[0].mxu0
      %v2404 = vadd.f32 %v2291, %v2403
      %2405 = vmatprep.mubr.bf16.mxu0 %v1010
      %2406 = vmatmul.mubr.bf16.gmra.mrb[0].mxu0 %v1009
      %v2407 = vpop.f32.mrb[0].mxu0
      %v2408 = vadd.f32 %v2295, %v2407
      %v2409 = vpop.f32.mrb[0].mxu0
      %v2410 = vadd.f32 %v2297, %v2409
      %v2411 = vpop.f32.mrb[0].mxu0
      %v2412 = vadd.f32 %v2299, %v2411
      %v2413 = vpop.f32.mrb[0].mxu0
      %v2414 = vadd.f32 %v2301, %v2413
      %2415 = vdwg.mxu0
      %2416 = vmatprep.subr.bf16.mxu0 %v1871
      %2417 = vmatpush1.bf16.msra.mxu0 %v1870
      %2418 = vmatprep.subr.bf16.mxu0 %v1875
      %2419 = vmatpush1.bf16.msra.mxu0 %v1874
      %2420 = vmatprep.subr.bf16.mxu0 %v1879
      %2421 = vmatpush1.bf16.msra.mxu0 %v1878
      %2422 = vmatprep.subr.bf16.mxu0 %v1883
      %2423 = vmatpush1.bf16.msra.mxu0 %v1882
      %2424 = vmatprep.subr.bf16.mxu0 %v1887
      %2425 = vmatpush1.bf16.msra.mxu0 %v1886
      %2426 = vmatprep.subr.bf16.mxu0 %v1891
      %2427 = vmatpush1.bf16.msra.mxu0 %v1890
      %2428 = vmatprep.subr.bf16.mxu0 %v1895
      %2429 = vmatpush1.bf16.msra.mxu0 %v1894
      %2430 = vmatprep.subr.bf16.mxu0 %v1899
      %2431 = vmatpush1.bf16.msra.mxu0 %v1898
      %2432 = vmatprep.subr.bf16.mxu0 %v1903
      %2433 = vmatpush1.bf16.msra.mxu0 %v1902
      %2434 = vmatprep.subr.bf16.mxu0 %v1907
      %2435 = vmatpush1.bf16.msra.mxu0 %v1906
      %2436 = vmatprep.subr.bf16.mxu0 %v1911
      %2437 = vmatpush1.bf16.msra.mxu0 %v1910
      %2438 = vmatprep.subr.bf16.mxu0 %v1915
      %2439 = vmatpush1.bf16.msra.mxu0 %v1914
      %2440 = vmatprep.subr.bf16.mxu0 %v1919
      %2441 = vmatpush1.bf16.msra.mxu0 %v1918
      %2442 = vmatprep.subr.bf16.mxu0 %v1923
      %2443 = vmatpush1.bf16.msra.mxu0 %v1922
      %2444 = vmatprep.subr.bf16.mxu0 %v1927
      %2445 = vmatpush1.bf16.msra.mxu0 %v1926
      %2446 = vmatprep.subr.bf16.mxu0 %v1931
      %2447 = vmatpush1.bf16.msra.mxu0 %v1930
      %2448 = vmatprep.mubr.bf16.mxu0 %v963
      %2449 = vmatmul.mubr.bf16.gmra.mrb[0].mxu0 %v962
      %v2450 = vpop.f32.mrb[0].mxu0
      %v2451 = vadd.f32 %v2338, %v2450
      %v2452 = vpop.f32.mrb[0].mxu0
      %v2453 = vadd.f32 %v2340, %v2452
      %v2454 = vpop.f32.mrb[0].mxu0
      %v2455 = vadd.f32 %v2342, %v2454
      %v2456 = vpop.f32.mrb[0].mxu0
      %v2457 = vadd.f32 %v2344, %v2456
      %2458 = vmatprep.mubr.bf16.mxu0 %v970
      %2459 = vmatmul.mubr.bf16.gmra.mrb[0].mxu0 %v969
      %v2460 = vpop.f32.mrb[0].mxu0
      %v2461 = vadd.f32 %v2348, %v2460
      %v2462 = vpop.f32.mrb[0].mxu0
      %v2463 = vadd.f32 %v2350, %v2462
      %v2464 = vpop.f32.mrb[0].mxu0
      %v2465 = vadd.f32 %v2352, %v2464
      %v2466 = vpop.f32.mrb[0].mxu0
      %v2467 = vadd.f32 %v2354, %v2466
      %2468 = vmatprep.mubr.bf16.mxu0 %v977
      %2469 = vmatmul.mubr.bf16.gmra.mrb[0].mxu0 %v976
      %v2470 = vpop.f32.mrb[0].mxu0
      %v2471 = vadd.f32 %v2358, %v2470
      %v2472 = vpop.f32.mrb[0].mxu0
      %v2473 = vadd.f32 %v2360, %v2472
      %v2474 = vpop.f32.mrb[0].mxu0
      %v2475 = vadd.f32 %v2362, %v2474
      %v2476 = vpop.f32.mrb[0].mxu0
      %v2477 = vadd.f32 %v2364, %v2476
      %2478 = vmatprep.mubr.bf16.mxu0 %v984
      %2479 = vmatmul.mubr.bf16.gmra.mrb[0].mxu0 %v983
      %v2480 = vpop.f32.mrb[0].mxu0
      %v2481 = vadd.f32 %v2368, %v2480
      %v2482 = vpop.f32.mrb[0].mxu0
      %v2483 = vadd.f32 %v2370, %v2482
      %v2484 = vpop.f32.mrb[0].mxu0
      %v2485 = vadd.f32 %v2372, %v2484
      %v2486 = vpop.f32.mrb[0].mxu0
      %v2487 = vadd.f32 %v2374, %v2486
      %2488 = vmatprep.mubr.bf16.mxu0 %v991
      %2489 = vmatmul.mubr.bf16.gmra.mrb[0].mxu0 %v990
      %v2490 = vpop.f32.mrb[0].mxu0
      %v2491 = vadd.f32 %v2378, %v2490
      %v2492 = vpop.f32.mrb[0].mxu0
      %v2493 = vadd.f32 %v2380, %v2492
      %v2494 = vpop.f32.mrb[0].mxu0
      %v2495 = vadd.f32 %v2382, %v2494
      %v2496 = vpop.f32.mrb[0].mxu0
      %v2497 = vadd.f32 %v2384, %v2496
      %2498 = vmatprep.mubr.bf16.mxu0 %v998
      %2499 = vmatmul.mubr.bf16.gmra.mrb[0].mxu0 %v997
      %v2500 = vpop.f32.mrb[0].mxu0
      %v2501 = vadd.f32 %v2388, %v2500
      %v2502 = vpop.f32.mrb[0].mxu0
      %v2503 = vadd.f32 %v2390, %v2502
      %v2504 = vpop.f32.mrb[0].mxu0
      %v2505 = vadd.f32 %v2392, %v2504
      %v2506 = vpop.f32.mrb[0].mxu0
      %v2507 = vadd.f32 %v2394, %v2506
      %2508 = vmatprep.mubr.bf16.mxu0 %v1005
      %2509 = vmatmul.mubr.bf16.gmra.mrb[0].mxu0 %v1004
      %v2510 = vpop.f32.mrb[0].mxu0
      %v2511 = vadd.f32 %v2398, %v2510
      %v2512 = vpop.f32.mrb[0].mxu0
      %v2513 = vadd.f32 %v2400, %v2512
      %v2514 = vpop.f32.mrb[0].mxu0
      %v2515 = vadd.f32 %v2402, %v2514
      %v2516 = vpop.f32.mrb[0].mxu0
      %v2517 = vadd.f32 %v2404, %v2516
      %2518 = vmatprep.mubr.bf16.mxu0 %v1012
      %2519 = vmatmul.mubr.bf16.gmra.mrb[0].mxu0 %v1011
      %v2520 = vpop.f32.mrb[0].mxu0
      %v2521 = vadd.f32 %v2408, %v2520
      %v2522 = vpop.f32.mrb[0].mxu0
      %v2523 = vadd.f32 %v2410, %v2522
      %v2524 = vpop.f32.mrb[0].mxu0
      %v2525 = vadd.f32 %v2412, %v2524
      %v2526 = vpop.f32.mrb[0].mxu0
      %v2527 = vadd.f32 %v2414, %v2526
      %2528 = vdwg.mxu0
      %2529 = vmatprep.subr.bf16.mxu0 %v1935
      %2530 = vmatpush1.bf16.msra.mxu0 %v1934
      %2531 = vmatprep.subr.bf16.mxu0 %v1939
      %2532 = vmatpush1.bf16.msra.mxu0 %v1938
      %2533 = vmatprep.subr.bf16.mxu0 %v1943
      %2534 = vmatpush1.bf16.msra.mxu0 %v1942
      %2535 = vmatprep.subr.bf16.mxu0 %v1947
      %2536 = vmatpush1.bf16.msra.mxu0 %v1946
      %2537 = vmatprep.subr.bf16.mxu0 %v1951
      %2538 = vmatpush1.bf16.msra.mxu0 %v1950
      %2539 = vmatprep.subr.bf16.mxu0 %v1955
      %2540 = vmatpush1.bf16.msra.mxu0 %v1954
      %2541 = vmatprep.subr.bf16.mxu0 %v1959
      %2542 = vmatpush1.bf16.msra.mxu0 %v1958
      %2543 = vmatprep.subr.bf16.mxu0 %v1963
      %2544 = vmatpush1.bf16.msra.mxu0 %v1962
      %2545 = vmatprep.subr.bf16.mxu0 0
      %2546 = vmatpush1.bf16.msra.mxu0 0
      %2547 = vmatprep.subr.bf16.mxu0 0
      %2548 = vmatpush1.bf16.msra.mxu0 0
      %2549 = vmatprep.subr.bf16.mxu0 0
      %2550 = vmatpush1.bf16.msra.mxu0 0
      %2551 = vmatprep.subr.bf16.mxu0 0
      %2552 = vmatpush1.bf16.msra.mxu0 0
      %2553 = vmatprep.subr.bf16.mxu0 0
      %2554 = vmatpush1.bf16.msra.mxu0 0
      %2555 = vmatprep.subr.bf16.mxu0 0
      %2556 = vmatpush1.bf16.msra.mxu0 0
      %2557 = vmatprep.subr.bf16.mxu0 0
      %2558 = vmatpush1.bf16.msra.mxu0 0
      %2559 = vmatprep.subr.bf16.mxu0 0
      %2560 = vmatpush1.bf16.msra.mxu0 0
      %2561 = vmatprep.mubr.bf16.mxu0 0
      %2562 = vmatmul.mubr.bf16.gmra.mrb[0].mxu0 %v964
      %v2563 = vpop.f32.mrb[0].mxu0
      %v2564 = vadd.f32 %v2451, %v2563
      %v2565 = vpop.f32.mrb[0].mxu0
      %v2566 = vadd.f32 %v2453, %v2565
      %v2567 = vpop.f32.mrb[0].mxu0
      %v2568 = vadd.f32 %v2455, %v2567
      %v2569 = vpop.f32.mrb[0].mxu0
      %v2570 = vadd.f32 %v2457, %v2569
      %2571 = vmatprep.mubr.bf16.mxu0 0
      %2572 = vmatmul.mubr.bf16.gmra.mrb[0].mxu0 %v971
      %v2573 = vpop.f32.mrb[0].mxu0
      %v2574 = vadd.f32 %v2461, %v2573
      %v2575 = vpop.f32.mrb[0].mxu0
      %v2576 = vadd.f32 %v2463, %v2575
      %v2577 = vpop.f32.mrb[0].mxu0
      %v2578 = vadd.f32 %v2465, %v2577
      %v2579 = vpop.f32.mrb[0].mxu0
      %v2580 = vadd.f32 %v2467, %v2579
      %2581 = vmatprep.mubr.bf16.mxu0 0
      %2582 = vmatmul.mubr.bf16.gmra.mrb[0].mxu0 %v978
      %v2583 = vpop.f32.mrb[0].mxu0
      %v2584 = vadd.f32 %v2471, %v2583
      %v2585 = vpop.f32.mrb[0].mxu0
      %v2586 = vadd.f32 %v2473, %v2585
      %v2587 = vpop.f32.mrb[0].mxu0
      %v2588 = vadd.f32 %v2475, %v2587
      %v2589 = vpop.f32.mrb[0].mxu0
      %v2590 = vadd.f32 %v2477, %v2589
      %2591 = vmatprep.mubr.bf16.mxu0 0
      %2592 = vmatmul.mubr.bf16.gmra.mrb[0].mxu0 %v985
      %v2593 = vpop.f32.mrb[0].mxu0
      %v2594 = vadd.f32 %v2481, %v2593
      %v2595 = vpop.f32.mrb[0].mxu0
      %v2596 = vadd.f32 %v2483, %v2595
      %v2597 = vpop.f32.mrb[0].mxu0
      %v2598 = vadd.f32 %v2485, %v2597
      %v2599 = vpop.f32.mrb[0].mxu0
      %v2600 = vadd.f32 %v2487, %v2599
      %2601 = vmatprep.mubr.bf16.mxu0 0
      %2602 = vmatmul.mubr.bf16.gmra.mrb[0].mxu0 %v992
      %v2603 = vpop.f32.mrb[0].mxu0
      %v2604 = vadd.f32 %v2491, %v2603
      %v2605 = vpop.f32.mrb[0].mxu0
      %v2606 = vadd.f32 %v2493, %v2605
      %v2607 = vpop.f32.mrb[0].mxu0
      %v2608 = vadd.f32 %v2495, %v2607
      %v2609 = vpop.f32.mrb[0].mxu0
      %v2610 = vadd.f32 %v2497, %v2609
      %2611 = vmatprep.mubr.bf16.mxu0 0
      %2612 = vmatmul.mubr.bf16.gmra.mrb[0].mxu0 %v999
      %v2613 = vpop.f32.mrb[0].mxu0
      %v2614 = vadd.f32 %v2501, %v2613
      %v2615 = vpop.f32.mrb[0].mxu0
      %v2616 = vadd.f32 %v2503, %v2615
      %v2617 = vpop.f32.mrb[0].mxu0
      %v2618 = vadd.f32 %v2505, %v2617
      %v2619 = vpop.f32.mrb[0].mxu0
      %v2620 = vadd.f32 %v2507, %v2619
      %2621 = vmatprep.mubr.bf16.mxu0 0
      %2622 = vmatmul.mubr.bf16.gmra.mrb[0].mxu0 %v1006
      %v2623 = vpop.f32.mrb[0].mxu0
      %v2624 = vadd.f32 %v2511, %v2623
      %v2625 = vpop.f32.mrb[0].mxu0
      %v2626 = vadd.f32 %v2513, %v2625
      %v2627 = vpop.f32.mrb[0].mxu0
      %v2628 = vadd.f32 %v2515, %v2627
      %v2629 = vpop.f32.mrb[0].mxu0
      %v2630 = vadd.f32 %v2517, %v2629
      %2631 = vmatprep.mubr.bf16.mxu0 0
      %2632 = vmatmul.mubr.bf16.gmra.mrb[0].mxu0 %v1013
      %v2633 = vpop.f32.mrb[0].mxu0
      %v2634 = vadd.f32 %v2521, %v2633
      %v2635 = vpop.f32.mrb[0].mxu0
      %v2636 = vadd.f32 %v2523, %v2635
      %v2637 = vpop.f32.mrb[0].mxu0
      %v2638 = vadd.f32 %v2525, %v2637
      %v2639 = vpop.f32.mrb[0].mxu0
      %v2640 = vadd.f32 %v2527, %v2639
      %2641 = vdwg.mxu0
      %2642 = vmatprep.subr.bf16.mxu0 %v1745
      %2643 = vmatpush1.bf16.msra.mxu0 %v1744
      %2644 = vmatprep.subr.bf16.mxu0 %v1749
      %2645 = vmatpush1.bf16.msra.mxu0 %v1748
      %2646 = vmatprep.subr.bf16.mxu0 %v1753
      %2647 = vmatpush1.bf16.msra.mxu0 %v1752
      %2648 = vmatprep.subr.bf16.mxu0 %v1757
      %2649 = vmatpush1.bf16.msra.mxu0 %v1756
      %2650 = vmatprep.subr.bf16.mxu0 %v1761
      %2651 = vmatpush1.bf16.msra.mxu0 %v1760
      %2652 = vmatprep.subr.bf16.mxu0 %v1765
      %2653 = vmatpush1.bf16.msra.mxu0 %v1764
      %2654 = vmatprep.subr.bf16.mxu0 %v1769
      %2655 = vmatpush1.bf16.msra.mxu0 %v1768
      %2656 = vmatprep.subr.bf16.mxu0 %v1773
      %2657 = vmatpush1.bf16.msra.mxu0 %v1772
      %2658 = vmatprep.subr.bf16.mxu0 %v1777
      %2659 = vmatpush1.bf16.msra.mxu0 %v1776
      %2660 = vmatprep.subr.bf16.mxu0 %v1781
      %2661 = vmatpush1.bf16.msra.mxu0 %v1780
      %2662 = vmatprep.subr.bf16.mxu0 %v1785
      %2663 = vmatpush1.bf16.msra.mxu0 %v1784
      %2664 = vmatprep.subr.bf16.mxu0 %v1789
      %2665 = vmatpush1.bf16.msra.mxu0 %v1788
      %2666 = vmatprep.subr.bf16.mxu0 %v1793
      %2667 = vmatpush1.bf16.msra.mxu0 %v1792
      %2668 = vmatprep.subr.bf16.mxu0 %v1797
      %2669 = vmatpush1.bf16.msra.mxu0 %v1796
      %2670 = vmatprep.subr.bf16.mxu0 %v1801
      %2671 = vmatpush1.bf16.msra.mxu0 %v1800
      %2672 = vmatprep.subr.bf16.mxu0 %v1805
      %2673 = vmatpush1.bf16.msra.mxu0 %v1804
      %2674 = vmatprep.mubr.bf16.mxu0 %v959
      %2675 = vmatmul.mubr.bf16.gmra.mrb[0].mxu0 %v958
      %v2676 = vpop.f32.mrb[0].mxu0
      %v2677 = vadd.f32 0.0, %v2676
      %v2678 = vpop.f32.mrb[0].mxu0
      %v2679 = vadd.f32 0.0, %v2678
      %v2680 = vpop.f32.mrb[0].mxu0
      %v2681 = vadd.f32 0.0, %v2680
      %v2682 = vpop.f32.mrb[0].mxu0
      %v2683 = vadd.f32 0.0, %v2682
      %2684 = vmatprep.mubr.bf16.mxu0 %v966
      %2685 = vmatmul.mubr.bf16.gmra.mrb[0].mxu0 %v965
      %v2686 = vpop.f32.mrb[0].mxu0
      %v2687 = vadd.f32 0.0, %v2686
      %v2688 = vpop.f32.mrb[0].mxu0
      %v2689 = vadd.f32 0.0, %v2688
      %v2690 = vpop.f32.mrb[0].mxu0
      %v2691 = vadd.f32 0.0, %v2690
      %v2692 = vpop.f32.mrb[0].mxu0
      %v2693 = vadd.f32 0.0, %v2692
      %2694 = vmatprep.mubr.bf16.mxu0 %v973
      %2695 = vmatmul.mubr.bf16.gmra.mrb[0].mxu0 %v972
      %v2696 = vpop.f32.mrb[0].mxu0
      %v2697 = vadd.f32 0.0, %v2696
      %v2698 = vpop.f32.mrb[0].mxu0
      %v2699 = vadd.f32 0.0, %v2698
      %v2700 = vpop.f32.mrb[0].mxu0
      %v2701 = vadd.f32 0.0, %v2700
      %v2702 = vpop.f32.mrb[0].mxu0
      %v2703 = vadd.f32 0.0, %v2702
      %2704 = vmatprep.mubr.bf16.mxu0 %v980
      %2705 = vmatmul.mubr.bf16.gmra.mrb[0].mxu0 %v979
      %v2706 = vpop.f32.mrb[0].mxu0
      %v2707 = vadd.f32 0.0, %v2706
      %v2708 = vpop.f32.mrb[0].mxu0
      %v2709 = vadd.f32 0.0, %v2708
      %v2710 = vpop.f32.mrb[0].mxu0
      %v2711 = vadd.f32 0.0, %v2710
      %v2712 = vpop.f32.mrb[0].mxu0
      %v2713 = vadd.f32 0.0, %v2712
      %2714 = vmatprep.mubr.bf16.mxu0 %v987
      %2715 = vmatmul.mubr.bf16.gmra.mrb[0].mxu0 %v986
      %v2716 = vpop.f32.mrb[0].mxu0
      %v2717 = vadd.f32 0.0, %v2716
      %v2718 = vpop.f32.mrb[0].mxu0
      %v2719 = vadd.f32 0.0, %v2718
      %v2720 = vpop.f32.mrb[0].mxu0
      %v2721 = vadd.f32 0.0, %v2720
      %v2722 = vpop.f32.mrb[0].mxu0
      %v2723 = vadd.f32 0.0, %v2722
      %2724 = vmatprep.mubr.bf16.mxu0 %v994
      %2725 = vmatmul.mubr.bf16.gmra.mrb[0].mxu0 %v993
      %v2726 = vpop.f32.mrb[0].mxu0
      %v2727 = vadd.f32 0.0, %v2726
      %v2728 = vpop.f32.mrb[0].mxu0
      %v2729 = vadd.f32 0.0, %v2728
      %v2730 = vpop.f32.mrb[0].mxu0
      %v2731 = vadd.f32 0.0, %v2730
      %v2732 = vpop.f32.mrb[0].mxu0
      %v2733 = vadd.f32 0.0, %v2732
      %2734 = vmatprep.mubr.bf16.mxu0 %v1001
      %2735 = vmatmul.mubr.bf16.gmra.mrb[0].mxu0 %v1000
      %v2736 = vpop.f32.mrb[0].mxu0
      %v2737 = vadd.f32 0.0, %v2736
      %v2738 = vpop.f32.mrb[0].mxu0
      %v2739 = vadd.f32 0.0, %v2738
      %v2740 = vpop.f32.mrb[0].mxu0
      %v2741 = vadd.f32 0.0, %v2740
      %v2742 = vpop.f32.mrb[0].mxu0
      %v2743 = vadd.f32 0.0, %v2742
      %2744 = vmatprep.mubr.bf16.mxu0 %v1008
      %2745 = vmatmul.mubr.bf16.gmra.mrb[0].mxu0 %v1007
      %v2746 = vpop.f32.mrb[0].mxu0
      %v2747 = vadd.f32 0.0, %v2746
      %v2748 = vpop.f32.mrb[0].mxu0
      %v2749 = vadd.f32 0.0, %v2748
      %v2750 = vpop.f32.mrb[0].mxu0
      %v2751 = vadd.f32 0.0, %v2750
      %v2752 = vpop.f32.mrb[0].mxu0
      %v2753 = vadd.f32 0.0, %v2752
      %2754 = vdwg.mxu0
      %2755 = vmatprep.subr.bf16.mxu0 %v1809
      %2756 = vmatpush1.bf16.msra.mxu0 %v1808
      %2757 = vmatprep.subr.bf16.mxu0 %v1813
      %2758 = vmatpush1.bf16.msra.mxu0 %v1812
      %2759 = vmatprep.subr.bf16.mxu0 %v1817
      %2760 = vmatpush1.bf16.msra.mxu0 %v1816
      %2761 = vmatprep.subr.bf16.mxu0 %v1821
      %2762 = vmatpush1.bf16.msra.mxu0 %v1820
      %2763 = vmatprep.subr.bf16.mxu0 %v1825
      %2764 = vmatpush1.bf16.msra.mxu0 %v1824
      %2765 = vmatprep.subr.bf16.mxu0 %v1829
      %2766 = vmatpush1.bf16.msra.mxu0 %v1828
      %2767 = vmatprep.subr.bf16.mxu0 %v1833
      %2768 = vmatpush1.bf16.msra.mxu0 %v1832
      %2769 = vmatprep.subr.bf16.mxu0 %v1837
      %2770 = vmatpush1.bf16.msra.mxu0 %v1836
      %2771 = vmatprep.subr.bf16.mxu0 %v1841
      %2772 = vmatpush1.bf16.msra.mxu0 %v1840
      %2773 = vmatprep.subr.bf16.mxu0 %v1845
      %2774 = vmatpush1.bf16.msra.mxu0 %v1844
      %2775 = vmatprep.subr.bf16.mxu0 %v1849
      %2776 = vmatpush1.bf16.msra.mxu0 %v1848
      %2777 = vmatprep.subr.bf16.mxu0 %v1853
      %2778 = vmatpush1.bf16.msra.mxu0 %v1852
      %2779 = vmatprep.subr.bf16.mxu0 %v1857
      %2780 = vmatpush1.bf16.msra.mxu0 %v1856
      %2781 = vmatprep.subr.bf16.mxu0 %v1861
      %2782 = vmatpush1.bf16.msra.mxu0 %v1860
      %2783 = vmatprep.subr.bf16.mxu0 %v1865
      %2784 = vmatpush1.bf16.msra.mxu0 %v1864
      %2785 = vmatprep.subr.bf16.mxu0 %v1869
      %2786 = vmatpush1.bf16.msra.mxu0 %v1868
      %2787 = vmatprep.mubr.bf16.mxu0 %v961
      %2788 = vmatmul.mubr.bf16.gmra.mrb[0].mxu0 %v960
      %v2789 = vpop.f32.mrb[0].mxu0
      %v2790 = vadd.f32 %v2677, %v2789
      %v2791 = vpop.f32.mrb[0].mxu0
      %v2792 = vadd.f32 %v2679, %v2791
      %v2793 = vpop.f32.mrb[0].mxu0
      %v2794 = vadd.f32 %v2681, %v2793
      %v2795 = vpop.f32.mrb[0].mxu0
      %v2796 = vadd.f32 %v2683, %v2795
      %2797 = vmatprep.mubr.bf16.mxu0 %v968
      %2798 = vmatmul.mubr.bf16.gmra.mrb[0].mxu0 %v967
      %v2799 = vpop.f32.mrb[0].mxu0
      %v2800 = vadd.f32 %v2687, %v2799
      %v2801 = vpop.f32.mrb[0].mxu0
      %v2802 = vadd.f32 %v2689, %v2801
      %v2803 = vpop.f32.mrb[0].mxu0
      %v2804 = vadd.f32 %v2691, %v2803
      %v2805 = vpop.f32.mrb[0].mxu0
      %v2806 = vadd.f32 %v2693, %v2805
      %2807 = vmatprep.mubr.bf16.mxu0 %v975
      %2808 = vmatmul.mubr.bf16.gmra.mrb[0].mxu0 %v974
      %v2809 = vpop.f32.mrb[0].mxu0
      %v2810 = vadd.f32 %v2697, %v2809
      %v2811 = vpop.f32.mrb[0].mxu0
      %v2812 = vadd.f32 %v2699, %v2811
      %v2813 = vpop.f32.mrb[0].mxu0
      %v2814 = vadd.f32 %v2701, %v2813
      %v2815 = vpop.f32.mrb[0].mxu0
      %v2816 = vadd.f32 %v2703, %v2815
      %2817 = vmatprep.mubr.bf16.mxu0 %v982
      %2818 = vmatmul.mubr.bf16.gmra.mrb[0].mxu0 %v981
      %v2819 = vpop.f32.mrb[0].mxu0
      %v2820 = vadd.f32 %v2707, %v2819
      %v2821 = vpop.f32.mrb[0].mxu0
      %v2822 = vadd.f32 %v2709, %v2821
      %v2823 = vpop.f32.mrb[0].mxu0
      %v2824 = vadd.f32 %v2711, %v2823
      %v2825 = vpop.f32.mrb[0].mxu0
      %v2826 = vadd.f32 %v2713, %v2825
      %2827 = vmatprep.mubr.bf16.mxu0 %v989
      %2828 = vmatmul.mubr.bf16.gmra.mrb[0].mxu0 %v988
      %v2829 = vpop.f32.mrb[0].mxu0
      %v2830 = vadd.f32 %v2717, %v2829
      %v2831 = vpop.f32.mrb[0].mxu0
      %v2832 = vadd.f32 %v2719, %v2831
      %v2833 = vpop.f32.mrb[0].mxu0
      %v2834 = vadd.f32 %v2721, %v2833
      %v2835 = vpop.f32.mrb[0].mxu0
      %v2836 = vadd.f32 %v2723, %v2835
      %2837 = vmatprep.mubr.bf16.mxu0 %v996
      %2838 = vmatmul.mubr.bf16.gmra.mrb[0].mxu0 %v995
      %v2839 = vpop.f32.mrb[0].mxu0
      %v2840 = vadd.f32 %v2727, %v2839
      %v2841 = vpop.f32.mrb[0].mxu0
      %v2842 = vadd.f32 %v2729, %v2841
      %v2843 = vpop.f32.mrb[0].mxu0
      %v2844 = vadd.f32 %v2731, %v2843
      %v2845 = vpop.f32.mrb[0].mxu0
      %v2846 = vadd.f32 %v2733, %v2845
      %2847 = vmatprep.mubr.bf16.mxu0 %v1003
      %2848 = vmatmul.mubr.bf16.gmra.mrb[0].mxu0 %v1002
      %v2849 = vpop.f32.mrb[0].mxu0
      %v2850 = vadd.f32 %v2737, %v2849
      %v2851 = vpop.f32.mrb[0].mxu0
      %v2852 = vadd.f32 %v2739, %v2851
      %v2853 = vpop.f32.mrb[0].mxu0
      %v2854 = vadd.f32 %v2741, %v2853
      %v2855 = vpop.f32.mrb[0].mxu0
      %v2856 = vadd.f32 %v2743, %v2855
      %2857 = vmatprep.mubr.bf16.mxu0 %v1010
      %2858 = vmatmul.mubr.bf16.gmra.mrb[0].mxu0 %v1009
      %v2859 = vpop.f32.mrb[0].mxu0
      %v2860 = vadd.f32 %v2747, %v2859
      %v2861 = vpop.f32.mrb[0].mxu0
      %v2862 = vadd.f32 %v2749, %v2861
      %v2863 = vpop.f32.mrb[0].mxu0
      %v2864 = vadd.f32 %v2751, %v2863
      %v2865 = vpop.f32.mrb[0].mxu0
      %v2866 = vadd.f32 %v2753, %v2865
      %2867 = vdwg.mxu0
      %2868 = vmatprep.subr.bf16.mxu0 %v1873
      %2869 = vmatpush1.bf16.msra.mxu0 %v1872
      %2870 = vmatprep.subr.bf16.mxu0 %v1877
      %2871 = vmatpush1.bf16.msra.mxu0 %v1876
      %2872 = vmatprep.subr.bf16.mxu0 %v1881
      %2873 = vmatpush1.bf16.msra.mxu0 %v1880
      %2874 = vmatprep.subr.bf16.mxu0 %v1885
      %2875 = vmatpush1.bf16.msra.mxu0 %v1884
      %2876 = vmatprep.subr.bf16.mxu0 %v1889
      %2877 = vmatpush1.bf16.msra.mxu0 %v1888
      %2878 = vmatprep.subr.bf16.mxu0 %v1893
      %2879 = vmatpush1.bf16.msra.mxu0 %v1892
      %2880 = vmatprep.subr.bf16.mxu0 %v1897
      %2881 = vmatpush1.bf16.msra.mxu0 %v1896
      %2882 = vmatprep.subr.bf16.mxu0 %v1901
      %2883 = vmatpush1.bf16.msra.mxu0 %v1900
      %2884 = vmatprep.subr.bf16.mxu0 %v1905
      %2885 = vmatpush1.bf16.msra.mxu0 %v1904
      %2886 = vmatprep.subr.bf16.mxu0 %v1909
      %2887 = vmatpush1.bf16.msra.mxu0 %v1908
      %2888 = vmatprep.subr.bf16.mxu0 %v1913
      %2889 = vmatpush1.bf16.msra.mxu0 %v1912
      %2890 = vmatprep.subr.bf16.mxu0 %v1917
      %2891 = vmatpush1.bf16.msra.mxu0 %v1916
      %2892 = vmatprep.subr.bf16.mxu0 %v1921
      %2893 = vmatpush1.bf16.msra.mxu0 %v1920
      %2894 = vmatprep.subr.bf16.mxu0 %v1925
      %2895 = vmatpush1.bf16.msra.mxu0 %v1924
      %2896 = vmatprep.subr.bf16.mxu0 %v1929
      %2897 = vmatpush1.bf16.msra.mxu0 %v1928
      %2898 = vmatprep.subr.bf16.mxu0 %v1933
      %2899 = vmatpush1.bf16.msra.mxu0 %v1932
      %2900 = vmatprep.mubr.bf16.mxu0 %v963
      %2901 = vmatmul.mubr.bf16.gmra.mrb[0].mxu0 %v962
      %v2902 = vpop.f32.mrb[0].mxu0
      %v2903 = vadd.f32 %v2790, %v2902
      %v2904 = vpop.f32.mrb[0].mxu0
      %v2905 = vadd.f32 %v2792, %v2904
      %v2906 = vpop.f32.mrb[0].mxu0
      %v2907 = vadd.f32 %v2794, %v2906
      %v2908 = vpop.f32.mrb[0].mxu0
      %v2909 = vadd.f32 %v2796, %v2908
      %2910 = vmatprep.mubr.bf16.mxu0 %v970
      %2911 = vmatmul.mubr.bf16.gmra.mrb[0].mxu0 %v969
      %v2912 = vpop.f32.mrb[0].mxu0
      %v2913 = vadd.f32 %v2800, %v2912
      %v2914 = vpop.f32.mrb[0].mxu0
      %v2915 = vadd.f32 %v2802, %v2914
      %v2916 = vpop.f32.mrb[0].mxu0
      %v2917 = vadd.f32 %v2804, %v2916
      %v2918 = vpop.f32.mrb[0].mxu0
      %v2919 = vadd.f32 %v2806, %v2918
      %2920 = vmatprep.mubr.bf16.mxu0 %v977
      %2921 = vmatmul.mubr.bf16.gmra.mrb[0].mxu0 %v976
      %v2922 = vpop.f32.mrb[0].mxu0
      %v2923 = vadd.f32 %v2810, %v2922
      %v2924 = vpop.f32.mrb[0].mxu0
      %v2925 = vadd.f32 %v2812, %v2924
      %v2926 = vpop.f32.mrb[0].mxu0
      %v2927 = vadd.f32 %v2814, %v2926
      %v2928 = vpop.f32.mrb[0].mxu0
      %v2929 = vadd.f32 %v2816, %v2928
      %2930 = vmatprep.mubr.bf16.mxu0 %v984
      %2931 = vmatmul.mubr.bf16.gmra.mrb[0].mxu0 %v983
      %v2932 = vpop.f32.mrb[0].mxu0
      %v2933 = vadd.f32 %v2820, %v2932
      %v2934 = vpop.f32.mrb[0].mxu0
      %v2935 = vadd.f32 %v2822, %v2934
      %v2936 = vpop.f32.mrb[0].mxu0
      %v2937 = vadd.f32 %v2824, %v2936
      %v2938 = vpop.f32.mrb[0].mxu0
      %v2939 = vadd.f32 %v2826, %v2938
      %2940 = vmatprep.mubr.bf16.mxu0 %v991
      %2941 = vmatmul.mubr.bf16.gmra.mrb[0].mxu0 %v990
      %v2942 = vpop.f32.mrb[0].mxu0
      %v2943 = vadd.f32 %v2830, %v2942
      %v2944 = vpop.f32.mrb[0].mxu0
      %v2945 = vadd.f32 %v2832, %v2944
      %v2946 = vpop.f32.mrb[0].mxu0
      %v2947 = vadd.f32 %v2834, %v2946
      %v2948 = vpop.f32.mrb[0].mxu0
      %v2949 = vadd.f32 %v2836, %v2948
      %2950 = vmatprep.mubr.bf16.mxu0 %v998
      %2951 = vmatmul.mubr.bf16.gmra.mrb[0].mxu0 %v997
      %v2952 = vpop.f32.mrb[0].mxu0
      %v2953 = vadd.f32 %v2840, %v2952
      %v2954 = vpop.f32.mrb[0].mxu0
      %v2955 = vadd.f32 %v2842, %v2954
      %v2956 = vpop.f32.mrb[0].mxu0
      %v2957 = vadd.f32 %v2844, %v2956
      %v2958 = vpop.f32.mrb[0].mxu0
      %v2959 = vadd.f32 %v2846, %v2958
      %2960 = vmatprep.mubr.bf16.mxu0 %v1005
      %2961 = vmatmul.mubr.bf16.gmra.mrb[0].mxu0 %v1004
      %v2962 = vpop.f32.mrb[0].mxu0
      %v2963 = vadd.f32 %v2850, %v2962
      %v2964 = vpop.f32.mrb[0].mxu0
      %v2965 = vadd.f32 %v2852, %v2964
      %v2966 = vpop.f32.mrb[0].mxu0
      %v2967 = vadd.f32 %v2854, %v2966
      %v2968 = vpop.f32.mrb[0].mxu0
      %v2969 = vadd.f32 %v2856, %v2968
      %2970 = vmatprep.mubr.bf16.mxu0 %v1012
      %2971 = vmatmul.mubr.bf16.gmra.mrb[0].mxu0 %v1011
      %v2972 = vpop.f32.mrb[0].mxu0
      %v2973 = vadd.f32 %v2860, %v2972
      %v2974 = vpop.f32.mrb[0].mxu0
      %v2975 = vadd.f32 %v2862, %v2974
      %v2976 = vpop.f32.mrb[0].mxu0
      %v2977 = vadd.f32 %v2864, %v2976
      %v2978 = vpop.f32.mrb[0].mxu0
      %v2979 = vadd.f32 %v2866, %v2978
      %2980 = vdwg.mxu0
      %2981 = vmatprep.subr.bf16.mxu0 %v1937
      %2982 = vmatpush1.bf16.msra.mxu0 %v1936
      %2983 = vmatprep.subr.bf16.mxu0 %v1941
      %2984 = vmatpush1.bf16.msra.mxu0 %v1940
      %2985 = vmatprep.subr.bf16.mxu0 %v1945
      %2986 = vmatpush1.bf16.msra.mxu0 %v1944
      %2987 = vmatprep.subr.bf16.mxu0 %v1949
      %2988 = vmatpush1.bf16.msra.mxu0 %v1948
      %2989 = vmatprep.subr.bf16.mxu0 %v1953
      %2990 = vmatpush1.bf16.msra.mxu0 %v1952
      %2991 = vmatprep.subr.bf16.mxu0 %v1957
      %2992 = vmatpush1.bf16.msra.mxu0 %v1956
      %2993 = vmatprep.subr.bf16.mxu0 %v1961
      %2994 = vmatpush1.bf16.msra.mxu0 %v1960
      %2995 = vmatprep.subr.bf16.mxu0 %v1965
      %2996 = vmatpush1.bf16.msra.mxu0 %v1964
      %2997 = vmatprep.subr.bf16.mxu0 0
      %2998 = vmatpush1.bf16.msra.mxu0 0
      %2999 = vmatprep.subr.bf16.mxu0 0
      %3000 = vmatpush1.bf16.msra.mxu0 0
      %3001 = vmatprep.subr.bf16.mxu0 0
      %3002 = vmatpush1.bf16.msra.mxu0 0
      %3003 = vmatprep.subr.bf16.mxu0 0
      %3004 = vmatpush1.bf16.msra.mxu0 0
      %3005 = vmatprep.subr.bf16.mxu0 0
      %3006 = vmatpush1.bf16.msra.mxu0 0
      %3007 = vmatprep.subr.bf16.mxu0 0
      %3008 = vmatpush1.bf16.msra.mxu0 0
      %3009 = vmatprep.subr.bf16.mxu0 0
      %3010 = vmatpush1.bf16.msra.mxu0 0
      %3011 = vmatprep.subr.bf16.mxu0 0
      %3012 = vmatpush1.bf16.msra.mxu0 0
      %3013 = vmatprep.mubr.bf16.mxu0 0
      %3014 = vmatmul.mubr.bf16.gmra.mrb[0].mxu0 %v964
      %v3015 = vpop.f32.mrb[0].mxu0
      %v3016 = vadd.f32 %v2903, %v3015
      %v3017 = vpop.f32.mrb[0].mxu0
      %v3018 = vadd.f32 %v2905, %v3017
      %v3019 = vpop.f32.mrb[0].mxu0
      %v3020 = vadd.f32 %v2907, %v3019
      %v3021 = vpop.f32.mrb[0].mxu0
      %v3022 = vadd.f32 %v2909, %v3021
      %3023 = vmatprep.mubr.bf16.mxu0 0
      %3024 = vmatmul.mubr.bf16.gmra.mrb[0].mxu0 %v971
      %v3025 = vpop.f32.mrb[0].mxu0
      %v3026 = vadd.f32 %v2913, %v3025
      %v3027 = vpop.f32.mrb[0].mxu0
      %v3028 = vadd.f32 %v2915, %v3027
      %v3029 = vpop.f32.mrb[0].mxu0
      %v3030 = vadd.f32 %v2917, %v3029
      %v3031 = vpop.f32.mrb[0].mxu0
      %v3032 = vadd.f32 %v2919, %v3031
      %3033 = vmatprep.mubr.bf16.mxu0 0
      %3034 = vmatmul.mubr.bf16.gmra.mrb[0].mxu0 %v978
      %v3035 = vpop.f32.mrb[0].mxu0
      %v3036 = vadd.f32 %v2923, %v3035
      %v3037 = vpop.f32.mrb[0].mxu0
      %v3038 = vadd.f32 %v2925, %v3037
      %v3039 = vpop.f32.mrb[0].mxu0
      %v3040 = vadd.f32 %v2927, %v3039
      %v3041 = vpop.f32.mrb[0].mxu0
      %v3042 = vadd.f32 %v2929, %v3041
      %3043 = vmatprep.mubr.bf16.mxu0 0
      %3044 = vmatmul.mubr.bf16.gmra.mrb[0].mxu0 %v985
      %v3045 = vpop.f32.mrb[0].mxu0
      %v3046 = vadd.f32 %v2933, %v3045
      %v3047 = vpop.f32.mrb[0].mxu0
      %v3048 = vadd.f32 %v2935, %v3047
      %v3049 = vpop.f32.mrb[0].mxu0
      %v3050 = vadd.f32 %v2937, %v3049
      %v3051 = vpop.f32.mrb[0].mxu0
      %v3052 = vadd.f32 %v2939, %v3051
      %3053 = vmatprep.mubr.bf16.mxu0 0
      %3054 = vmatmul.mubr.bf16.gmra.mrb[0].mxu0 %v992
      %v3055 = vpop.f32.mrb[0].mxu0
      %v3056 = vadd.f32 %v2943, %v3055
      %v3057 = vpop.f32.mrb[0].mxu0
      %v3058 = vadd.f32 %v2945, %v3057
      %v3059 = vpop.f32.mrb[0].mxu0
      %v3060 = vadd.f32 %v2947, %v3059
      %v3061 = vpop.f32.mrb[0].mxu0
      %v3062 = vadd.f32 %v2949, %v3061
      %3063 = vmatprep.mubr.bf16.mxu0 0
      %3064 = vmatmul.mubr.bf16.gmra.mrb[0].mxu0 %v999
      %v3065 = vpop.f32.mrb[0].mxu0
      %v3066 = vadd.f32 %v2953, %v3065
      %v3067 = vpop.f32.mrb[0].mxu0
      %v3068 = vadd.f32 %v2955, %v3067
      %v3069 = vpop.f32.mrb[0].mxu0
      %v3070 = vadd.f32 %v2957, %v3069
      %v3071 = vpop.f32.mrb[0].mxu0
      %v3072 = vadd.f32 %v2959, %v3071
      %3073 = vmatprep.mubr.bf16.mxu0 0
      %3074 = vmatmul.mubr.bf16.gmra.mrb[0].mxu0 %v1006
      %v3075 = vpop.f32.mrb[0].mxu0
      %v3076 = vadd.f32 %v2963, %v3075
      %v3077 = vpop.f32.mrb[0].mxu0
      %v3078 = vadd.f32 %v2965, %v3077
      %v3079 = vpop.f32.mrb[0].mxu0
      %v3080 = vadd.f32 %v2967, %v3079
      %v3081 = vpop.f32.mrb[0].mxu0
      %v3082 = vadd.f32 %v2969, %v3081
      %3083 = vmatprep.mubr.bf16.mxu0 0
      %3084 = vmatmul.mubr.bf16.gmra.mrb[0].mxu0 %v1013
      %v3085 = vpop.f32.mrb[0].mxu0
      %v3086 = vadd.f32 %v2973, %v3085
      %v3087 = vpop.f32.mrb[0].mxu0
      %v3088 = vadd.f32 %v2975, %v3087
      %v3089 = vpop.f32.mrb[0].mxu0
      %v3090 = vadd.f32 %v2977, %v3089
      %v3091 = vpop.f32.mrb[0].mxu0
      %v3092 = vadd.f32 %v2979, %v3091
      %3093 = vdwg.mxu0
      %v3094 = vadd.f32 %v430, %v2564
      %v3095 = vadd.f32 %v431, %v2566
      %v3096 = vadd.f32 %v432, %v3016
      %v3097 = vadd.f32 %v433, %v3018
      %v3098 = vadd.f32 %v434, %v2568
      %v3099 = vadd.f32 %v435, %v2570
      %v3100 = vadd.f32 %v436, %v3020
      %v3101 = vadd.f32 %v437, %v3022
      %v3102 = vadd.f32 %v438, %v2574
      %v3103 = vadd.f32 %v439, %v2576
      %v3104 = vadd.f32 %v440, %v3026
      %v3105 = vadd.f32 %v441, %v3028
      %v3106 = vadd.f32 %v442, %v2578
      %v3107 = vadd.f32 %v443, %v2580
      %v3108 = vadd.f32 %v444, %v3030
      %v3109 = vadd.f32 %v445, %v3032
      %v3110 = vadd.f32 %v446, %v2584
      %v3111 = vadd.f32 %v447, %v2586
      %v3112 = vadd.f32 %v448, %v3036
      %v3113 = vadd.f32 %v449, %v3038
      %v3114 = vadd.f32 %v450, %v2588
      %v3115 = vadd.f32 %v451, %v2590
      %v3116 = vadd.f32 %v452, %v3040
      %v3117 = vadd.f32 %v453, %v3042
      %v3118 = vadd.f32 %v454, %v2594
      %v3119 = vadd.f32 %v455, %v2596
      %v3120 = vadd.f32 %v456, %v3046
      %v3121 = vadd.f32 %v457, %v3048
      %v3122 = vadd.f32 %v458, %v2598
      %v3123 = vadd.f32 %v459, %v2600
      %v3124 = vadd.f32 %v460, %v3050
      %v3125 = vadd.f32 %v461, %v3052
      %v3126 = vadd.f32 %v462, %v2604
      %v3127 = vadd.f32 %v463, %v2606
      %v3128 = vadd.f32 %v464, %v3056
      %v3129 = vadd.f32 %v465, %v3058
      %v3130 = vadd.f32 %v466, %v2608
      %v3131 = vadd.f32 %v467, %v2610
      %v3132 = vadd.f32 %v468, %v3060
      %v3133 = vadd.f32 %v469, %v3062
      %v3134 = vadd.f32 %v470, %v2614
      %v3135 = vadd.f32 %v471, %v2616
      %v3136 = vadd.f32 %v472, %v3066
      %v3137 = vadd.f32 %v473, %v3068
      %v3138 = vadd.f32 %v474, %v2618
      %v3139 = vadd.f32 %v475, %v2620
      %v3140 = vadd.f32 %v476, %v3070
      %v3141 = vadd.f32 %v477, %v3072
      %v3142 = vadd.f32 %v478, %v2624
      %v3143 = vadd.f32 %v479, %v2626
      %v3144 = vadd.f32 %v480, %v3076
      %v3145 = vadd.f32 %v481, %v3078
      %v3146 = vadd.f32 %v482, %v2628
      %v3147 = vadd.f32 %v483, %v2630
      %v3148 = vadd.f32 %v484, %v3080
      %v3149 = vadd.f32 %v485, %v3082
      %v3150 = vadd.f32 %v486, %v2634
      %v3151 = vadd.f32 %v487, %v2636
      %v3152 = vadd.f32 %v488, %v3086
      %v3153 = vadd.f32 %v489, %v3088
      %v3154 = vadd.f32 %v490, %v2638
      %v3155 = vadd.f32 %v491, %v2640
      %v3156 = vadd.f32 %v492, %v3090
      %v3157 = vadd.f32 %v493, %v3092
      %3158 = vst [vmem:[#allocation2] sm:$0xff] %v3094
      %3159 = vst [vmem:[#allocation2 + $0x8] sm:$0xff] %v3095
      %3160 = vst [vmem:[#allocation2 + $0x10] sm:$0xff] %v3096
      %3161 = vst [vmem:[#allocation2 + $0x18] sm:$0xff] %v3097
      %3162 = vst [vmem:[#allocation2 + $0x20] sm:$0xff] %v3098
      %3163 = vst [vmem:[#allocation2 + $0x28] sm:$0xff] %v3099
      %3164 = vst [vmem:[#allocation2 + $0x30] sm:$0xff] %v3100
      %3165 = vst [vmem:[#allocation2 + $0x38] sm:$0xff] %v3101
      %3166 = vst [vmem:[#allocation2 + $0x40] sm:$0xff] %v3102
      %3167 = vst [vmem:[#allocation2 + $0x48] sm:$0xff] %v3103
      %3168 = vst [vmem:[#allocation2 + $0x50] sm:$0xff] %v3104
      %3169 = vst [vmem:[#allocation2 + $0x58] sm:$0xff] %v3105
      %3170 = vst [vmem:[#allocation2 + $0x60] sm:$0xff] %v3106
      %3171 = vst [vmem:[#allocation2 + $0x68] sm:$0xff] %v3107
      %3172 = vst [vmem:[#allocation2 + $0x70] sm:$0xff] %v3108
      %3173 = vst [vmem:[#allocation2 + $0x78] sm:$0xff] %v3109
      %3174 = vst [vmem:[#allocation2 + $0x80] sm:$0xff] %v3110
      %3175 = vst [vmem:[#allocation2 + $0x88] sm:$0xff] %v3111
      %3176 = vst [vmem:[#allocation2 + $0x90] sm:$0xff] %v3112
      %3177 = vst [vmem:[#allocation2 + $0x98] sm:$0xff] %v3113
      %3178 = vst [vmem:[#allocation2 + $0xa0] sm:$0xff] %v3114
      %3179 = vst [vmem:[#allocation2 + $0xa8] sm:$0xff] %v3115
      %3180 = vst [vmem:[#allocation2 + $0xb0] sm:$0xff] %v3116
      %3181 = vst [vmem:[#allocation2 + $0xb8] sm:$0xff] %v3117
      %3182 = vst [vmem:[#allocation2 + $0xc0] sm:$0xff] %v3118
      %3183 = vst [vmem:[#allocation2 + $0xc8] sm:$0xff] %v3119
      %3184 = vst [vmem:[#allocation2 + $0xd0] sm:$0xff] %v3120
      %3185 = vst [vmem:[#allocation2 + $0xd8] sm:$0xff] %v3121
      %3186 = vst [vmem:[#allocation2 + $0xe0] sm:$0xff] %v3122
      %3187 = vst [vmem:[#allocation2 + $0xe8] sm:$0xff] %v3123
      %3188 = vst [vmem:[#allocation2 + $0xf0] sm:$0xff] %v3124
      %3189 = vst [vmem:[#allocation2 + $0xf8] sm:$0xff] %v3125
      %3190 = vst [vmem:[#allocation2 + $0x100] sm:$0xff] %v3126
      %3191 = vst [vmem:[#allocation2 + $0x108] sm:$0xff] %v3127
      %3192 = vst [vmem:[#allocation2 + $0x110] sm:$0xff] %v3128
      %3193 = vst [vmem:[#allocation2 + $0x118] sm:$0xff] %v3129
      %3194 = vst [vmem:[#allocation2 + $0x120] sm:$0xff] %v3130
      %3195 = vst [vmem:[#allocation2 + $0x128] sm:$0xff] %v3131
      %3196 = vst [vmem:[#allocation2 + $0x130] sm:$0xff] %v3132
      %3197 = vst [vmem:[#allocation2 + $0x138] sm:$0xff] %v3133
      %3198 = vst [vmem:[#allocation2 + $0x140] sm:$0xff] %v3134
      %3199 = vst [vmem:[#allocation2 + $0x148] sm:$0xff] %v3135
      %3200 = vst [vmem:[#allocation2 + $0x150] sm:$0xff] %v3136
      %3201 = vst [vmem:[#allocation2 + $0x158] sm:$0xff] %v3137
      %3202 = vst [vmem:[#allocation2 + $0x160] sm:$0xff] %v3138
      %3203 = vst [vmem:[#allocation2 + $0x168] sm:$0xff] %v3139
      %3204 = vst [vmem:[#allocation2 + $0x170] sm:$0xff] %v3140
      %3205 = vst [vmem:[#allocation2 + $0x178] sm:$0xff] %v3141
      %3206 = vst [vmem:[#allocation2 + $0x180] sm:$0xff] %v3142
      %3207 = vst [vmem:[#allocation2 + $0x188] sm:$0xff] %v3143
      %3208 = vst [vmem:[#allocation2 + $0x190] sm:$0xff] %v3144
      %3209 = vst [vmem:[#allocation2 + $0x198] sm:$0xff] %v3145
      %3210 = vst [vmem:[#allocation2 + $0x1a0] sm:$0xff] %v3146
      %3211 = vst [vmem:[#allocation2 + $0x1a8] sm:$0xff] %v3147
      %3212 = vst [vmem:[#allocation2 + $0x1b0] sm:$0xff] %v3148
      %3213 = vst [vmem:[#allocation2 + $0x1b8] sm:$0xff] %v3149
      %3214 = vst [vmem:[#allocation2 + $0x1c0] sm:$0xff] %v3150
      %3215 = vst [vmem:[#allocation2 + $0x1c8] sm:$0xff] %v3151
      %3216 = vst [vmem:[#allocation2 + $0x1d0] sm:$0xff] %v3152
      %3217 = vst [vmem:[#allocation2 + $0x1d8] sm:$0xff] %v3153
      %3218 = vst [vmem:[#allocation2 + $0x1e0] sm:$0xff] %v3154
      %3219 = vst [vmem:[#allocation2 + $0x1e8] sm:$0xff] %v3155
      %3220 = vst [vmem:[#allocation2 + $0x1f0] sm:$0xff] %v3156
      %3221 = vst [vmem:[#allocation2 + $0x1f8] sm:$0xff] %v3157
      %p3222 = scmp.eq.s32.totalorder %s22, 26
      // Predicated region
      $region49: #{attention_head_forward.1} parent=43 // pred_check
        %p3223 = pneg %p3222
      $region50: #{attention_head_forward.1} parent=43 // pred_check_branch
        %3225 = sbr.rel (%p3223) target = $region52
      $region51: #{attention_head_forward.1} parent=43 // pred_region
        %v3226 = vld [vmem:[#allocation2] sm:$0xff]
        %v3227 = vld [vmem:[#allocation2 + $0x8] sm:$0xff]
        %v3228 = vld [vmem:[#allocation2 + $0x10] sm:$0xff]
        %v3229 = vld [vmem:[#allocation2 + $0x18] sm:$0xff]
        %v3230 = vld [vmem:[#allocation2 + $0x20] sm:$0xff]
        %v3231 = vld [vmem:[#allocation2 + $0x28] sm:$0xff]
        %v3232 = vld [vmem:[#allocation2 + $0x30] sm:$0xff]
        %v3233 = vld [vmem:[#allocation2 + $0x38] sm:$0xff]
        %v3234 = vld [vmem:[#allocation2 + $0x40] sm:$0xff]
        %v3235 = vld [vmem:[#allocation2 + $0x48] sm:$0xff]
        %v3236 = vld [vmem:[#allocation2 + $0x50] sm:$0xff]
        %v3237 = vld [vmem:[#allocation2 + $0x58] sm:$0xff]
        %v3238 = vld [vmem:[#allocation2 + $0x60] sm:$0xff]
        %v3239 = vld [vmem:[#allocation2 + $0x68] sm:$0xff]
        %v3240 = vld [vmem:[#allocation2 + $0x70] sm:$0xff]
        %v3241 = vld [vmem:[#allocation2 + $0x78] sm:$0xff]
        %v3242 = vld [vmem:[#allocation2 + $0x80] sm:$0xff]
        %v3243 = vld [vmem:[#allocation2 + $0x88] sm:$0xff]
        %v3244 = vld [vmem:[#allocation2 + $0x90] sm:$0xff]
        %v3245 = vld [vmem:[#allocation2 + $0x98] sm:$0xff]
        %v3246 = vld [vmem:[#allocation2 + $0xa0] sm:$0xff]
        %v3247 = vld [vmem:[#allocation2 + $0xa8] sm:$0xff]
        %v3248 = vld [vmem:[#allocation2 + $0xb0] sm:$0xff]
        %v3249 = vld [vmem:[#allocation2 + $0xb8] sm:$0xff]
        %v3250 = vld [vmem:[#allocation2 + $0xc0] sm:$0xff]
        %v3251 = vld [vmem:[#allocation2 + $0xc8] sm:$0xff]
        %v3252 = vld [vmem:[#allocation2 + $0xd0] sm:$0xff]
        %v3253 = vld [vmem:[#allocation2 + $0xd8] sm:$0xff]
        %v3254 = vld [vmem:[#allocation2 + $0xe0] sm:$0xff]
        %v3255 = vld [vmem:[#allocation2 + $0xe8] sm:$0xff]
        %v3256 = vld [vmem:[#allocation2 + $0xf0] sm:$0xff]
        %v3257 = vld [vmem:[#allocation2 + $0xf8] sm:$0xff]
        %v3258 = vld [vmem:[#allocation2 + $0x100] sm:$0xff]
        %v3259 = vld [vmem:[#allocation2 + $0x108] sm:$0xff]
        %v3260 = vld [vmem:[#allocation2 + $0x110] sm:$0xff]
        %v3261 = vld [vmem:[#allocation2 + $0x118] sm:$0xff]
        %v3262 = vld [vmem:[#allocation2 + $0x120] sm:$0xff]
        %v3263 = vld [vmem:[#allocation2 + $0x128] sm:$0xff]
        %v3264 = vld [vmem:[#allocation2 + $0x130] sm:$0xff]
        %v3265 = vld [vmem:[#allocation2 + $0x138] sm:$0xff]
        %v3266 = vld [vmem:[#allocation2 + $0x140] sm:$0xff]
        %v3267 = vld [vmem:[#allocation2 + $0x148] sm:$0xff]
        %v3268 = vld [vmem:[#allocation2 + $0x150] sm:$0xff]
        %v3269 = vld [vmem:[#allocation2 + $0x158] sm:$0xff]
        %v3270 = vld [vmem:[#allocation2 + $0x160] sm:$0xff]
        %v3271 = vld [vmem:[#allocation2 + $0x168] sm:$0xff]
        %v3272 = vld [vmem:[#allocation2 + $0x170] sm:$0xff]
        %v3273 = vld [vmem:[#allocation2 + $0x178] sm:$0xff]
        %v3274 = vld [vmem:[#allocation2 + $0x180] sm:$0xff]
        %v3275 = vld [vmem:[#allocation2 + $0x188] sm:$0xff]
        %v3276 = vld [vmem:[#allocation2 + $0x190] sm:$0xff]
        %v3277 = vld [vmem:[#allocation2 + $0x198] sm:$0xff]
        %v3278 = vld [vmem:[#allocation2 + $0x1a0] sm:$0xff]
        %v3279 = vld [vmem:[#allocation2 + $0x1a8] sm:$0xff]
        %v3280 = vld [vmem:[#allocation2 + $0x1b0] sm:$0xff]
        %v3281 = vld [vmem:[#allocation2 + $0x1b8] sm:$0xff]
        %v3282 = vld [vmem:[#allocation2 + $0x1c0] sm:$0xff]
        %v3283 = vld [vmem:[#allocation2 + $0x1c8] sm:$0xff]
        %v3284 = vld [vmem:[#allocation2 + $0x1d0] sm:$0xff]
        %v3285 = vld [vmem:[#allocation2 + $0x1d8] sm:$0xff]
        %v3286 = vld [vmem:[#allocation2 + $0x1e0] sm:$0xff]
        %v3287 = vld [vmem:[#allocation2 + $0x1e8] sm:$0xff]
        %v3288 = vld [vmem:[#allocation2 + $0x1f0] sm:$0xff]
        %v3289 = vld [vmem:[#allocation2 + $0x1f8] sm:$0xff]
        %v3290 = vld [vmem:[%s343] sm:$0xf]
        %v3292 = vlaneseq
        %v3293 = vshrl.u32 %v3292, 7
        %v3294 = vsub.s32 0, %v3293
        %v3295 = vrot.slane %v3290, %v3294
        %v3296 = vlaneseq
        %v3297 = vshrl.u32 %v3296, 7
        %v3298 = vsub.s32 1, %v3297
        %v3299 = vrot.slane %v3290, %v3298
        %v3300 = vlaneseq
        %v3301 = vshrl.u32 %v3300, 7
        %v3302 = vsub.s32 2, %v3301
        %v3303 = vrot.slane %v3290, %v3302
        %v3304 = vlaneseq
        %v3305 = vshrl.u32 %v3304, 7
        %v3306 = vsub.s32 3, %v3305
        %v3307 = vrot.slane %v3290, %v3306
        %v3312 = vadd.f32 %v3226, %v3295
        %v3313 = vadd.f32 %v3227, %v3299
        %v3314 = vadd.f32 %v3228, %v3303
        %v3315 = vadd.f32 %v3229, %v3307
        %v3316 = vadd.f32 %v3230, %v3295
        %v3317 = vadd.f32 %v3231, %v3299
        %v3318 = vadd.f32 %v3232, %v3303
        %v3319 = vadd.f32 %v3233, %v3307
        %v3320 = vadd.f32 %v3234, %v3295
        %v3321 = vadd.f32 %v3235, %v3299
        %v3322 = vadd.f32 %v3236, %v3303
        %v3323 = vadd.f32 %v3237, %v3307
        %v3324 = vadd.f32 %v3238, %v3295
        %v3325 = vadd.f32 %v3239, %v3299
        %v3326 = vadd.f32 %v3240, %v3303
        %v3327 = vadd.f32 %v3241, %v3307
        %v3328 = vadd.f32 %v3242, %v3295
        %v3329 = vadd.f32 %v3243, %v3299
        %v3330 = vadd.f32 %v3244, %v3303
        %v3331 = vadd.f32 %v3245, %v3307
        %v3332 = vadd.f32 %v3246, %v3295
        %v3333 = vadd.f32 %v3247, %v3299
        %v3334 = vadd.f32 %v3248, %v3303
        %v3335 = vadd.f32 %v3249, %v3307
        %v3336 = vadd.f32 %v3250, %v3295
        %v3337 = vadd.f32 %v3251, %v3299
        %v3338 = vadd.f32 %v3252, %v3303
        %v3339 = vadd.f32 %v3253, %v3307
        %v3340 = vadd.f32 %v3254, %v3295
        %v3341 = vadd.f32 %v3255, %v3299
        %v3342 = vadd.f32 %v3256, %v3303
        %v3343 = vadd.f32 %v3257, %v3307
        %v3344 = vadd.f32 %v3258, %v3295
        %v3345 = vadd.f32 %v3259, %v3299
        %v3346 = vadd.f32 %v3260, %v3303
        %v3347 = vadd.f32 %v3261, %v3307
        %v3348 = vadd.f32 %v3262, %v3295
        %v3349 = vadd.f32 %v3263, %v3299
        %v3350 = vadd.f32 %v3264, %v3303
        %v3351 = vadd.f32 %v3265, %v3307
        %v3352 = vadd.f32 %v3266, %v3295
        %v3353 = vadd.f32 %v3267, %v3299
        %v3354 = vadd.f32 %v3268, %v3303
        %v3355 = vadd.f32 %v3269, %v3307
        %v3356 = vadd.f32 %v3270, %v3295
        %v3357 = vadd.f32 %v3271, %v3299
        %v3358 = vadd.f32 %v3272, %v3303
        %v3359 = vadd.f32 %v3273, %v3307
        %v3360 = vadd.f32 %v3274, %v3295
        %v3361 = vadd.f32 %v3275, %v3299
        %v3362 = vadd.f32 %v3276, %v3303
        %v3363 = vadd.f32 %v3277, %v3307
        %v3364 = vadd.f32 %v3278, %v3295
        %v3365 = vadd.f32 %v3279, %v3299
        %v3366 = vadd.f32 %v3280, %v3303
        %v3367 = vadd.f32 %v3281, %v3307
        %v3368 = vadd.f32 %v3282, %v3295
        %v3369 = vadd.f32 %v3283, %v3299
        %v3370 = vadd.f32 %v3284, %v3303
        %v3371 = vadd.f32 %v3285, %v3307
        %v3372 = vadd.f32 %v3286, %v3295
        %v3373 = vadd.f32 %v3287, %v3299
        %v3374 = vadd.f32 %v3288, %v3303
        %v3375 = vadd.f32 %v3289, %v3307
        %v3376 = vmax.f32 %v3312, 0.0
        %v3377 = vmax.f32 %v3313, 0.0
        %v3378 = vmax.f32 %v3314, 0.0
        %v3379 = vmax.f32 %v3315, 0.0
        %v3380 = vmax.f32 %v3316, 0.0
        %v3381 = vmax.f32 %v3317, 0.0
        %v3382 = vmax.f32 %v3318, 0.0
        %v3383 = vmax.f32 %v3319, 0.0
        %v3384 = vmax.f32 %v3320, 0.0
        %v3385 = vmax.f32 %v3321, 0.0
        %v3386 = vmax.f32 %v3322, 0.0
        %v3387 = vmax.f32 %v3323, 0.0
        %v3388 = vmax.f32 %v3324, 0.0
        %v3389 = vmax.f32 %v3325, 0.0
        %v3390 = vmax.f32 %v3326, 0.0
        %v3391 = vmax.f32 %v3327, 0.0
        %v3392 = vmax.f32 %v3328, 0.0
        %v3393 = vmax.f32 %v3329, 0.0
        %v3394 = vmax.f32 %v3330, 0.0
        %v3395 = vmax.f32 %v3331, 0.0
        %v3396 = vmax.f32 %v3332, 0.0
        %v3397 = vmax.f32 %v3333, 0.0
        %v3398 = vmax.f32 %v3334, 0.0
        %v3399 = vmax.f32 %v3335, 0.0
        %v3400 = vmax.f32 %v3336, 0.0
        %v3401 = vmax.f32 %v3337, 0.0
        %v3402 = vmax.f32 %v3338, 0.0
        %v3403 = vmax.f32 %v3339, 0.0
        %v3404 = vmax.f32 %v3340, 0.0
        %v3405 = vmax.f32 %v3341, 0.0
        %v3406 = vmax.f32 %v3342, 0.0
        %v3407 = vmax.f32 %v3343, 0.0
        %v3408 = vmax.f32 %v3344, 0.0
        %v3409 = vmax.f32 %v3345, 0.0
        %v3410 = vmax.f32 %v3346, 0.0
        %v3411 = vmax.f32 %v3347, 0.0
        %v3412 = vmax.f32 %v3348, 0.0
        %v3413 = vmax.f32 %v3349, 0.0
        %v3414 = vmax.f32 %v3350, 0.0
        %v3415 = vmax.f32 %v3351, 0.0
        %v3416 = vmax.f32 %v3352, 0.0
        %v3417 = vmax.f32 %v3353, 0.0
        %v3418 = vmax.f32 %v3354, 0.0
        %v3419 = vmax.f32 %v3355, 0.0
        %v3420 = vmax.f32 %v3356, 0.0
        %v3421 = vmax.f32 %v3357, 0.0
        %v3422 = vmax.f32 %v3358, 0.0
        %v3423 = vmax.f32 %v3359, 0.0
        %v3424 = vmax.f32 %v3360, 0.0
        %v3425 = vmax.f32 %v3361, 0.0
        %v3426 = vmax.f32 %v3362, 0.0
        %v3427 = vmax.f32 %v3363, 0.0
        %v3428 = vmax.f32 %v3364, 0.0
        %v3429 = vmax.f32 %v3365, 0.0
        %v3430 = vmax.f32 %v3366, 0.0
        %v3431 = vmax.f32 %v3367, 0.0
        %v3432 = vmax.f32 %v3368, 0.0
        %v3433 = vmax.f32 %v3369, 0.0
        %v3434 = vmax.f32 %v3370, 0.0
        %v3435 = vmax.f32 %v3371, 0.0
        %v3436 = vmax.f32 %v3372, 0.0
        %v3437 = vmax.f32 %v3373, 0.0
        %v3438 = vmax.f32 %v3374, 0.0
        %v3439 = vmax.f32 %v3375, 0.0
        %v3440 = vld [vmem:[%s349] sm:$0xff]
        %v3441 = vld [vmem:[%s349 + $0x8] sm:$0xff]
        %v3442 = vld [vmem:[%s349 + $0x10] sm:$0xff]
        %v3443 = vld [vmem:[%s349 + $0x18] sm:$0xff]
        %v3444 = vld [vmem:[%s349 + $0x20] sm:$0xff]
        %v3445 = vld [vmem:[%s349 + $0x28] sm:$0xff]
        %v3446 = vld [vmem:[%s349 + $0x30] sm:$0xff]
        %v3447 = vld [vmem:[%s349 + $0x38] sm:$0xff]
        %v3448 = vld [vmem:[%s349 + $0x40] sm:$0xff]
        %v3449 = vld [vmem:[%s349 + $0x48] sm:$0xff]
        %v3450 = vld [vmem:[%s349 + $0x50] sm:$0xff]
        %v3451 = vld [vmem:[%s349 + $0x58] sm:$0xff]
        %v3452 = vld [vmem:[%s349 + $0x60] sm:$0xff]
        %v3453 = vld [vmem:[%s349 + $0x68] sm:$0xff]
        %v3454 = vld [vmem:[%s349 + $0x70] sm:$0xff]
        %v3455 = vld [vmem:[%s349 + $0x78] sm:$0xff]
        %v3456 = vld [vmem:[%s349 + $0x80] sm:$0xff]
        %v3457 = vld [vmem:[%s349 + $0x88] sm:$0xff]
        %v3458 = vld [vmem:[%s349 + $0x90] sm:$0xff]
        %v3459 = vld [vmem:[%s349 + $0x98] sm:$0xff]
        %v3460 = vld [vmem:[%s349 + $0xa0] sm:$0xff]
        %v3461 = vld [vmem:[%s349 + $0xa8] sm:$0xff]
        %v3462 = vld [vmem:[%s349 + $0xb0] sm:$0xff]
        %v3463 = vld [vmem:[%s349 + $0xb8] sm:$0xff]
        %v3464 = vld [vmem:[%s349 + $0xc0] sm:$0xff]
        %v3465 = vld [vmem:[%s349 + $0xc8] sm:$0xff]
        %v3466 = vld [vmem:[%s349 + $0xd0] sm:$0xff]
        %v3467 = vld [vmem:[%s349 + $0xd8] sm:$0xff]
        %v3468 = vld [vmem:[%s349 + $0xe0] sm:$0xff]
        %v3469 = vld [vmem:[%s349 + $0xe8] sm:$0xff]
        %v3470 = vld [vmem:[%s349 + $0xf0] sm:$0xff]
        %v3471 = vld [vmem:[%s349 + $0xf8] sm:$0xff]
        %v3472 = vld [vmem:[%s349 + $0x100] sm:$0xff]
        %v3473 = vld [vmem:[%s349 + $0x108] sm:$0xff]
        %v3474 = vld [vmem:[%s349 + $0x110] sm:$0xff]
        %v3475 = vld [vmem:[%s349 + $0x118] sm:$0xff]
        %v3476 = vld [vmem:[%s349 + $0x120] sm:$0xff]
        %v3477 = vld [vmem:[%s349 + $0x128] sm:$0xff]
        %v3478 = vld [vmem:[%s349 + $0x130] sm:$0xff]
        %v3479 = vld [vmem:[%s349 + $0x138] sm:$0xff]
        %v3480 = vld [vmem:[%s349 + $0x140] sm:$0xff]
        %v3481 = vld [vmem:[%s349 + $0x148] sm:$0xff]
        %v3482 = vld [vmem:[%s349 + $0x150] sm:$0xff]
        %v3483 = vld [vmem:[%s349 + $0x158] sm:$0xff]
        %v3484 = vld [vmem:[%s349 + $0x160] sm:$0xff]
        %v3485 = vld [vmem:[%s349 + $0x168] sm:$0xff]
        %v3486 = vld [vmem:[%s349 + $0x170] sm:$0xff]
        %v3487 = vld [vmem:[%s349 + $0x178] sm:$0xff]
        %v3488 = vld [vmem:[%s349 + $0x180] sm:$0xff]
        %v3489 = vld [vmem:[%s349 + $0x188] sm:$0xff]
        %v3490 = vld [vmem:[%s349 + $0x190] sm:$0xff]
        %v3491 = vld [vmem:[%s349 + $0x198] sm:$0xff]
        %v3492 = vld [vmem:[%s349 + $0x1a0] sm:$0xff]
        %v3493 = vld [vmem:[%s349 + $0x1a8] sm:$0xff]
        %v3494 = vld [vmem:[%s349 + $0x1b0] sm:$0xff]
        %v3495 = vld [vmem:[%s349 + $0x1b8] sm:$0xff]
        %v3496 = vld [vmem:[%s349 + $0x1c0] sm:$0xff]
        %v3497 = vld [vmem:[%s349 + $0x1c8] sm:$0xff]
        %v3498 = vld [vmem:[%s349 + $0x1d0] sm:$0xff]
        %v3499 = vld [vmem:[%s349 + $0x1d8] sm:$0xff]
        %v3500 = vld [vmem:[%s349 + $0x1e0] sm:$0xff]
        %v3501 = vld [vmem:[%s349 + $0x1e8] sm:$0xff]
        %v3502 = vld [vmem:[%s349 + $0x1f0] sm:$0xff]
        %v3503 = vld [vmem:[%s349 + $0x1f8] sm:$0xff]
        %v3504 = vmul.f32 %v3440, %v3376
        %v3505 = vmul.f32 %v3441, %v3377
        %v3506 = vmul.f32 %v3442, %v3378
        %v3507 = vmul.f32 %v3443, %v3379
        %v3508 = vmul.f32 %v3444, %v3380
        %v3509 = vmul.f32 %v3445, %v3381
        %v3510 = vmul.f32 %v3446, %v3382
        %v3511 = vmul.f32 %v3447, %v3383
        %v3512 = vmul.f32 %v3448, %v3384
        %v3513 = vmul.f32 %v3449, %v3385
        %v3514 = vmul.f32 %v3450, %v3386
        %v3515 = vmul.f32 %v3451, %v3387
        %v3516 = vmul.f32 %v3452, %v3388
        %v3517 = vmul.f32 %v3453, %v3389
        %v3518 = vmul.f32 %v3454, %v3390
        %v3519 = vmul.f32 %v3455, %v3391
        %v3520 = vmul.f32 %v3456, %v3392
        %v3521 = vmul.f32 %v3457, %v3393
        %v3522 = vmul.f32 %v3458, %v3394
        %v3523 = vmul.f32 %v3459, %v3395
        %v3524 = vmul.f32 %v3460, %v3396
        %v3525 = vmul.f32 %v3461, %v3397
        %v3526 = vmul.f32 %v3462, %v3398
        %v3527 = vmul.f32 %v3463, %v3399
        %v3528 = vmul.f32 %v3464, %v3400
        %v3529 = vmul.f32 %v3465, %v3401
        %v3530 = vmul.f32 %v3466, %v3402
        %v3531 = vmul.f32 %v3467, %v3403
        %v3532 = vmul.f32 %v3468, %v3404
        %v3533 = vmul.f32 %v3469, %v3405
        %v3534 = vmul.f32 %v3470, %v3406
        %v3535 = vmul.f32 %v3471, %v3407
        %v3536 = vmul.f32 %v3472, %v3408
        %v3537 = vmul.f32 %v3473, %v3409
        %v3538 = vmul.f32 %v3474, %v3410
        %v3539 = vmul.f32 %v3475, %v3411
        %v3540 = vmul.f32 %v3476, %v3412
        %v3541 = vmul.f32 %v3477, %v3413
        %v3542 = vmul.f32 %v3478, %v3414
        %v3543 = vmul.f32 %v3479, %v3415
        %v3544 = vmul.f32 %v3480, %v3416
        %v3545 = vmul.f32 %v3481, %v3417
        %v3546 = vmul.f32 %v3482, %v3418
        %v3547 = vmul.f32 %v3483, %v3419
        %v3548 = vmul.f32 %v3484, %v3420
        %v3549 = vmul.f32 %v3485, %v3421
        %v3550 = vmul.f32 %v3486, %v3422
        %v3551 = vmul.f32 %v3487, %v3423
        %v3552 = vmul.f32 %v3488, %v3424
        %v3553 = vmul.f32 %v3489, %v3425
        %v3554 = vmul.f32 %v3490, %v3426
        %v3555 = vmul.f32 %v3491, %v3427
        %v3556 = vmul.f32 %v3492, %v3428
        %v3557 = vmul.f32 %v3493, %v3429
        %v3558 = vmul.f32 %v3494, %v3430
        %v3559 = vmul.f32 %v3495, %v3431
        %v3560 = vmul.f32 %v3496, %v3432
        %v3561 = vmul.f32 %v3497, %v3433
        %v3562 = vmul.f32 %v3498, %v3434
        %v3563 = vmul.f32 %v3499, %v3435
        %v3564 = vmul.f32 %v3500, %v3436
        %v3565 = vmul.f32 %v3501, %v3437
        %v3566 = vmul.f32 %v3502, %v3438
        %v3567 = vmul.f32 %v3503, %v3439
        %v3568 = vld [vmem:[%s5] sm:$0x3]
        %3569 = vmatprep.subr.mxu0 %v3505
        %3570 = vmatpush1.msra.mxu0 %v3504
        %3571 = vmatprep.subr.mxu0 %v3509
        %3572 = vmatpush1.msra.mxu0 %v3508
        %3573 = vmatprep.subr.mxu0 %v3513
        %3574 = vmatpush1.msra.mxu0 %v3512
        %3575 = vmatprep.subr.mxu0 %v3517
        %3576 = vmatpush1.msra.mxu0 %v3516
        %3577 = vmatprep.subr.mxu0 %v3521
        %3578 = vmatpush1.msra.mxu0 %v3520
        %3579 = vmatprep.subr.mxu0 %v3525
        %3580 = vmatpush1.msra.mxu0 %v3524
        %3581 = vmatprep.subr.mxu0 %v3529
        %3582 = vmatpush1.msra.mxu0 %v3528
        %3583 = vmatprep.subr.mxu0 %v3533
        %3584 = vmatpush1.msra.mxu0 %v3532
        %3585 = vmatprep.subr.mxu0 %v3537
        %3586 = vmatpush1.msra.mxu0 %v3536
        %3587 = vmatprep.subr.mxu0 %v3541
        %3588 = vmatpush1.msra.mxu0 %v3540
        %3589 = vmatprep.subr.mxu0 %v3545
        %3590 = vmatpush1.msra.mxu0 %v3544
        %3591 = vmatprep.subr.mxu0 %v3549
        %3592 = vmatpush1.msra.mxu0 %v3548
        %3593 = vmatprep.subr.mxu0 %v3553
        %3594 = vmatpush1.msra.mxu0 %v3552
        %3595 = vmatprep.subr.mxu0 %v3557
        %3596 = vmatpush1.msra.mxu0 %v3556
        %3597 = vmatprep.subr.mxu0 %v3561
        %3598 = vmatpush1.msra.mxu0 %v3560
        %3599 = vmatprep.subr.mxu0 %v3565
        %3600 = vmatpush1.msra.mxu0 %v3564
        %3601 = vmatprep.subr.mxu0 0.0
        %3602 = vmatpush1.msra.mxu0 0.0
        %3603 = vmatprep.subr.mxu0 0.0
        %3604 = vmatpush1.msra.mxu0 0.0
        %3605 = vmatprep.subr.mxu0 0.0
        %3606 = vmatpush1.msra.mxu0 0.0
        %3607 = vmatprep.subr.mxu0 0.0
        %3608 = vmatpush1.msra.mxu0 0.0
        %3609 = vmatprep.subr.mxu0 0.0
        %3610 = vmatpush1.msra.mxu0 0.0
        %3611 = vmatprep.subr.mxu0 0.0
        %3612 = vmatpush1.msra.mxu0 0.0
        %3613 = vmatprep.subr.mxu0 0.0
        %3614 = vmatpush1.msra.mxu0 0.0
        %3615 = vmatprep.subr.mxu0 0.0
        %3616 = vmatpush1.msra.mxu0 0.0
        %3617 = vmatprep.subr.mxu0 0.0
        %3618 = vmatpush1.msra.mxu0 0.0
        %3619 = vmatprep.subr.mxu0 0.0
        %3620 = vmatpush1.msra.mxu0 0.0
        %3621 = vmatprep.subr.mxu0 0.0
        %3622 = vmatpush1.msra.mxu0 0.0
        %3623 = vmatprep.subr.mxu0 0.0
        %3624 = vmatpush1.msra.mxu0 0.0
        %3625 = vmatprep.subr.mxu0 0.0
        %3626 = vmatpush1.msra.mxu0 0.0
        %3627 = vmatprep.subr.mxu0 0.0
        %3628 = vmatpush1.msra.mxu0 0.0
        %3629 = vmatprep.subr.mxu0 0.0
        %3630 = vmatpush1.msra.mxu0 0.0
        %3631 = vmatprep.subr.mxu0 0.0
        %3632 = vmatpush1.msra.mxu0 0.0
        %3633 = vmatprep.mubr.f32.mxu0 0.0
        %3634 = vmatmul.mubr.f32.gmra.mrb[0].mxu0 %v3568
        %v3635 = vpop.f32.mrb[0].mxu0
        %v3636 = vadd.f32 0.0, %v3635
        %v3637 = vpop.f32.mrb[0].mxu0
        %v3638 = vadd.f32 0.0, %v3637
        %3639 = vdwg.mxu0
        %3640 = vmatprep.subr.mxu0 %v3507
        %3641 = vmatpush1.msra.mxu0 %v3506
        %3642 = vmatprep.subr.mxu0 %v3511
        %3643 = vmatpush1.msra.mxu0 %v3510
        %3644 = vmatprep.subr.mxu0 %v3515
        %3645 = vmatpush1.msra.mxu0 %v3514
        %3646 = vmatprep.subr.mxu0 %v3519
        %3647 = vmatpush1.msra.mxu0 %v3518
        %3648 = vmatprep.subr.mxu0 %v3523
        %3649 = vmatpush1.msra.mxu0 %v3522
        %3650 = vmatprep.subr.mxu0 %v3527
        %3651 = vmatpush1.msra.mxu0 %v3526
        %3652 = vmatprep.subr.mxu0 %v3531
        %3653 = vmatpush1.msra.mxu0 %v3530
        %3654 = vmatprep.subr.mxu0 %v3535
        %3655 = vmatpush1.msra.mxu0 %v3534
        %3656 = vmatprep.subr.mxu0 %v3539
        %3657 = vmatpush1.msra.mxu0 %v3538
        %3658 = vmatprep.subr.mxu0 %v3543
        %3659 = vmatpush1.msra.mxu0 %v3542
        %3660 = vmatprep.subr.mxu0 %v3547
        %3661 = vmatpush1.msra.mxu0 %v3546
        %3662 = vmatprep.subr.mxu0 %v3551
        %3663 = vmatpush1.msra.mxu0 %v3550
        %3664 = vmatprep.subr.mxu0 %v3555
        %3665 = vmatpush1.msra.mxu0 %v3554
        %3666 = vmatprep.subr.mxu0 %v3559
        %3667 = vmatpush1.msra.mxu0 %v3558
        %3668 = vmatprep.subr.mxu0 %v3563
        %3669 = vmatpush1.msra.mxu0 %v3562
        %3670 = vmatprep.subr.mxu0 %v3567
        %3671 = vmatpush1.msra.mxu0 %v3566
        %3672 = vmatprep.subr.mxu0 0.0
        %3673 = vmatpush1.msra.mxu0 0.0
        %3674 = vmatprep.subr.mxu0 0.0
        %3675 = vmatpush1.msra.mxu0 0.0
        %3676 = vmatprep.subr.mxu0 0.0
        %3677 = vmatpush1.msra.mxu0 0.0
        %3678 = vmatprep.subr.mxu0 0.0
        %3679 = vmatpush1.msra.mxu0 0.0
        %3680 = vmatprep.subr.mxu0 0.0
        %3681 = vmatpush1.msra.mxu0 0.0
        %3682 = vmatprep.subr.mxu0 0.0
        %3683 = vmatpush1.msra.mxu0 0.0
        %3684 = vmatprep.subr.mxu0 0.0
        %3685 = vmatpush1.msra.mxu0 0.0
        %3686 = vmatprep.subr.mxu0 0.0
        %3687 = vmatpush1.msra.mxu0 0.0
        %3688 = vmatprep.subr.mxu0 0.0
        %3689 = vmatpush1.msra.mxu0 0.0
        %3690 = vmatprep.subr.mxu0 0.0
        %3691 = vmatpush1.msra.mxu0 0.0
        %3692 = vmatprep.subr.mxu0 0.0
        %3693 = vmatpush1.msra.mxu0 0.0
        %3694 = vmatprep.subr.mxu0 0.0
        %3695 = vmatpush1.msra.mxu0 0.0
        %3696 = vmatprep.subr.mxu0 0.0
        %3697 = vmatpush1.msra.mxu0 0.0
        %3698 = vmatprep.subr.mxu0 0.0
        %3699 = vmatpush1.msra.mxu0 0.0
        %3700 = vmatprep.subr.mxu0 0.0
        %3701 = vmatpush1.msra.mxu0 0.0
        %3702 = vmatprep.subr.mxu0 0.0
        %3703 = vmatpush1.msra.mxu0 0.0
        %3704 = vmatprep.mubr.f32.mxu0 0.0
        %3705 = vmatmul.mubr.f32.gmra.mrb[0].mxu0 %v3568
        %v3706 = vpop.f32.mrb[0].mxu0
        %v3707 = vadd.f32 0.0, %v3706
        %v3708 = vpop.f32.mrb[0].mxu0
        %v3709 = vadd.f32 0.0, %v3708
        %3710 = vdwg.mxu0
        %v3711 = vld [vmem:[%s355] sm:$0xff]
        %v3712 = vld [vmem:[%s355 + $0x8] sm:$0xff]
        %v3713 = vld [vmem:[%s355 + $0x10] sm:$0xff]
        %v3714 = vld [vmem:[%s355 + $0x18] sm:$0xff]
        %v3715 = vld [vmem:[%s355 + $0x20] sm:$0xff]
        %v3716 = vld [vmem:[%s355 + $0x28] sm:$0xff]
        %v3717 = vld [vmem:[%s355 + $0x30] sm:$0xff]
        %v3718 = vld [vmem:[%s355 + $0x38] sm:$0xff]
        %v3719 = vld [vmem:[%s355 + $0x40] sm:$0xff]
        %v3720 = vld [vmem:[%s355 + $0x48] sm:$0xff]
        %v3721 = vld [vmem:[%s355 + $0x50] sm:$0xff]
        %v3722 = vld [vmem:[%s355 + $0x58] sm:$0xff]
        %v3723 = vld [vmem:[%s355 + $0x60] sm:$0xff]
        %v3724 = vld [vmem:[%s355 + $0x68] sm:$0xff]
        %v3725 = vld [vmem:[%s355 + $0x70] sm:$0xff]
        %v3726 = vld [vmem:[%s355 + $0x78] sm:$0xff]
        %v3727 = vld [vmem:[%s355 + $0x80] sm:$0xff]
        %v3728 = vld [vmem:[%s355 + $0x88] sm:$0xff]
        %v3729 = vld [vmem:[%s355 + $0x90] sm:$0xff]
        %v3730 = vld [vmem:[%s355 + $0x98] sm:$0xff]
        %v3731 = vld [vmem:[%s355 + $0xa0] sm:$0xff]
        %v3732 = vld [vmem:[%s355 + $0xa8] sm:$0xff]
        %v3733 = vld [vmem:[%s355 + $0xb0] sm:$0xff]
        %v3734 = vld [vmem:[%s355 + $0xb8] sm:$0xff]
        %v3735 = vld [vmem:[%s355 + $0xc0] sm:$0xff]
        %v3736 = vld [vmem:[%s355 + $0xc8] sm:$0xff]
        %v3737 = vld [vmem:[%s355 + $0xd0] sm:$0xff]
        %v3738 = vld [vmem:[%s355 + $0xd8] sm:$0xff]
        %v3739 = vld [vmem:[%s355 + $0xe0] sm:$0xff]
        %v3740 = vld [vmem:[%s355 + $0xe8] sm:$0xff]
        %v3741 = vld [vmem:[%s355 + $0xf0] sm:$0xff]
        %v3742 = vld [vmem:[%s355 + $0xf8] sm:$0xff]
        %v3743 = vld [vmem:[%s355 + $0x100] sm:$0xff]
        %v3744 = vld [vmem:[%s355 + $0x108] sm:$0xff]
        %v3745 = vld [vmem:[%s355 + $0x110] sm:$0xff]
        %v3746 = vld [vmem:[%s355 + $0x118] sm:$0xff]
        %v3747 = vld [vmem:[%s355 + $0x120] sm:$0xff]
        %v3748 = vld [vmem:[%s355 + $0x128] sm:$0xff]
        %v3749 = vld [vmem:[%s355 + $0x130] sm:$0xff]
        %v3750 = vld [vmem:[%s355 + $0x138] sm:$0xff]
        %v3751 = vld [vmem:[%s355 + $0x140] sm:$0xff]
        %v3752 = vld [vmem:[%s355 + $0x148] sm:$0xff]
        %v3753 = vld [vmem:[%s355 + $0x150] sm:$0xff]
        %v3754 = vld [vmem:[%s355 + $0x158] sm:$0xff]
        %v3755 = vld [vmem:[%s355 + $0x160] sm:$0xff]
        %v3756 = vld [vmem:[%s355 + $0x168] sm:$0xff]
        %v3757 = vld [vmem:[%s355 + $0x170] sm:$0xff]
        %v3758 = vld [vmem:[%s355 + $0x178] sm:$0xff]
        %v3759 = vld [vmem:[%s355 + $0x180] sm:$0xff]
        %v3760 = vld [vmem:[%s355 + $0x188] sm:$0xff]
        %v3761 = vld [vmem:[%s355 + $0x190] sm:$0xff]
        %v3762 = vld [vmem:[%s355 + $0x198] sm:$0xff]
        %v3763 = vld [vmem:[%s355 + $0x1a0] sm:$0xff]
        %v3764 = vld [vmem:[%s355 + $0x1a8] sm:$0xff]
        %v3765 = vld [vmem:[%s355 + $0x1b0] sm:$0xff]
        %v3766 = vld [vmem:[%s355 + $0x1b8] sm:$0xff]
        %v3767 = vld [vmem:[%s355 + $0x1c0] sm:$0xff]
        %v3768 = vld [vmem:[%s355 + $0x1c8] sm:$0xff]
        %v3769 = vld [vmem:[%s355 + $0x1d0] sm:$0xff]
        %v3770 = vld [vmem:[%s355 + $0x1d8] sm:$0xff]
        %v3771 = vld [vmem:[%s355 + $0x1e0] sm:$0xff]
        %v3772 = vld [vmem:[%s355 + $0x1e8] sm:$0xff]
        %v3773 = vld [vmem:[%s355 + $0x1f0] sm:$0xff]
        %v3774 = vld [vmem:[%s355 + $0x1f8] sm:$0xff]
        %3775 = vmatprep.subr.mxu0 0.0
        %3776 = vmatpush1.msra.mxu0 %v3711
        %3777 = vmatprep.subr.mxu0 0.0
        %3778 = vmatpush1.msra.mxu0 %v3712
        %3779 = vmatprep.subr.mxu0 0.0
        %3780 = vmatpush1.msra.mxu0 %v3713
        %3781 = vmatprep.subr.mxu0 0.0
        %3782 = vmatpush1.msra.mxu0 %v3714
        %3783 = vmatprep.subr.mxu0 0.0
        %3784 = vmatpush1.msra.mxu0 %v3715
        %3785 = vmatprep.subr.mxu0 0.0
        %3786 = vmatpush1.msra.mxu0 %v3716
        %3787 = vmatprep.subr.mxu0 0.0
        %3788 = vmatpush1.msra.mxu0 %v3717
        %3789 = vmatprep.subr.mxu0 0.0
        %3790 = vmatpush1.msra.mxu0 %v3718
        %3791 = vmatprep.subr.mxu0 0.0
        %3792 = vmatpush1.msra.mxu0 %v3719
        %3793 = vmatprep.subr.mxu0 0.0
        %3794 = vmatpush1.msra.mxu0 %v3720
        %3795 = vmatprep.subr.mxu0 0.0
        %3796 = vmatpush1.msra.mxu0 %v3721
        %3797 = vmatprep.subr.mxu0 0.0
        %3798 = vmatpush1.msra.mxu0 %v3722
        %3799 = vmatprep.subr.mxu0 0.0
        %3800 = vmatpush1.msra.mxu0 %v3723
        %3801 = vmatprep.subr.mxu0 0.0
        %3802 = vmatpush1.msra.mxu0 %v3724
        %3803 = vmatprep.subr.mxu0 0.0
        %3804 = vmatpush1.msra.mxu0 %v3725
        %3805 = vmatprep.subr.mxu0 0.0
        %3806 = vmatpush1.msra.mxu0 %v3726
        %3807 = vmatprep.subr.mxu0 0.0
        %3808 = vmatpush1.msra.mxu0 %v3727
        %3809 = vmatprep.subr.mxu0 0.0
        %3810 = vmatpush1.msra.mxu0 %v3728
        %3811 = vmatprep.subr.mxu0 0.0
        %3812 = vmatpush1.msra.mxu0 %v3729
        %3813 = vmatprep.subr.mxu0 0.0
        %3814 = vmatpush1.msra.mxu0 %v3730
        %3815 = vmatprep.subr.mxu0 0.0
        %3816 = vmatpush1.msra.mxu0 %v3731
        %3817 = vmatprep.subr.mxu0 0.0
        %3818 = vmatpush1.msra.mxu0 %v3732
        %3819 = vmatprep.subr.mxu0 0.0
        %3820 = vmatpush1.msra.mxu0 %v3733
        %3821 = vmatprep.subr.mxu0 0.0
        %3822 = vmatpush1.msra.mxu0 %v3734
        %3823 = vmatprep.subr.mxu0 0.0
        %3824 = vmatpush1.msra.mxu0 %v3735
        %3825 = vmatprep.subr.mxu0 0.0
        %3826 = vmatpush1.msra.mxu0 %v3736
        %3827 = vmatprep.subr.mxu0 0.0
        %3828 = vmatpush1.msra.mxu0 %v3737
        %3829 = vmatprep.subr.mxu0 0.0
        %3830 = vmatpush1.msra.mxu0 %v3738
        %3831 = vmatprep.subr.mxu0 0.0
        %3832 = vmatpush1.msra.mxu0 %v3739
        %3833 = vmatprep.subr.mxu0 0.0
        %3834 = vmatpush1.msra.mxu0 %v3740
        %3835 = vmatprep.subr.mxu0 0.0
        %3836 = vmatpush1.msra.mxu0 %v3741
        %3837 = vmatprep.subr.mxu0 0.0
        %3838 = vmatpush1.msra.mxu0 %v3742
        %3839 = vmatprep.mubr.f32.mxu0 %v3638
        %3840 = vmatmul.mubr.f32.gmra.mrb[0].mxu0 %v3636
        %v3841 = vpop.f32.mrb[0].mxu0
        %v3842 = vadd.f32 0.0, %v3841
        %v3843 = vpop.f32.mrb[0].mxu0
        %3844 = vdwg.mxu0
        %3845 = vmatprep.subr.mxu0 0.0
        %3846 = vmatpush1.msra.mxu0 %v3743
        %3847 = vmatprep.subr.mxu0 0.0
        %3848 = vmatpush1.msra.mxu0 %v3744
        %3849 = vmatprep.subr.mxu0 0.0
        %3850 = vmatpush1.msra.mxu0 %v3745
        %3851 = vmatprep.subr.mxu0 0.0
        %3852 = vmatpush1.msra.mxu0 %v3746
        %3853 = vmatprep.subr.mxu0 0.0
        %3854 = vmatpush1.msra.mxu0 %v3747
        %3855 = vmatprep.subr.mxu0 0.0
        %3856 = vmatpush1.msra.mxu0 %v3748
        %3857 = vmatprep.subr.mxu0 0.0
        %3858 = vmatpush1.msra.mxu0 %v3749
        %3859 = vmatprep.subr.mxu0 0.0
        %3860 = vmatpush1.msra.mxu0 %v3750
        %3861 = vmatprep.subr.mxu0 0.0
        %3862 = vmatpush1.msra.mxu0 %v3751
        %3863 = vmatprep.subr.mxu0 0.0
        %3864 = vmatpush1.msra.mxu0 %v3752
        %3865 = vmatprep.subr.mxu0 0.0
        %3866 = vmatpush1.msra.mxu0 %v3753
        %3867 = vmatprep.subr.mxu0 0.0
        %3868 = vmatpush1.msra.mxu0 %v3754
        %3869 = vmatprep.subr.mxu0 0.0
        %3870 = vmatpush1.msra.mxu0 %v3755
        %3871 = vmatprep.subr.mxu0 0.0
        %3872 = vmatpush1.msra.mxu0 %v3756
        %3873 = vmatprep.subr.mxu0 0.0
        %3874 = vmatpush1.msra.mxu0 %v3757
        %3875 = vmatprep.subr.mxu0 0.0
        %3876 = vmatpush1.msra.mxu0 %v3758
        %3877 = vmatprep.subr.mxu0 0.0
        %3878 = vmatpush1.msra.mxu0 %v3759
        %3879 = vmatprep.subr.mxu0 0.0
        %3880 = vmatpush1.msra.mxu0 %v3760
        %3881 = vmatprep.subr.mxu0 0.0
        %3882 = vmatpush1.msra.mxu0 %v3761
        %3883 = vmatprep.subr.mxu0 0.0
        %3884 = vmatpush1.msra.mxu0 %v3762
        %3885 = vmatprep.subr.mxu0 0.0
        %3886 = vmatpush1.msra.mxu0 %v3763
        %3887 = vmatprep.subr.mxu0 0.0
        %3888 = vmatpush1.msra.mxu0 %v3764
        %3889 = vmatprep.subr.mxu0 0.0
        %3890 = vmatpush1.msra.mxu0 %v3765
        %3891 = vmatprep.subr.mxu0 0.0
        %3892 = vmatpush1.msra.mxu0 %v3766
        %3893 = vmatprep.subr.mxu0 0.0
        %3894 = vmatpush1.msra.mxu0 %v3767
        %3895 = vmatprep.subr.mxu0 0.0
        %3896 = vmatpush1.msra.mxu0 %v3768
        %3897 = vmatprep.subr.mxu0 0.0
        %3898 = vmatpush1.msra.mxu0 %v3769
        %3899 = vmatprep.subr.mxu0 0.0
        %3900 = vmatpush1.msra.mxu0 %v3770
        %3901 = vmatprep.subr.mxu0 0.0
        %3902 = vmatpush1.msra.mxu0 %v3771
        %3903 = vmatprep.subr.mxu0 0.0
        %3904 = vmatpush1.msra.mxu0 %v3772
        %3905 = vmatprep.subr.mxu0 0.0
        %3906 = vmatpush1.msra.mxu0 %v3773
        %3907 = vmatprep.subr.mxu0 0.0
        %3908 = vmatpush1.msra.mxu0 %v3774
        %3909 = vmatprep.mubr.f32.mxu0 %v3709
        %3910 = vmatmul.mubr.f32.gmra.mrb[0].mxu0 %v3707
        %v3911 = vpop.f32.mrb[0].mxu0
        %v3912 = vadd.f32 %v3842, %v3911
        %v3913 = vpop.f32.mrb[0].mxu0
        %3914 = vdwg.mxu0
        %vm3915 = vcmask 25600
        %3916 = vst.msk [vmem:[%s360] sm:$0x3] %vm3915, %v3912
      $region52: #{attention_head_forward.1} parent=43 // pred_fallthru
        _
      %p3917 = scmp.lt.s32.totalorder %s21, 0
      %s3918 = scalar_select %p3917, %s21, 0
      %s3919 = smul.addr %s3918, 2
      %s3920 = scalar_lea.vmem %s6, %s3919
      // Predicated region
      $region53: #{attention_head_forward.1} parent=43 // pred_check
        %p3921 = pneg %p200
      $region54: #{attention_head_forward.1} parent=43 // pred_check_branch
        %3923 = sbr.rel (%p3921) target = $region56
      $region55: #{attention_head_forward.1} parent=43 // pred_region
        _
      $region56: #{attention_head_forward.1} parent=43 // pred_fallthru
        _
      // Predicated region
      $region57: #{attention_head_forward.1} parent=43 // pred_check
        %p3924 = pneg %p200
      $region58: #{attention_head_forward.1} parent=43 // pred_check_branch
        %3926 = sbr.rel (%p3924) target = $region60
      $region59: #{attention_head_forward.1} parent=43 // pred_region
        %p3927 = scmp.lt.s32.totalorder %s21, 0
        %s3928 = scalar_select %p3927, %s21, 0
        %s3929 = smul.addr %s3928, 2
        %s3930 = scalar_lea.vmem %s6, %s3929
      $region60: #{attention_head_forward.1} parent=43 // pred_fallthru
        _
    $region44: #{attention_head_forward.1} parent=5 // pred_fallthru
      _
    %p3931 = scmp.le.s32.totalorder 2, %s12
    // Predicated region
    $region61: #{attention_head_forward.1} parent=5 // pred_check
      %p3932 = pneg %p3931
    $region62: #{attention_head_forward.1} parent=5 // pred_check_branch
      %3934 = sbr.rel (%p3932) target = $region64
    $region63: #{attention_head_forward.1} parent=5 // pred_region
      %s3935 = ssub.s32 %s12, 2
    $region64: #{attention_head_forward.1} parent=5 // pred_fallthru
      _
  $region6: #{attention_head_forward.1} parent=0 // loop_footer
    %s16 = sadd.s32 1, %s12
  $region7: #{attention_head_forward.1} parent=0 // loop_footer_branch
    %11 = sbr.rel target = $region3
  $region8: #{attention_head_forward.1} parent=0 // loop_exit
    _

</llo_original>
